<compile_context>
chip_gen: v5e
topology: v5e:2x2
jax: 0.10.0
libtpu: 0.0.40
codegen_flags: <defaults>
</compile_context>

<pallas_src>
import functools

import jax
import jax.numpy as jnp
from jax.experimental import pallas as pl
from jax.experimental.pallas import tpu as pltpu

COUT_PAD = 128    # conv output channels padded to lane width (lane-dense stores)
NC_PAD = 128      # padded number of classes for the head matmul


def _round8(c):
    return max(8, ((c + 7) // 8) * 8)


# ---------------------------------------------------------------------------
# Pallas kernels
# ---------------------------------------------------------------------------
def _conv_matmul_kernel(x_ref, w_ref, shift_ref, *rest, apply_relu, has_res):
    """One output tile: o = maybe_relu(x @ w + shift [+ res]).

    BN scale is folded into w offline; the whole K reduction is a single MXU
    dot (no K grid axis, no accumulator scratch)."""
    if has_res:
        res_ref, o_ref = rest
    else:
        (o_ref,) = rest
    y = jnp.dot(x_ref[...], w_ref[...], preferred_element_type=jnp.float32)
    y = y + shift_ref[...]
    if has_res:
        y = y + res_ref[...].astype(jnp.float32)
    if apply_relu:
        y = jnp.maximum(y, 0.0)
    o_ref[...] = y.astype(o_ref.dtype)


def _pick_tm(M):
    """Row-tile size: >=2 tiles along the parallel axis whenever possible (so both
    v7x TensorCores get work), capped at 256 rows, always dividing M."""
    if M <= 8 or M % 8 != 0:
        return M
    tm = max(8, min(256, (M // 2) // 8 * 8))
    while M % tm != 0:
        tm -= 8
    return tm


def fused_conv_matmul(x, w, shift, res=None, *, apply_relu,
                      out_dtype=jnp.bfloat16):
    """Conv-as-matmul (+ folded BN + optional residual + ReLU).

    x:     (M, K)  bf16 im2col patches at the REAL input channel count
    w:     (K, N)  bf16 BN-scale-folded weights, N padded to 128 (lane-dense)
    shift: (1, N)  f32 BN shift (zero on padded channels)
    res:   (M, N)  optional bf16 residual
    """
    M, K = x.shape
    _, N = w.shape
    tm = _pick_tm(M)
    grid = (M // tm,)

    has_res = res is not None
    kernel = functools.partial(_conv_matmul_kernel,
                               apply_relu=apply_relu, has_res=has_res)

    in_specs = [
        pl.BlockSpec((tm, K), lambda i: (i, 0)),
        pl.BlockSpec((K, N), lambda i: (0, 0)),
        pl.BlockSpec((1, N), lambda i: (0, 0)),
    ]
    args = [x, w, shift]
    if has_res:
        in_specs.append(pl.BlockSpec((tm, N), lambda i: (i, 0)))
        args.append(res)

    out_bytes = M * N * jnp.dtype(out_dtype).itemsize
    bytes_accessed = (x.size * x.dtype.itemsize + w.size * w.dtype.itemsize
                      + shift.size * 4
                      + (res.size * res.dtype.itemsize if has_res else 0)
                      + out_bytes)
    cost = pl.CostEstimate(flops=2 * M * N * K, transcendentals=0,
                           bytes_accessed=int(bytes_accessed))

    return pl.pallas_call(
        kernel,
        out_shape=jax.ShapeDtypeStruct((M, N), out_dtype),
        grid=grid,
        in_specs=in_specs,
        out_specs=pl.BlockSpec((tm, N), lambda i: (i, 0)),
        compiler_params=pltpu.CompilerParams(
            dimension_semantics=("parallel",)),
        cost_estimate=cost,
    )(*args)


def _pool_linear_kernel(x_ref, w_ref, b_ref, o_ref):
    # x: (N, HW, C) bf16 -> global average pool over HW (cross-sublane reduce),
    # features kept in f32 for the classifier matmul.
    feat = jnp.mean(x_ref[...].astype(jnp.float32), axis=1)          # (N, C)
    o_ref[...] = jnp.dot(feat, w_ref[...],
                         preferred_element_type=jnp.float32) + b_ref[...]


def pool_linear(x, w, b):
    """Fused global average pooling + Linear head.  x: (N, HW, C) -> (N, NC_PAD) f32."""
    Nb, HW, C = x.shape
    _, NC = w.shape
    return pl.pallas_call(
        _pool_linear_kernel,
        out_shape=jax.ShapeDtypeStruct((Nb, NC), jnp.float32),
        grid=(1,),
        in_specs=[
            pl.BlockSpec((Nb, HW, C), lambda i: (0, 0, 0)),
            pl.BlockSpec((C, NC), lambda i: (0, 0)),
            pl.BlockSpec((1, NC), lambda i: (0, 0)),
        ],
        out_specs=pl.BlockSpec((Nb, NC), lambda i: (0, 0)),
        compiler_params=pltpu.CompilerParams(
            dimension_semantics=("arbitrary",)),
    )(x, w, b)


# ---------------------------------------------------------------------------
# Plain-JAX glue: im2col patch extraction at the REAL channel count
# ---------------------------------------------------------------------------
def extract_patches(x, ksize, stride, pad, c_take):
    """x: (N, H, W, C_any) NHWC -> (N*Ho*Wo, ksize*ksize*c_take), plus Ho, Wo.
    Only the first c_take channels are used (drops the lane padding)."""
    N, H, W, _ = x.shape
    xc = x[..., :c_take]
    xp = jnp.pad(xc, ((0, 0), (pad, pad), (pad, pad), (0, 0)))
    Ho = (H + 2 * pad - ksize) // stride + 1
    Wo = (W + 2 * pad - ksize) // stride + 1
    cols = []
    for ky in range(ksize):
        for kx in range(ksize):
            cols.append(xp[:, ky:ky + stride * Ho:stride,
                           kx:kx + stride * Wo:stride, :])
    patches = jnp.concatenate(cols, axis=-1)          # (N, Ho, Wo, k*k*c_take)
    return patches.reshape(N * Ho * Wo, ksize * ksize * c_take), Ho, Wo


# ---------------------------------------------------------------------------
# Parameter initialization (deterministic, synthetic; mirrors module shapes).
# Weights: input channels rounded only to 8 (sublane granularity), output
# channels padded to 128; eval-mode BN scale folded into the weights.
# ---------------------------------------------------------------------------
def _kaiming(key, shape, fan_in):
    return jax.random.normal(key, shape, jnp.float32) * jnp.sqrt(2.0 / fan_in)


def _make_bn(key, c, c_pad):
    """Eval-mode BN folded into (scale, shift); padded channels are zero so they
    stay exactly zero through the network."""
    k1, k2 = jax.random.split(key)
    gamma = 1.0 + 0.1 * jax.random.normal(k1, (c,), jnp.float32)
    beta = 0.1 * jax.random.normal(k2, (c,), jnp.float32)
    mean = jnp.zeros((c,), jnp.float32)
    var = jnp.ones((c,), jnp.float32)
    eps = 1e-5
    scale = gamma / jnp.sqrt(var + eps)
    shift = beta - mean * scale
    scale_p = jnp.zeros((c_pad,), jnp.float32).at[:c].set(scale)
    shift_p = jnp.zeros((1, c_pad), jnp.float32).at[0, :c].set(shift)
    return scale_p, shift_p


def _make_conv3x3_w(key, bn_key, cin, cin_round, cout):
    """(9*cin_round, 128) bf16 weight with the BN scale folded in."""
    w = _kaiming(key, (9, cin, cout), 9 * cin)
    scale, shift = _make_bn(bn_key, cout, COUT_PAD)
    wp = jnp.zeros((9, cin_round, COUT_PAD), jnp.float32).at[:, :cin, :cout].set(w)
    wp = wp * scale[None, None, :]                    # fold BN scale into weights
    return wp.reshape(9 * cin_round, COUT_PAD).astype(jnp.bfloat16), shift


def _make_conv1x1_w(key, bn_key, cin, cin_round, cout):
    w = _kaiming(key, (cin, cout), cin)
    scale, shift = _make_bn(bn_key, cout, COUT_PAD)
    wp = jnp.zeros((cin_round, COUT_PAD), jnp.float32).at[:cin, :cout].set(w)
    wp = wp * scale[None, :]
    return wp.astype(jnp.bfloat16), shift


def _init_block(key, in_planes, planes, stride):
    keys = jax.random.split(key, 6)
    p = {"in_planes": in_planes, "planes": planes}
    p["w1"], p["b1"] = _make_conv3x3_w(keys[0], keys[1], in_planes,
                                       _round8(in_planes), planes)
    p["w2"], p["b2"] = _make_conv3x3_w(keys[2], keys[3], planes,
                                       _round8(planes), planes)
    if stride != 1 or in_planes != planes:            # projection shortcut
        p["ws"], p["bs"] = _make_conv1x1_w(keys[4], keys[5], in_planes,
                                           _round8(in_planes), planes)
    return p


def init_resnet_params(key, nf, num_classes, num_blocks, bias):
    keys = jax.random.split(key, 8)
    params = {}
    params["conv1_w"], params["conv1_b"] = _make_conv3x3_w(
        keys[0], keys[1], 3, _round8(3), nf)

    in_planes = nf
    layer_cfg = [(nf, num_blocks[0], 1), (2 * nf, num_blocks[1], 2),
                 (4 * nf, num_blocks[2], 2), (8 * nf, num_blocks[3], 2)]
    for li, (planes, nb, stride) in enumerate(layer_cfg):
        strides = [stride] + [1] * (nb - 1)
        bkeys = jax.random.split(keys[2 + li], nb)
        blocks = []
        for s, bk in zip(strides, bkeys):
            blocks.append((_init_block(bk, in_planes, planes, s), s))
            in_planes = planes
        params[f"layer{li + 1}"] = blocks

    d = 8 * nf                                        # BasicBlock expansion == 1
    wl = _kaiming(keys[6], (d, num_classes), d)
    params["linear_w"] = (jnp.zeros((COUT_PAD, NC_PAD), jnp.float32)
                          .at[:d, :num_classes].set(wl))
    bl = (0.01 * jax.random.normal(keys[7], (num_classes,), jnp.float32)
          if bias else jnp.zeros((num_classes,), jnp.float32))
    params["linear_b"] = (jnp.zeros((1, NC_PAD), jnp.float32)
                          .at[0, :num_classes].set(bl))
    return params


# ---------------------------------------------------------------------------
# Model forward (BasicBlock ResNet, eval-mode BN, returnt='out' path)
# ---------------------------------------------------------------------------
def basic_block_forward(x, p, stride):
    """x: (N, H, W, 128) bf16 with exact zeros on padded channels."""
    N, H, W, _ = x.shape
    cin = _round8(p["in_planes"])
    planes = _round8(p["planes"])

    # conv1 (3x3, stride) + bn1 (folded) + relu
    p1, Ho, Wo = extract_patches(x, 3, stride, 1, cin)
    out1 = fused_conv_matmul(p1, p["w1"], p["b1"], apply_relu=True)
    out1 = out1.reshape(N, Ho, Wo, COUT_PAD)

    # shortcut, streamed as the `res` input of conv2's kernel
    if "ws" in p:                                     # 1x1 conv + BN projection
        xs = x[:, ::stride, ::stride, :cin].reshape(N * Ho * Wo, cin)
        sc = fused_conv_matmul(xs, p["ws"], p["bs"], apply_relu=False)
    else:                                             # identity
        sc = x.reshape(N * H * W, COUT_PAD)

    # conv2 (3x3, stride 1) + bn2 (folded) + residual add + relu
    p2, _, _ = extract_patches(out1, 3, 1, 1, planes)
    out2 = fused_conv_matmul(p2, p["w2"], p["b2"], res=sc, apply_relu=True)
    return out2.reshape(N, Ho, Wo, COUT_PAD)


def resnet_forward(x_nchw, params, num_classes):
    """Equivalent of ResNet.forward(x, returnt='out'). NCHW in, (N, num_classes) out."""
    x = jnp.transpose(x_nchw, (0, 2, 3, 1)).astype(jnp.bfloat16)      # NHWC bf16
    N, H, W, cimg = x.shape
    cin0 = _round8(cimg)
    if cin0 > cimg:                                   # round image channels to 8
        x = jnp.pad(x, ((0, 0), (0, 0), (0, 0), (0, cin0 - cimg)))

    # conv1 + bn1 + relu (output channels padded to 128, padded cols exact zero)
    p0, Ho, Wo = extract_patches(x, 3, 1, 1, cin0)
    out = fused_conv_matmul(p0, params["conv1_w"], params["conv1_b"],
                            apply_relu=True).reshape(N, Ho, Wo, COUT_PAD)

    # residual stages
    for name in ("layer1", "layer2", "layer3", "layer4"):
        for bp, stride in params[name]:
            out = basic_block_forward(out, bp, stride)

    # fused global average pooling + final Linear (padded channels are exact zeros,
    # padded class columns sliced off below)
    N2, H2, W2, C2 = out.shape
    logits_p = pool_linear(out.reshape(N2, H2 * W2, C2),
                           params["linear_w"], params["linear_b"])
    return logits_p[:, :num_classes]


# ---------------------------------------------------------------------------
# main
# ---------------------------------------------------------------------------
if __name__ == "__main__":
    key = jax.random.PRNGKey(0)
    k_params, k_input = jax.random.split(key)

    nf = 8
    num_classes = 10
    num_blocks = (1, 1, 1, 1)     # small BasicBlock ResNet
    bias = True

    params = init_resnet_params(k_params, nf, num_classes, num_blocks, bias)

    # input like PyTorch: NCHW
    x = jax.random.normal(k_input, (2, 3, 16, 16), jnp.float32)

    forward = jax.jit(functools.partial(resnet_forward, params=params,
                                        num_classes=num_classes))
    logits = jax.block_until_ready(forward(x))

    assert logits.shape == (2, num_classes)
    assert bool(jnp.all(jnp.isfinite(logits)))
    print("KERNEL_OK")
</pallas_src>

<mosaic_0001>
module attributes {stable_mosaic.version = 11 : i64} {
  func.func @_conv_matmul_kernel(%arg0: i32, %arg1: memref<256x72xbf16, #tpu.memory_space<vmem>>, %arg2: memref<72x128xbf16, #tpu.memory_space<vmem>>, %arg3: memref<1x128xf32, #tpu.memory_space<vmem>>, %arg4: memref<256x128xbf16, #tpu.memory_space<vmem>>) attributes {dimension_semantics = [#tpu.dimension_semantics<parallel>], iteration_bounds = array<i64: 2>, scalar_prefetch = 0 : i64, scratch_operands = 0 : i64, tpu.core_type = #tpu.core_type<tc>, window_params = [{transform_indices = @transform_0, window_bounds = array<i64: 256, 72>}, {pipeline_mode = #tpu.pipeline_mode<synchronous>, transform_indices = @transform_1, window_bounds = array<i64: 72, 128>}, {pipeline_mode = #tpu.pipeline_mode<synchronous>, transform_indices = @transform_2, window_bounds = array<i64: 1, 128>}, {transform_indices = @transform_3, window_bounds = array<i64: 256, 128>}]} {
    %c0 = arith.constant 0 : index
    %c0_0 = arith.constant 0 : index
    %0 = vector.load %arg1[%c0, %c0_0] : memref<256x72xbf16, #tpu.memory_space<vmem>>, vector<256x72xbf16>
    %c0_1 = arith.constant 0 : index
    %c0_2 = arith.constant 0 : index
    %1 = vector.load %arg2[%c0_1, %c0_2] : memref<72x128xbf16, #tpu.memory_space<vmem>>, vector<72x128xbf16>
    %cst = arith.constant dense<0.000000e+00> : vector<256x128xf32>
    %2 = tpu.matmul %0, %1, %cst {dimension_numbers = #tpu.dot_dimension_numbers<[1], [0], [0], [1], [0, 0, 1, 1], [], []>} : vector<256x72xbf16>, vector<72x128xbf16>, vector<256x128xf32> -> vector<256x128xf32>
    %c0_3 = arith.constant 0 : index
    %c0_4 = arith.constant 0 : index
    %3 = vector.load %arg3[%c0_3, %c0_4] : memref<1x128xf32, #tpu.memory_space<vmem>>, vector<1x128xf32>
    %4 = vector.broadcast %3 : vector<1x128xf32> to vector<256x128xf32>
    %5 = arith.addf %2, %4 : vector<256x128xf32>
    %cst_5 = arith.constant 0.000000e+00 : f32
    %6 = vector.broadcast %cst_5 : f32 to vector<256x128xf32>
    %7 = arith.maximumf %5, %6 : vector<256x128xf32>
    %8 = arith.truncf %7 : vector<256x128xf32> to vector<256x128xbf16>
    %c0_6 = arith.constant 0 : index
    %c0_7 = arith.constant 0 : index
    %9 = vector.load %arg4[%c0_6, %c0_7] : memref<256x128xbf16, #tpu.memory_space<vmem>>, vector<256x128xbf16>
    tpu.vector_store %arg4[%c0_6, %c0_7], %8 {strides = array<i32>} : memref<256x128xbf16, #tpu.memory_space<vmem>>, vector<256x128xbf16>,
    return
  }
  func.func @transform_0(%arg0: i32) -> (i32, i32) {
    %c0_i32 = arith.constant 0 : i32
    %c0_i32_0 = arith.constant 0 : i32
    return %arg0, %c0_i32 : i32, i32
  }
  func.func @transform_1(%arg0: i32) -> (i32, i32) {
    %c0_i32 = arith.constant 0 : i32
    %c0_i32_0 = arith.constant 0 : i32
    %c0_i32_1 = arith.constant 0 : i32
    return %c0_i32, %c0_i32_0 : i32, i32
  }
  func.func @transform_2(%arg0: i32) -> (i32, i32) {
    %c0_i32 = arith.constant 0 : i32
    %c0_i32_0 = arith.constant 0 : i32
    %c0_i32_1 = arith.constant 0 : i32
    return %c0_i32, %c0_i32_0 : i32, i32
  }
  func.func @transform_3(%arg0: i32) -> (i32, i32) {
    %c0_i32 = arith.constant 0 : i32
    %c0_i32_0 = arith.constant 0 : i32
    return %arg0, %c0_i32 : i32, i32
  }
}

module attributes {stable_mosaic.version = 11 : i64} {
  func.func @_conv_matmul_kernel(%arg0: i32, %arg1: memref<256x72xbf16, #tpu.memory_space<vmem>>, %arg2: memref<72x128xbf16, #tpu.memory_space<vmem>>, %arg3: memref<1x128xf32, #tpu.memory_space<vmem>>, %arg4: memref<256x128xbf16, #tpu.memory_space<vmem>>, %arg5: memref<256x128xbf16, #tpu.memory_space<vmem>>) attributes {dimension_semantics = [#tpu.dimension_semantics<parallel>], iteration_bounds = array<i64: 2>, scalar_prefetch = 0 : i64, scratch_operands = 0 : i64, tpu.core_type = #tpu.core_type<tc>, window_params = [{transform_indices = @transform_0, window_bounds = array<i64: 256, 72>}, {pipeline_mode = #tpu.pipeline_mode<synchronous>, transform_indices = @transform_1, window_bounds = array<i64: 72, 128>}, {pipeline_mode = #tpu.pipeline_mode<synchronous>, transform_indices = @transform_2, window_bounds = array<i64: 1, 128>}, {transform_indices = @transform_3, window_bounds = array<i64: 256, 128>}, {transform_indices = @transform_4, window_bounds = array<i64: 256, 128>}]} {
    %c0 = arith.constant 0 : index
    %c0_0 = arith.constant 0 : index
    %0 = vector.load %arg1[%c0, %c0_0] : memref<256x72xbf16, #tpu.memory_space<vmem>>, vector<256x72xbf16>
    %c0_1 = arith.constant 0 : index
    %c0_2 = arith.constant 0 : index
    %1 = vector.load %arg2[%c0_1, %c0_2] : memref<72x128xbf16, #tpu.memory_space<vmem>>, vector<72x128xbf16>
    %cst = arith.constant dense<0.000000e+00> : vector<256x128xf32>
    %2 = tpu.matmul %0, %1, %cst {dimension_numbers = #tpu.dot_dimension_numbers<[1], [0], [0], [1], [0, 0, 1, 1], [], []>} : vector<256x72xbf16>, vector<72x128xbf16>, vector<256x128xf32> -> vector<256x128xf32>
    %c0_3 = arith.constant 0 : index
    %c0_4 = arith.constant 0 : index
    %3 = vector.load %arg3[%c0_3, %c0_4] : memref<1x128xf32, #tpu.memory_space<vmem>>, vector<1x128xf32>
    %4 = vector.broadcast %3 : vector<1x128xf32> to vector<256x128xf32>
    %5 = arith.addf %2, %4 : vector<256x128xf32>
    %c0_5 = arith.constant 0 : index
    %c0_6 = arith.constant 0 : index
    %6 = vector.load %arg4[%c0_5, %c0_6] : memref<256x128xbf16, #tpu.memory_space<vmem>>, vector<256x128xbf16>
    %7 = arith.extf %6 : vector<256x128xbf16> to vector<256x128xf32>
    %8 = arith.addf %5, %7 : vector<256x128xf32>
    %cst_7 = arith.constant 0.000000e+00 : f32
    %9 = vector.broadcast %cst_7 : f32 to vector<256x128xf32>
    %10 = arith.maximumf %8, %9 : vector<256x128xf32>
    %11 = arith.truncf %10 : vector<256x128xf32> to vector<256x128xbf16>
    %c0_8 = arith.constant 0 : index
    %c0_9 = arith.constant 0 : index
    %12 = vector.load %arg5[%c0_8, %c0_9] : memref<256x128xbf16, #tpu.memory_space<vmem>>, vector<256x128xbf16>
    tpu.vector_store %arg5[%c0_8, %c0_9], %11 {strides = array<i32>} : memref<256x128xbf16, #tpu.memory_space<vmem>>, vector<256x128xbf16>,
    return
  }
  func.func @transform_0(%arg0: i32) -> (i32, i32) {
    %c0_i32 = arith.constant 0 : i32
    %c0_i32_0 = arith.constant 0 : i32
    return %arg0, %c0_i32 : i32, i32
  }
  func.func @transform_1(%arg0: i32) -> (i32, i32) {
    %c0_i32 = arith.constant 0 : i32
    %c0_i32_0 = arith.constant 0 : i32
    %c0_i32_1 = arith.constant 0 : i32
    return %c0_i32, %c0_i32_0 : i32, i32
  }
  func.func @transform_2(%arg0: i32) -> (i32, i32) {
    %c0_i32 = arith.constant 0 : i32
    %c0_i32_0 = arith.constant 0 : i32
    %c0_i32_1 = arith.constant 0 : i32
    return %c0_i32, %c0_i32_0 : i32, i32
  }
  func.func @transform_3(%arg0: i32) -> (i32, i32) {
    %c0_i32 = arith.constant 0 : i32
    %c0_i32_0 = arith.constant 0 : i32
    return %arg0, %c0_i32 : i32, i32
  }
  func.func @transform_4(%arg0: i32) -> (i32, i32) {
    %c0_i32 = arith.constant 0 : i32
    %c0_i32_0 = arith.constant 0 : i32
    return %arg0, %c0_i32 : i32, i32
  }
}

module attributes {stable_mosaic.version = 11 : i64} {
  func.func @_conv_matmul_kernel(%arg0: i32, %arg1: memref<64x8xbf16, #tpu.memory_space<vmem>>, %arg2: memref<8x128xbf16, #tpu.memory_space<vmem>>, %arg3: memref<1x128xf32, #tpu.memory_space<vmem>>, %arg4: memref<64x128xbf16, #tpu.memory_space<vmem>>) attributes {dimension_semantics = [#tpu.dimension_semantics<parallel>], iteration_bounds = array<i64: 2>, scalar_prefetch = 0 : i64, scratch_operands = 0 : i64, tpu.core_type = #tpu.core_type<tc>, window_params = [{transform_indices = @transform_0, window_bounds = array<i64: 64, 8>}, {pipeline_mode = #tpu.pipeline_mode<synchronous>, transform_indices = @transform_1, window_bounds = array<i64: 8, 128>}, {pipeline_mode = #tpu.pipeline_mode<synchronous>, transform_indices = @transform_2, window_bounds = array<i64: 1, 128>}, {transform_indices = @transform_3, window_bounds = array<i64: 64, 128>}]} {
    %c0 = arith.constant 0 : index
    %c0_0 = arith.constant 0 : index
    %0 = vector.load %arg1[%c0, %c0_0] : memref<64x8xbf16, #tpu.memory_space<vmem>>, vector<64x8xbf16>
    %c0_1 = arith.constant 0 : index
    %c0_2 = arith.constant 0 : index
    %1 = vector.load %arg2[%c0_1, %c0_2] : memref<8x128xbf16, #tpu.memory_space<vmem>>, vector<8x128xbf16>
    %cst = arith.constant dense<0.000000e+00> : vector<64x128xf32>
    %2 = tpu.matmul %0, %1, %cst {dimension_numbers = #tpu.dot_dimension_numbers<[1], [0], [0], [1], [0, 0, 1, 1], [], []>} : vector<64x8xbf16>, vector<8x128xbf16>, vector<64x128xf32> -> vector<64x128xf32>
    %c0_3 = arith.constant 0 : index
    %c0_4 = arith.constant 0 : index
    %3 = vector.load %arg3[%c0_3, %c0_4] : memref<1x128xf32, #tpu.memory_space<vmem>>, vector<1x128xf32>
    %4 = vector.broadcast %3 : vector<1x128xf32> to vector<64x128xf32>
    %5 = arith.addf %2, %4 : vector<64x128xf32>
    %6 = arith.truncf %5 : vector<64x128xf32> to vector<64x128xbf16>
    %c0_5 = arith.constant 0 : index
    %c0_6 = arith.constant 0 : index
    %7 = vector.load %arg4[%c0_5, %c0_6] : memref<64x128xbf16, #tpu.memory_space<vmem>>, vector<64x128xbf16>
    tpu.vector_store %arg4[%c0_5, %c0_6], %6 {strides = array<i32>} : memref<64x128xbf16, #tpu.memory_space<vmem>>, vector<64x128xbf16>,
    return
  }
  func.func @transform_0(%arg0: i32) -> (i32, i32) {
    %c0_i32 = arith.constant 0 : i32
    %c0_i32_0 = arith.constant 0 : i32
    return %arg0, %c0_i32 : i32, i32
  }
  func.func @transform_1(%arg0: i32) -> (i32, i32) {
    %c0_i32 = arith.constant 0 : i32
    %c0_i32_0 = arith.constant 0 : i32
    %c0_i32_1 = arith.constant 0 : i32
    return %c0_i32, %c0_i32_0 : i32, i32
  }
  func.func @transform_2(%arg0: i32) -> (i32, i32) {
    %c0_i32 = arith.constant 0 : i32
    %c0_i32_0 = arith.constant 0 : i32
    %c0_i32_1 = arith.constant 0 : i32
    return %c0_i32, %c0_i32_0 : i32, i32
  }
  func.func @transform_3(%arg0: i32) -> (i32, i32) {
    %c0_i32 = arith.constant 0 : i32
    %c0_i32_0 = arith.constant 0 : i32
    return %arg0, %c0_i32 : i32, i32
  }
}

module attributes {stable_mosaic.version = 11 : i64} {
  func.func @_conv_matmul_kernel(%arg0: i32, %arg1: memref<64x72xbf16, #tpu.memory_space<vmem>>, %arg2: memref<72x128xbf16, #tpu.memory_space<vmem>>, %arg3: memref<1x128xf32, #tpu.memory_space<vmem>>, %arg4: memref<64x128xbf16, #tpu.memory_space<vmem>>) attributes {dimension_semantics = [#tpu.dimension_semantics<parallel>], iteration_bounds = array<i64: 2>, scalar_prefetch = 0 : i64, scratch_operands = 0 : i64, tpu.core_type = #tpu.core_type<tc>, window_params = [{transform_indices = @transform_0, window_bounds = array<i64: 64, 72>}, {pipeline_mode = #tpu.pipeline_mode<synchronous>, transform_indices = @transform_1, window_bounds = array<i64: 72, 128>}, {pipeline_mode = #tpu.pipeline_mode<synchronous>, transform_indices = @transform_2, window_bounds = array<i64: 1, 128>}, {transform_indices = @transform_3, window_bounds = array<i64: 64, 128>}]} {
    %c0 = arith.constant 0 : index
    %c0_0 = arith.constant 0 : index
    %0 = vector.load %arg1[%c0, %c0_0] : memref<64x72xbf16, #tpu.memory_space<vmem>>, vector<64x72xbf16>
    %c0_1 = arith.constant 0 : index
    %c0_2 = arith.constant 0 : index
    %1 = vector.load %arg2[%c0_1, %c0_2] : memref<72x128xbf16, #tpu.memory_space<vmem>>, vector<72x128xbf16>
    %cst = arith.constant dense<0.000000e+00> : vector<64x128xf32>
    %2 = tpu.matmul %0, %1, %cst {dimension_numbers = #tpu.dot_dimension_numbers<[1], [0], [0], [1], [0, 0, 1, 1], [], []>} : vector<64x72xbf16>, vector<72x128xbf16>, vector<64x128xf32> -> vector<64x128xf32>
    %c0_3 = arith.constant 0 : index
    %c0_4 = arith.constant 0 : index
    %3 = vector.load %arg3[%c0_3, %c0_4] : memref<1x128xf32, #tpu.memory_space<vmem>>, vector<1x128xf32>
    %4 = vector.broadcast %3 : vector<1x128xf32> to vector<64x128xf32>
    %5 = arith.addf %2, %4 : vector<64x128xf32>
    %cst_5 = arith.constant 0.000000e+00 : f32
    %6 = vector.broadcast %cst_5 : f32 to vector<64x128xf32>
    %7 = arith.maximumf %5, %6 : vector<64x128xf32>
    %8 = arith.truncf %7 : vector<64x128xf32> to vector<64x128xbf16>
    %c0_6 = arith.constant 0 : index
    %c0_7 = arith.constant 0 : index
    %9 = vector.load %arg4[%c0_6, %c0_7] : memref<64x128xbf16, #tpu.memory_space<vmem>>, vector<64x128xbf16>
    tpu.vector_store %arg4[%c0_6, %c0_7], %8 {strides = array<i32>} : memref<64x128xbf16, #tpu.memory_space<vmem>>, vector<64x128xbf16>,
    return
  }
  func.func @transform_0(%arg0: i32) -> (i32, i32) {
    %c0_i32 = arith.constant 0 : i32
    %c0_i32_0 = arith.constant 0 : i32
    return %arg0, %c0_i32 : i32, i32
  }
  func.func @transform_1(%arg0: i32) -> (i32, i32) {
    %c0_i32 = arith.constant 0 : i32
    %c0_i32_0 = arith.constant 0 : i32
    %c0_i32_1 = arith.constant 0 : i32
    return %c0_i32, %c0_i32_0 : i32, i32
  }
  func.func @transform_2(%arg0: i32) -> (i32, i32) {
    %c0_i32 = arith.constant 0 : i32
    %c0_i32_0 = arith.constant 0 : i32
    %c0_i32_1 = arith.constant 0 : i32
    return %c0_i32, %c0_i32_0 : i32, i32
  }
  func.func @transform_3(%arg0: i32) -> (i32, i32) {
    %c0_i32 = arith.constant 0 : i32
    %c0_i32_0 = arith.constant 0 : i32
    return %arg0, %c0_i32 : i32, i32
  }
}

module attributes {stable_mosaic.version = 11 : i64} {
  func.func @_conv_matmul_kernel(%arg0: i32, %arg1: memref<64x144xbf16, #tpu.memory_space<vmem>>, %arg2: memref<144x128xbf16, #tpu.memory_space<vmem>>, %arg3: memref<1x128xf32, #tpu.memory_space<vmem>>, %arg4: memref<64x128xbf16, #tpu.memory_space<vmem>>, %arg5: memref<64x128xbf16, #tpu.memory_space<vmem>>) attributes {dimension_semantics = [#tpu.dimension_semantics<parallel>], iteration_bounds = array<i64: 2>, scalar_prefetch = 0 : i64, scratch_operands = 0 : i64, tpu.core_type = #tpu.core_type<tc>, window_params = [{transform_indices = @transform_0, window_bounds = array<i64: 64, 144>}, {pipeline_mode = #tpu.pipeline_mode<synchronous>, transform_indices = @transform_1, window_bounds = array<i64: 144, 128>}, {pipeline_mode = #tpu.pipeline_mode<synchronous>, transform_indices = @transform_2, window_bounds = array<i64: 1, 128>}, {transform_indices = @transform_3, window_bounds = array<i64: 64, 128>}, {transform_indices = @transform_4, window_bounds = array<i64: 64, 128>}]} {
    %c0 = arith.constant 0 : index
    %c0_0 = arith.constant 0 : index
    %0 = vector.load %arg1[%c0, %c0_0] : memref<64x144xbf16, #tpu.memory_space<vmem>>, vector<64x144xbf16>
    %c0_1 = arith.constant 0 : index
    %c0_2 = arith.constant 0 : index
    %1 = vector.load %arg2[%c0_1, %c0_2] : memref<144x128xbf16, #tpu.memory_space<vmem>>, vector<144x128xbf16>
    %cst = arith.constant dense<0.000000e+00> : vector<64x128xf32>
    %2 = tpu.matmul %0, %1, %cst {dimension_numbers = #tpu.dot_dimension_numbers<[1], [0], [0], [1], [0, 0, 1, 1], [], []>} : vector<64x144xbf16>, vector<144x128xbf16>, vector<64x128xf32> -> vector<64x128xf32>
    %c0_3 = arith.constant 0 : index
    %c0_4 = arith.constant 0 : index
    %3 = vector.load %arg3[%c0_3, %c0_4] : memref<1x128xf32, #tpu.memory_space<vmem>>, vector<1x128xf32>
    %4 = vector.broadcast %3 : vector<1x128xf32> to vector<64x128xf32>
    %5 = arith.addf %2, %4 : vector<64x128xf32>
    %c0_5 = arith.constant 0 : index
    %c0_6 = arith.constant 0 : index
    %6 = vector.load %arg4[%c0_5, %c0_6] : memref<64x128xbf16, #tpu.memory_space<vmem>>, vector<64x128xbf16>
    %7 = arith.extf %6 : vector<64x128xbf16> to vector<64x128xf32>
    %8 = arith.addf %5, %7 : vector<64x128xf32>
    %cst_7 = arith.constant 0.000000e+00 : f32
    %9 = vector.broadcast %cst_7 : f32 to vector<64x128xf32>
    %10 = arith.maximumf %8, %9 : vector<64x128xf32>
    %11 = arith.truncf %10 : vector<64x128xf32> to vector<64x128xbf16>
    %c0_8 = arith.constant 0 : index
    %c0_9 = arith.constant 0 : index
    %12 = vector.load %arg5[%c0_8, %c0_9] : memref<64x128xbf16, #tpu.memory_space<vmem>>, vector<64x128xbf16>
    tpu.vector_store %arg5[%c0_8, %c0_9], %11 {strides = array<i32>} : memref<64x128xbf16, #tpu.memory_space<vmem>>, vector<64x128xbf16>,
    return
  }
  func.func @transform_0(%arg0: i32) -> (i32, i32) {
    %c0_i32 = arith.constant 0 : i32
    %c0_i32_0 = arith.constant 0 : i32
    return %arg0, %c0_i32 : i32, i32
  }
  func.func @transform_1(%arg0: i32) -> (i32, i32) {
    %c0_i32 = arith.constant 0 : i32
    %c0_i32_0 = arith.constant 0 : i32
    %c0_i32_1 = arith.constant 0 : i32
    return %c0_i32, %c0_i32_0 : i32, i32
  }
  func.func @transform_2(%arg0: i32) -> (i32, i32) {
    %c0_i32 = arith.constant 0 : i32
    %c0_i32_0 = arith.constant 0 : i32
    %c0_i32_1 = arith.constant 0 : i32
    return %c0_i32, %c0_i32_0 : i32, i32
  }
  func.func @transform_3(%arg0: i32) -> (i32, i32) {
    %c0_i32 = arith.constant 0 : i32
    %c0_i32_0 = arith.constant 0 : i32
    return %arg0, %c0_i32 : i32, i32
  }
  func.func @transform_4(%arg0: i32) -> (i32, i32) {
    %c0_i32 = arith.constant 0 : i32
    %c0_i32_0 = arith.constant 0 : i32
    return %arg0, %c0_i32 : i32, i32
  }
}

module attributes {stable_mosaic.version = 11 : i64} {
  func.func @_conv_matmul_kernel(%arg0: i32, %arg1: memref<16x16xbf16, #tpu.memory_space<vmem>>, %arg2: memref<16x128xbf16, #tpu.memory_space<vmem>>, %arg3: memref<1x128xf32, #tpu.memory_space<vmem>>, %arg4: memref<16x128xbf16, #tpu.memory_space<vmem>>) attributes {dimension_semantics = [#tpu.dimension_semantics<parallel>], iteration_bounds = array<i64: 2>, scalar_prefetch = 0 : i64, scratch_operands = 0 : i64, tpu.core_type = #tpu.core_type<tc>, window_params = [{transform_indices = @transform_0, window_bounds = array<i64: 16, 16>}, {pipeline_mode = #tpu.pipeline_mode<synchronous>, transform_indices = @transform_1, window_bounds = array<i64: 16, 128>}, {pipeline_mode = #tpu.pipeline_mode<synchronous>, transform_indices = @transform_2, window_bounds = array<i64: 1, 128>}, {transform_indices = @transform_3, window_bounds = array<i64: 16, 128>}]} {
    %c0 = arith.constant 0 : index
    %c0_0 = arith.constant 0 : index
    %0 = vector.load %arg1[%c0, %c0_0] : memref<16x16xbf16, #tpu.memory_space<vmem>>, vector<16x16xbf16>
    %c0_1 = arith.constant 0 : index
    %c0_2 = arith.constant 0 : index
    %1 = vector.load %arg2[%c0_1, %c0_2] : memref<16x128xbf16, #tpu.memory_space<vmem>>, vector<16x128xbf16>
    %cst = arith.constant dense<0.000000e+00> : vector<16x128xf32>
    %2 = tpu.matmul %0, %1, %cst {dimension_numbers = #tpu.dot_dimension_numbers<[1], [0], [0], [1], [0, 0, 1, 1], [], []>} : vector<16x16xbf16>, vector<16x128xbf16>, vector<16x128xf32> -> vector<16x128xf32>
    %c0_3 = arith.constant 0 : index
    %c0_4 = arith.constant 0 : index
    %3 = vector.load %arg3[%c0_3, %c0_4] : memref<1x128xf32, #tpu.memory_space<vmem>>, vector<1x128xf32>
    %4 = vector.broadcast %3 : vector<1x128xf32> to vector<16x128xf32>
    %5 = arith.addf %2, %4 : vector<16x128xf32>
    %6 = arith.truncf %5 : vector<16x128xf32> to vector<16x128xbf16>
    %c0_5 = arith.constant 0 : index
    %c0_6 = arith.constant 0 : index
    %7 = vector.load %arg4[%c0_5, %c0_6] : memref<16x128xbf16, #tpu.memory_space<vmem>>, vector<16x128xbf16>
    tpu.vector_store %arg4[%c0_5, %c0_6], %6 {strides = array<i32>} : memref<16x128xbf16, #tpu.memory_space<vmem>>, vector<16x128xbf16>,
    return
  }
  func.func @transform_0(%arg0: i32) -> (i32, i32) {
    %c0_i32 = arith.constant 0 : i32
    %c0_i32_0 = arith.constant 0 : i32
    return %arg0, %c0_i32 : i32, i32
  }
  func.func @transform_1(%arg0: i32) -> (i32, i32) {
    %c0_i32 = arith.constant 0 : i32
    %c0_i32_0 = arith.constant 0 : i32
    %c0_i32_1 = arith.constant 0 : i32
    return %c0_i32, %c0_i32_0 : i32, i32
  }
  func.func @transform_2(%arg0: i32) -> (i32, i32) {
    %c0_i32 = arith.constant 0 : i32
    %c0_i32_0 = arith.constant 0 : i32
    %c0_i32_1 = arith.constant 0 : i32
    return %c0_i32, %c0_i32_0 : i32, i32
  }
  func.func @transform_3(%arg0: i32) -> (i32, i32) {
    %c0_i32 = arith.constant 0 : i32
    %c0_i32_0 = arith.constant 0 : i32
    return %arg0, %c0_i32 : i32, i32
  }
}

module attributes {stable_mosaic.version = 11 : i64} {
  func.func @_conv_matmul_kernel(%arg0: i32, %arg1: memref<16x144xbf16, #tpu.memory_space<vmem>>, %arg2: memref<144x128xbf16, #tpu.memory_space<vmem>>, %arg3: memref<1x128xf32, #tpu.memory_space<vmem>>, %arg4: memref<16x128xbf16, #tpu.memory_space<vmem>>) attributes {dimension_semantics = [#tpu.dimension_semantics<parallel>], iteration_bounds = array<i64: 2>, scalar_prefetch = 0 : i64, scratch_operands = 0 : i64, tpu.core_type = #tpu.core_type<tc>, window_params = [{transform_indices = @transform_0, window_bounds = array<i64: 16, 144>}, {pipeline_mode = #tpu.pipeline_mode<synchronous>, transform_indices = @transform_1, window_bounds = array<i64: 144, 128>}, {pipeline_mode = #tpu.pipeline_mode<synchronous>, transform_indices = @transform_2, window_bounds = array<i64: 1, 128>}, {transform_indices = @transform_3, window_bounds = array<i64: 16, 128>}]} {
    %c0 = arith.constant 0 : index
    %c0_0 = arith.constant 0 : index
    %0 = vector.load %arg1[%c0, %c0_0] : memref<16x144xbf16, #tpu.memory_space<vmem>>, vector<16x144xbf16>
    %c0_1 = arith.constant 0 : index
    %c0_2 = arith.constant 0 : index
    %1 = vector.load %arg2[%c0_1, %c0_2] : memref<144x128xbf16, #tpu.memory_space<vmem>>, vector<144x128xbf16>
    %cst = arith.constant dense<0.000000e+00> : vector<16x128xf32>
    %2 = tpu.matmul %0, %1, %cst {dimension_numbers = #tpu.dot_dimension_numbers<[1], [0], [0], [1], [0, 0, 1, 1], [], []>} : vector<16x144xbf16>, vector<144x128xbf16>, vector<16x128xf32> -> vector<16x128xf32>
    %c0_3 = arith.constant 0 : index
    %c0_4 = arith.constant 0 : index
    %3 = vector.load %arg3[%c0_3, %c0_4] : memref<1x128xf32, #tpu.memory_space<vmem>>, vector<1x128xf32>
    %4 = vector.broadcast %3 : vector<1x128xf32> to vector<16x128xf32>
    %5 = arith.addf %2, %4 : vector<16x128xf32>
    %cst_5 = arith.constant 0.000000e+00 : f32
    %6 = vector.broadcast %cst_5 : f32 to vector<16x128xf32>
    %7 = arith.maximumf %5, %6 : vector<16x128xf32>
    %8 = arith.truncf %7 : vector<16x128xf32> to vector<16x128xbf16>
    %c0_6 = arith.constant 0 : index
    %c0_7 = arith.constant 0 : index
    %9 = vector.load %arg4[%c0_6, %c0_7] : memref<16x128xbf16, #tpu.memory_space<vmem>>, vector<16x128xbf16>
    tpu.vector_store %arg4[%c0_6, %c0_7], %8 {strides = array<i32>} : memref<16x128xbf16, #tpu.memory_space<vmem>>, vector<16x128xbf16>,
    return
  }
  func.func @transform_0(%arg0: i32) -> (i32, i32) {
    %c0_i32 = arith.constant 0 : i32
    %c0_i32_0 = arith.constant 0 : i32
    return %arg0, %c0_i32 : i32, i32
  }
  func.func @transform_1(%arg0: i32) -> (i32, i32) {
    %c0_i32 = arith.constant 0 : i32
    %c0_i32_0 = arith.constant 0 : i32
    %c0_i32_1 = arith.constant 0 : i32
    return %c0_i32, %c0_i32_0 : i32, i32
  }
  func.func @transform_2(%arg0: i32) -> (i32, i32) {
    %c0_i32 = arith.constant 0 : i32
    %c0_i32_0 = arith.constant 0 : i32
    %c0_i32_1 = arith.constant 0 : i32
    return %c0_i32, %c0_i32_0 : i32, i32
  }
  func.func @transform_3(%arg0: i32) -> (i32, i32) {
    %c0_i32 = arith.constant 0 : i32
    %c0_i32_0 = arith.constant 0 : i32
    return %arg0, %c0_i32 : i32, i32
  }
}

module attributes {stable_mosaic.version = 11 : i64} {
  func.func @_conv_matmul_kernel(%arg0: i32, %arg1: memref<16x288xbf16, #tpu.memory_space<vmem>>, %arg2: memref<288x128xbf16, #tpu.memory_space<vmem>>, %arg3: memref<1x128xf32, #tpu.memory_space<vmem>>, %arg4: memref<16x128xbf16, #tpu.memory_space<vmem>>, %arg5: memref<16x128xbf16, #tpu.memory_space<vmem>>) attributes {dimension_semantics = [#tpu.dimension_semantics<parallel>], iteration_bounds = array<i64: 2>, scalar_prefetch = 0 : i64, scratch_operands = 0 : i64, tpu.core_type = #tpu.core_type<tc>, window_params = [{transform_indices = @transform_0, window_bounds = array<i64: 16, 288>}, {pipeline_mode = #tpu.pipeline_mode<synchronous>, transform_indices = @transform_1, window_bounds = array<i64: 288, 128>}, {pipeline_mode = #tpu.pipeline_mode<synchronous>, transform_indices = @transform_2, window_bounds = array<i64: 1, 128>}, {transform_indices = @transform_3, window_bounds = array<i64: 16, 128>}, {transform_indices = @transform_4, window_bounds = array<i64: 16, 128>}]} {
    %c0 = arith.constant 0 : index
    %c0_0 = arith.constant 0 : index
    %0 = vector.load %arg1[%c0, %c0_0] : memref<16x288xbf16, #tpu.memory_space<vmem>>, vector<16x288xbf16>
    %c0_1 = arith.constant 0 : index
    %c0_2 = arith.constant 0 : index
    %1 = vector.load %arg2[%c0_1, %c0_2] : memref<288x128xbf16, #tpu.memory_space<vmem>>, vector<288x128xbf16>
    %cst = arith.constant dense<0.000000e+00> : vector<16x128xf32>
    %2 = tpu.matmul %0, %1, %cst {dimension_numbers = #tpu.dot_dimension_numbers<[1], [0], [0], [1], [0, 0, 1, 1], [], []>} : vector<16x288xbf16>, vector<288x128xbf16>, vector<16x128xf32> -> vector<16x128xf32>
    %c0_3 = arith.constant 0 : index
    %c0_4 = arith.constant 0 : index
    %3 = vector.load %arg3[%c0_3, %c0_4] : memref<1x128xf32, #tpu.memory_space<vmem>>, vector<1x128xf32>
    %4 = vector.broadcast %3 : vector<1x128xf32> to vector<16x128xf32>
    %5 = arith.addf %2, %4 : vector<16x128xf32>
    %c0_5 = arith.constant 0 : index
    %c0_6 = arith.constant 0 : index
    %6 = vector.load %arg4[%c0_5, %c0_6] : memref<16x128xbf16, #tpu.memory_space<vmem>>, vector<16x128xbf16>
    %7 = arith.extf %6 : vector<16x128xbf16> to vector<16x128xf32>
    %8 = arith.addf %5, %7 : vector<16x128xf32>
    %cst_7 = arith.constant 0.000000e+00 : f32
    %9 = vector.broadcast %cst_7 : f32 to vector<16x128xf32>
    %10 = arith.maximumf %8, %9 : vector<16x128xf32>
    %11 = arith.truncf %10 : vector<16x128xf32> to vector<16x128xbf16>
    %c0_8 = arith.constant 0 : index
    %c0_9 = arith.constant 0 : index
    %12 = vector.load %arg5[%c0_8, %c0_9] : memref<16x128xbf16, #tpu.memory_space<vmem>>, vector<16x128xbf16>
    tpu.vector_store %arg5[%c0_8, %c0_9], %11 {strides = array<i32>} : memref<16x128xbf16, #tpu.memory_space<vmem>>, vector<16x128xbf16>,
    return
  }
  func.func @transform_0(%arg0: i32) -> (i32, i32) {
    %c0_i32 = arith.constant 0 : i32
    %c0_i32_0 = arith.constant 0 : i32
    return %arg0, %c0_i32 : i32, i32
  }
  func.func @transform_1(%arg0: i32) -> (i32, i32) {
    %c0_i32 = arith.constant 0 : i32
    %c0_i32_0 = arith.constant 0 : i32
    %c0_i32_1 = arith.constant 0 : i32
    return %c0_i32, %c0_i32_0 : i32, i32
  }
  func.func @transform_2(%arg0: i32) -> (i32, i32) {
    %c0_i32 = arith.constant 0 : i32
    %c0_i32_0 = arith.constant 0 : i32
    %c0_i32_1 = arith.constant 0 : i32
    return %c0_i32, %c0_i32_0 : i32, i32
  }
  func.func @transform_3(%arg0: i32) -> (i32, i32) {
    %c0_i32 = arith.constant 0 : i32
    %c0_i32_0 = arith.constant 0 : i32
    return %arg0, %c0_i32 : i32, i32
  }
  func.func @transform_4(%arg0: i32) -> (i32, i32) {
    %c0_i32 = arith.constant 0 : i32
    %c0_i32_0 = arith.constant 0 : i32
    return %arg0, %c0_i32 : i32, i32
  }
}

module attributes {stable_mosaic.version = 11 : i64} {
  func.func @_conv_matmul_kernel(%arg0: i32, %arg1: memref<8x32xbf16, #tpu.memory_space<vmem>>, %arg2: memref<32x128xbf16, #tpu.memory_space<vmem>>, %arg3: memref<1x128xf32, #tpu.memory_space<vmem>>, %arg4: memref<8x128xbf16, #tpu.memory_space<vmem>>) attributes {dimension_semantics = [#tpu.dimension_semantics<parallel>], iteration_bounds = array<i64: 1>, scalar_prefetch = 0 : i64, scratch_operands = 0 : i64, tpu.core_type = #tpu.core_type<tc>, window_params = [{transform_indices = @transform_0, window_bounds = array<i64: 8, 32>}, {pipeline_mode = #tpu.pipeline_mode<synchronous>, transform_indices = @transform_1, window_bounds = array<i64: 32, 128>}, {pipeline_mode = #tpu.pipeline_mode<synchronous>, transform_indices = @transform_2, window_bounds = array<i64: 1, 128>}, {transform_indices = @transform_3, window_bounds = array<i64: 8, 128>}]} {
    %c0 = arith.constant 0 : index
    %c0_0 = arith.constant 0 : index
    %0 = vector.load %arg1[%c0, %c0_0] : memref<8x32xbf16, #tpu.memory_space<vmem>>, vector<8x32xbf16>
    %c0_1 = arith.constant 0 : index
    %c0_2 = arith.constant 0 : index
    %1 = vector.load %arg2[%c0_1, %c0_2] : memref<32x128xbf16, #tpu.memory_space<vmem>>, vector<32x128xbf16>
    %cst = arith.constant dense<0.000000e+00> : vector<8x128xf32>
    %2 = tpu.matmul %0, %1, %cst {dimension_numbers = #tpu.dot_dimension_numbers<[1], [0], [0], [1], [0, 0, 1, 1], [], []>} : vector<8x32xbf16>, vector<32x128xbf16>, vector<8x128xf32> -> vector<8x128xf32>
    %c0_3 = arith.constant 0 : index
    %c0_4 = arith.constant 0 : index
    %3 = vector.load %arg3[%c0_3, %c0_4] : memref<1x128xf32, #tpu.memory_space<vmem>>, vector<1x128xf32>
    %4 = vector.broadcast %3 : vector<1x128xf32> to vector<8x128xf32>
    %5 = arith.addf %2, %4 : vector<8x128xf32>
    %6 = arith.truncf %5 : vector<8x128xf32> to vector<8x128xbf16>
    %c0_5 = arith.constant 0 : index
    %c0_6 = arith.constant 0 : index
    %7 = vector.load %arg4[%c0_5, %c0_6] : memref<8x128xbf16, #tpu.memory_space<vmem>>, vector<8x128xbf16>
    tpu.vector_store %arg4[%c0_5, %c0_6], %6 {strides = array<i32>} : memref<8x128xbf16, #tpu.memory_space<vmem>>, vector<8x128xbf16>,
    return
  }
  func.func @transform_0(%arg0: i32) -> (i32, i32) {
    %c0_i32 = arith.constant 0 : i32
    %c0_i32_0 = arith.constant 0 : i32
    return %arg0, %c0_i32 : i32, i32
  }
  func.func @transform_1(%arg0: i32) -> (i32, i32) {
    %c0_i32 = arith.constant 0 : i32
    %c0_i32_0 = arith.constant 0 : i32
    %c0_i32_1 = arith.constant 0 : i32
    return %c0_i32, %c0_i32_0 : i32, i32
  }
  func.func @transform_2(%arg0: i32) -> (i32, i32) {
    %c0_i32 = arith.constant 0 : i32
    %c0_i32_0 = arith.constant 0 : i32
    %c0_i32_1 = arith.constant 0 : i32
    return %c0_i32, %c0_i32_0 : i32, i32
  }
  func.func @transform_3(%arg0: i32) -> (i32, i32) {
    %c0_i32 = arith.constant 0 : i32
    %c0_i32_0 = arith.constant 0 : i32
    return %arg0, %c0_i32 : i32, i32
  }
}

module attributes {stable_mosaic.version = 11 : i64} {
  func.func @_conv_matmul_kernel(%arg0: i32, %arg1: memref<8x288xbf16, #tpu.memory_space<vmem>>, %arg2: memref<288x128xbf16, #tpu.memory_space<vmem>>, %arg3: memref<1x128xf32, #tpu.memory_space<vmem>>, %arg4: memref<8x128xbf16, #tpu.memory_space<vmem>>) attributes {dimension_semantics = [#tpu.dimension_semantics<parallel>], iteration_bounds = array<i64: 1>, scalar_prefetch = 0 : i64, scratch_operands = 0 : i64, tpu.core_type = #tpu.core_type<tc>, window_params = [{transform_indices = @transform_0, window_bounds = array<i64: 8, 288>}, {pipeline_mode = #tpu.pipeline_mode<synchronous>, transform_indices = @transform_1, window_bounds = array<i64: 288, 128>}, {pipeline_mode = #tpu.pipeline_mode<synchronous>, transform_indices = @transform_2, window_bounds = array<i64: 1, 128>}, {transform_indices = @transform_3, window_bounds = array<i64: 8, 128>}]} {
    %c0 = arith.constant 0 : index
    %c0_0 = arith.constant 0 : index
    %0 = vector.load %arg1[%c0, %c0_0] : memref<8x288xbf16, #tpu.memory_space<vmem>>, vector<8x288xbf16>
    %c0_1 = arith.constant 0 : index
    %c0_2 = arith.constant 0 : index
    %1 = vector.load %arg2[%c0_1, %c0_2] : memref<288x128xbf16, #tpu.memory_space<vmem>>, vector<288x128xbf16>
    %cst = arith.constant dense<0.000000e+00> : vector<8x128xf32>
    %2 = tpu.matmul %0, %1, %cst {dimension_numbers = #tpu.dot_dimension_numbers<[1], [0], [0], [1], [0, 0, 1, 1], [], []>} : vector<8x288xbf16>, vector<288x128xbf16>, vector<8x128xf32> -> vector<8x128xf32>
    %c0_3 = arith.constant 0 : index
    %c0_4 = arith.constant 0 : index
    %3 = vector.load %arg3[%c0_3, %c0_4] : memref<1x128xf32, #tpu.memory_space<vmem>>, vector<1x128xf32>
    %4 = vector.broadcast %3 : vector<1x128xf32> to vector<8x128xf32>
    %5 = arith.addf %2, %4 : vector<8x128xf32>
    %cst_5 = arith.constant 0.000000e+00 : f32
    %6 = vector.broadcast %cst_5 : f32 to vector<8x128xf32>
    %7 = arith.maximumf %5, %6 : vector<8x128xf32>
    %8 = arith.truncf %7 : vector<8x128xf32> to vector<8x128xbf16>
    %c0_6 = arith.constant 0 : index
    %c0_7 = arith.constant 0 : index
    %9 = vector.load %arg4[%c0_6, %c0_7] : memref<8x128xbf16, #tpu.memory_space<vmem>>, vector<8x128xbf16>
    tpu.vector_store %arg4[%c0_6, %c0_7], %8 {strides = array<i32>} : memref<8x128xbf16, #tpu.memory_space<vmem>>, vector<8x128xbf16>,
    return
  }
  func.func @transform_0(%arg0: i32) -> (i32, i32) {
    %c0_i32 = arith.constant 0 : i32
    %c0_i32_0 = arith.constant 0 : i32
    return %arg0, %c0_i32 : i32, i32
  }
  func.func @transform_1(%arg0: i32) -> (i32, i32) {
    %c0_i32 = arith.constant 0 : i32
    %c0_i32_0 = arith.constant 0 : i32
    %c0_i32_1 = arith.constant 0 : i32
    return %c0_i32, %c0_i32_0 : i32, i32
  }
  func.func @transform_2(%arg0: i32) -> (i32, i32) {
    %c0_i32 = arith.constant 0 : i32
    %c0_i32_0 = arith.constant 0 : i32
    %c0_i32_1 = arith.constant 0 : i32
    return %c0_i32, %c0_i32_0 : i32, i32
  }
  func.func @transform_3(%arg0: i32) -> (i32, i32) {
    %c0_i32 = arith.constant 0 : i32
    %c0_i32_0 = arith.constant 0 : i32
    return %arg0, %c0_i32 : i32, i32
  }
}

module attributes {stable_mosaic.version = 11 : i64} {
  func.func @_pool_linear_kernel(%arg0: i32, %arg1: memref<2x4x128xbf16, #tpu.memory_space<vmem>>, %arg2: memref<128x128xf32, #tpu.memory_space<vmem>>, %arg3: memref<1x128xf32, #tpu.memory_space<vmem>>, %arg4: memref<2x128xf32, #tpu.memory_space<vmem>>) attributes {dimension_semantics = [#tpu.dimension_semantics<arbitrary>], iteration_bounds = array<i64: 1>, scalar_prefetch = 0 : i64, scratch_operands = 0 : i64, tpu.core_type = #tpu.core_type<tc>, window_params = [{pipeline_mode = #tpu.pipeline_mode<synchronous>, transform_indices = @transform_0, window_bounds = array<i64: 2, 4, 128>}, {pipeline_mode = #tpu.pipeline_mode<synchronous>, transform_indices = @transform_1, window_bounds = array<i64: 128, 128>}, {pipeline_mode = #tpu.pipeline_mode<synchronous>, transform_indices = @transform_2, window_bounds = array<i64: 1, 128>}, {pipeline_mode = #tpu.pipeline_mode<synchronous>, transform_indices = @transform_3, window_bounds = array<i64: 2, 128>}]} {
    %c0 = arith.constant 0 : index
    %c0_0 = arith.constant 0 : index
    %c0_1 = arith.constant 0 : index
    %0 = vector.load %arg1[%c0, %c0_0, %c0_1] : memref<2x4x128xbf16, #tpu.memory_space<vmem>>, vector<2x4x128xbf16>
    %1 = arith.extf %0 : vector<2x4x128xbf16> to vector<2x4x128xf32>
    %cst = arith.constant dense<0.000000e+00> : vector<2x128xf32>
    %2 = vector.multi_reduction <add>, %1, %cst [1] : vector<2x4x128xf32> to vector<2x128xf32>
    %cst_2 = arith.constant 4.000000e+00 : f32
    %3 = vector.broadcast %cst_2 : f32 to vector<2x128xf32>
    %4 = arith.divf %2, %3 : vector<2x128xf32>
    %c0_3 = arith.constant 0 : index
    %c0_4 = arith.constant 0 : index
    %5 = vector.load %arg2[%c0_3, %c0_4] : memref<128x128xf32, #tpu.memory_space<vmem>>, vector<128x128xf32>
    %cst_5 = arith.constant dense<0.000000e+00> : vector<2x128xf32>
    %6 = tpu.matmul %4, %5, %cst_5 {dimension_numbers = #tpu.dot_dimension_numbers<[1], [0], [0], [1], [0, 0, 1, 1], [], []>} : vector<2x128xf32>, vector<128x128xf32>, vector<2x128xf32> -> vector<2x128xf32>
    %c0_6 = arith.constant 0 : index
    %c0_7 = arith.constant 0 : index
    %7 = vector.load %arg3[%c0_6, %c0_7] : memref<1x128xf32, #tpu.memory_space<vmem>>, vector<1x128xf32>
    %8 = vector.broadcast %7 : vector<1x128xf32> to vector<2x128xf32>
    %9 = arith.addf %6, %8 : vector<2x128xf32>
    %c0_8 = arith.constant 0 : index
    %c0_9 = arith.constant 0 : index
    %10 = vector.load %arg4[%c0_8, %c0_9] : memref<2x128xf32, #tpu.memory_space<vmem>>, vector<2x128xf32>
    tpu.vector_store %arg4[%c0_8, %c0_9], %9 {strides = array<i32>} : memref<2x128xf32, #tpu.memory_space<vmem>>, vector<2x128xf32>,
    return
  }
  func.func @transform_0(%arg0: i32) -> (i32, i32, i32) {
    %c0_i32 = arith.constant 0 : i32
    %c0_i32_0 = arith.constant 0 : i32
    %c0_i32_1 = arith.constant 0 : i32
    %c0_i32_2 = arith.constant 0 : i32
    return %c0_i32, %c0_i32_0, %c0_i32_1 : i32, i32, i32
  }
  func.func @transform_1(%arg0: i32) -> (i32, i32) {
    %c0_i32 = arith.constant 0 : i32
    %c0_i32_0 = arith.constant 0 : i32
    %c0_i32_1 = arith.constant 0 : i32
    return %c0_i32, %c0_i32_0 : i32, i32
  }
  func.func @transform_2(%arg0: i32) -> (i32, i32) {
    %c0_i32 = arith.constant 0 : i32
    %c0_i32_0 = arith.constant 0 : i32
    %c0_i32_1 = arith.constant 0 : i32
    return %c0_i32, %c0_i32_0 : i32, i32
  }
  func.func @transform_3(%arg0: i32) -> (i32, i32) {
    %c0_i32 = arith.constant 0 : i32
    %c0_i32_0 = arith.constant 0 : i32
    %c0_i32_1 = arith.constant 0 : i32
    return %c0_i32, %c0_i32_0 : i32, i32
  }
}

module attributes {stable_mosaic.version = 11 : i64} {
  func.func @_conv_matmul_kernel(%arg0: i32, %arg1: memref<8x576xbf16, #tpu.memory_space<vmem>>, %arg2: memref<576x128xbf16, #tpu.memory_space<vmem>>, %arg3: memref<1x128xf32, #tpu.memory_space<vmem>>, %arg4: memref<8x128xbf16, #tpu.memory_space<vmem>>, %arg5: memref<8x128xbf16, #tpu.memory_space<vmem>>) attributes {dimension_semantics = [#tpu.dimension_semantics<parallel>], iteration_bounds = array<i64: 1>, scalar_prefetch = 0 : i64, scratch_operands = 0 : i64, tpu.core_type = #tpu.core_type<tc>, window_params = [{transform_indices = @transform_0, window_bounds = array<i64: 8, 576>}, {pipeline_mode = #tpu.pipeline_mode<synchronous>, transform_indices = @transform_1, window_bounds = array<i64: 576, 128>}, {pipeline_mode = #tpu.pipeline_mode<synchronous>, transform_indices = @transform_2, window_bounds = array<i64: 1, 128>}, {transform_indices = @transform_3, window_bounds = array<i64: 8, 128>}, {transform_indices = @transform_4, window_bounds = array<i64: 8, 128>}]} {
    %c0 = arith.constant 0 : index
    %c0_0 = arith.constant 0 : index
    %0 = vector.load %arg1[%c0, %c0_0] : memref<8x576xbf16, #tpu.memory_space<vmem>>, vector<8x576xbf16>
    %c0_1 = arith.constant 0 : index
    %c0_2 = arith.constant 0 : index
    %1 = vector.load %arg2[%c0_1, %c0_2] : memref<576x128xbf16, #tpu.memory_space<vmem>>, vector<576x128xbf16>
    %cst = arith.constant dense<0.000000e+00> : vector<8x128xf32>
    %2 = tpu.matmul %0, %1, %cst {dimension_numbers = #tpu.dot_dimension_numbers<[1], [0], [0], [1], [0, 0, 1, 1], [], []>} : vector<8x576xbf16>, vector<576x128xbf16>, vector<8x128xf32> -> vector<8x128xf32>
    %c0_3 = arith.constant 0 : index
    %c0_4 = arith.constant 0 : index
    %3 = vector.load %arg3[%c0_3, %c0_4] : memref<1x128xf32, #tpu.memory_space<vmem>>, vector<1x128xf32>
    %4 = vector.broadcast %3 : vector<1x128xf32> to vector<8x128xf32>
    %5 = arith.addf %2, %4 : vector<8x128xf32>
    %c0_5 = arith.constant 0 : index
    %c0_6 = arith.constant 0 : index
    %6 = vector.load %arg4[%c0_5, %c0_6] : memref<8x128xbf16, #tpu.memory_space<vmem>>, vector<8x128xbf16>
    %7 = arith.extf %6 : vector<8x128xbf16> to vector<8x128xf32>
    %8 = arith.addf %5, %7 : vector<8x128xf32>
    %cst_7 = arith.constant 0.000000e+00 : f32
    %9 = vector.broadcast %cst_7 : f32 to vector<8x128xf32>
    %10 = arith.maximumf %8, %9 : vector<8x128xf32>
    %11 = arith.truncf %10 : vector<8x128xf32> to vector<8x128xbf16>
    %c0_8 = arith.constant 0 : index
    %c0_9 = arith.constant 0 : index
    %12 = vector.load %arg5[%c0_8, %c0_9] : memref<8x128xbf16, #tpu.memory_space<vmem>>, vector<8x128xbf16>
    tpu.vector_store %arg5[%c0_8, %c0_9], %11 {strides = array<i32>} : memref<8x128xbf16, #tpu.memory_space<vmem>>, vector<8x128xbf16>,
    return
  }
  func.func @transform_0(%arg0: i32) -> (i32, i32) {
    %c0_i32 = arith.constant 0 : i32
    %c0_i32_0 = arith.constant 0 : i32
    return %arg0, %c0_i32 : i32, i32
  }
  func.func @transform_1(%arg0: i32) -> (i32, i32) {
    %c0_i32 = arith.constant 0 : i32
    %c0_i32_0 = arith.constant 0 : i32
    %c0_i32_1 = arith.constant 0 : i32
    return %c0_i32, %c0_i32_0 : i32, i32
  }
  func.func @transform_2(%arg0: i32) -> (i32, i32) {
    %c0_i32 = arith.constant 0 : i32
    %c0_i32_0 = arith.constant 0 : i32
    %c0_i32_1 = arith.constant 0 : i32
    return %c0_i32, %c0_i32_0 : i32, i32
  }
  func.func @transform_3(%arg0: i32) -> (i32, i32) {
    %c0_i32 = arith.constant 0 : i32
    %c0_i32_0 = arith.constant 0 : i32
    return %arg0, %c0_i32 : i32, i32
  }
  func.func @transform_4(%arg0: i32) -> (i32, i32) {
    %c0_i32 = arith.constant 0 : i32
    %c0_i32_0 = arith.constant 0 : i32
    return %arg0, %c0_i32 : i32, i32
  }
}

</mosaic_0001>

<llo_original>
// kernel: resnet_forward.13
$region0: #{resnet_forward.13}
  #allocation0 [shape = 'u32[]', space=smem, size = 0x4, offset = 0x4, fixed_abs, tag = 'smem constant byte address 0x4 - core index']
  #allocation1 [shape = 'u32[72,128]{1,0:T(1,128)}', space=vmem, size = 0x9000, scoped, tag = 'internal scratch']
  %s0 = inlined_call_operand.vmem [shape: bf16[512,72], index: 0, kind: input, shape index: {}]
  %s1 = inlined_call_operand.vmem [shape: bf16[72,128], index: 1, kind: input, shape index: {}]
  %s2 = inlined_call_operand.vmem [shape: f32[1,128], index: 2, kind: input, shape index: {}]
  %s3 = inlined_call_operand.vmem [shape: bf16[512,128], index: 3, kind: output, shape index: {}]
  %s4 = sld [smem:[#allocation0]]
  $region45: #{resnet_forward.13} parent=0
    _
  %s6 = ssub.s32 1, %s4
  %s7 = scalar_select 0, %s6, %s4
  loop: start=0, step=1, limit=4
  $region2: #{resnet_forward.13} parent=0 // loop_pre_header
    _
  $region3: #{resnet_forward.13} parent=0 // loop_header
    %s9 = sphi 0, %s13
    %p10 = scmp.ge.s32.totalorder %s9, 4
    %s19 = sphi 0, %s21
    %s22 = sphi 0, %s19
    %s23 = sphi 0, %s22
    %s39 = sphi 0, %s23
    %s43 = sphi 0, %s43
    %s45 = sphi 0, %s43
    %s46 = sphi 0, %s45
    %s60 = sphi 0, %s46
    %s64 = sphi 0, %s64
    %s66 = sphi 0, %s64
    %s67 = sphi 0, %s66
    %s81 = sphi 0, %s67
    %s87 = sphi 0, %s89
    %s90 = sphi 0, %s87
    %s91 = sphi 0, %s90
    %s107 = sphi 0, %s91
  $region4: #{resnet_forward.13} parent=0 // loop_header_branch
    %12 = sbr.rel (%p10) target = $region8
  $region5: #{resnet_forward.13} parent=0 // loop_body
    %s14 = ssub.s32 %s9, 1
    %s15 = ssub.s32 %s9, 2
    %s16 = sadd.s32 %s9, 1
    %s17 = ssub.s32 %s9, %s16
    %p18 = scmp.eq.s32.totalorder %s17, 0
    %s20 = sadd.s32 %s19, 1
    %s21 = scalar_select %p18, %s19, %s20
    %p24 = pneg %p18
    %p25 = scmp.eq.s32.totalorder %s9, 1
    %p26 = por %p24, %p25
    %p27 = scmp.ne.s32.totalorder %s19, %s22
    %p28 = scmp.eq.s32.totalorder %s9, 0
    %p29 = por %p27, %p28
    %p30 = scmp.ne.s32.totalorder %s19, %s22
    %p31 = scmp.eq.s32.totalorder %s14, 1
    %p32 = por %p30, %p31
    %p33 = scmp.ne.s32.totalorder %s22, %s23
    %p34 = scmp.eq.s32.totalorder %s14, 0
    %p35 = por %p33, %p34
    %p36 = scmp.ne.s32.totalorder %s22, %s23
    %p37 = scmp.eq.s32.totalorder %s15, 1
    %p38 = por %p36, %p37
    %p40 = scmp.ne.s32.totalorder %s23, %s39
    %p41 = scmp.eq.s32.totalorder %s15, 0
    %p42 = por %p40, %p41
    %s44 = sadd.s32 %s43, 1
    %p47 = scmp.eq.s32.totalorder %s9, 1
    %p48 = scmp.ne.s32.totalorder %s43, %s45
    %p49 = scmp.eq.s32.totalorder %s9, 0
    %p50 = por %p48, %p49
    %p51 = scmp.ne.s32.totalorder %s43, %s45
    %p52 = scmp.eq.s32.totalorder %s14, 1
    %p53 = por %p51, %p52
    %p54 = scmp.ne.s32.totalorder %s45, %s46
    %p55 = scmp.eq.s32.totalorder %s14, 0
    %p56 = por %p54, %p55
    %p57 = scmp.ne.s32.totalorder %s45, %s46
    %p58 = scmp.eq.s32.totalorder %s15, 1
    %p59 = por %p57, %p58
    %p61 = scmp.ne.s32.totalorder %s46, %s60
    %p62 = scmp.eq.s32.totalorder %s15, 0
    %p63 = por %p61, %p62
    %s65 = sadd.s32 %s64, 1
    %p68 = scmp.eq.s32.totalorder %s9, 1
    %p69 = scmp.ne.s32.totalorder %s64, %s66
    %p70 = scmp.eq.s32.totalorder %s9, 0
    %p71 = por %p69, %p70
    %p72 = scmp.ne.s32.totalorder %s64, %s66
    %p73 = scmp.eq.s32.totalorder %s14, 1
    %p74 = por %p72, %p73
    %p75 = scmp.ne.s32.totalorder %s66, %s67
    %p76 = scmp.eq.s32.totalorder %s14, 0
    %p77 = por %p75, %p76
    %p78 = scmp.ne.s32.totalorder %s66, %s67
    %p79 = scmp.eq.s32.totalorder %s15, 1
    %p80 = por %p78, %p79
    %p82 = scmp.ne.s32.totalorder %s67, %s81
    %p83 = scmp.eq.s32.totalorder %s15, 0
    %p84 = por %p82, %p83
    %s85 = ssub.s32 %s9, %s16
    %p86 = scmp.eq.s32.totalorder %s85, 0
    %s88 = sadd.s32 %s87, 1
    %s89 = scalar_select %p86, %s87, %s88
    %p92 = pneg %p86
    %p93 = scmp.eq.s32.totalorder %s9, 1
    %p94 = por %p92, %p93
    %p95 = scmp.ne.s32.totalorder %s87, %s90
    %p96 = scmp.eq.s32.totalorder %s9, 0
    %p97 = por %p95, %p96
    %p98 = scmp.ne.s32.totalorder %s87, %s90
    %p99 = scmp.eq.s32.totalorder %s14, 1
    %p100 = por %p98, %p99
    %p101 = scmp.ne.s32.totalorder %s90, %s91
    %p102 = scmp.eq.s32.totalorder %s14, 0
    %p103 = por %p101, %p102
    %p104 = scmp.ne.s32.totalorder %s90, %s91
    %p105 = scmp.eq.s32.totalorder %s15, 1
    %p106 = por %p104, %p105
    %p108 = scmp.ne.s32.totalorder %s91, %s107
    %p109 = scmp.eq.s32.totalorder %s15, 0
    %p110 = por %p108, %p109
    %p111 = scmp.le.s32.totalorder 1, %s9
    %p112 = scmp.lt.s32.totalorder %s9, 3
    %p113 = pnand %p111, %p112
    %p114 = pneg %p113
    // Predicated region
    $region9: #{resnet_forward.13} parent=5 // pred_check
      _
    $region10: #{resnet_forward.13} parent=5 // pred_check_branch
      %116 = sbr.rel (%p113) target = $region12
    $region11: #{resnet_forward.13} parent=5 // pred_region
      %s117 = ssub.s32 %s9, 1
      // Predicated region
      $region13: #{resnet_forward.13} parent=11 // pred_check
        %p118 = pneg %p56
      $region14: #{resnet_forward.13} parent=11 // pred_check_branch
        %120 = sbr.rel (%p118) target = $region16
      $region15: #{resnet_forward.13} parent=11 // pred_region
        _
      $region16: #{resnet_forward.13} parent=11 // pred_fallthru
        _
      // Predicated region
      $region17: #{resnet_forward.13} parent=11 // pred_check
        %p121 = pneg %p77
      $region18: #{resnet_forward.13} parent=11 // pred_check_branch
        %123 = sbr.rel (%p121) target = $region20
      $region19: #{resnet_forward.13} parent=11 // pred_region
        _
      $region20: #{resnet_forward.13} parent=11 // pred_fallthru
        _
    $region12: #{resnet_forward.13} parent=5 // pred_fallthru
      _
    %p124 = scmp.lt.s32.totalorder %s9, 2
    // Predicated region
    $region21: #{resnet_forward.13} parent=5 // pred_check
      %p125 = pneg %p124
    $region22: #{resnet_forward.13} parent=5 // pred_check_branch
      %127 = sbr.rel (%p125) target = $region24
    $region23: #{resnet_forward.13} parent=5 // pred_region
      // Predicated region
      $region25: #{resnet_forward.13} parent=23 // pred_check
        %p128 = pneg %p29
      $region26: #{resnet_forward.13} parent=23 // pred_check_branch
        %130 = sbr.rel (%p128) target = $region28
      $region27: #{resnet_forward.13} parent=23 // pred_region
        %s131 = smul.u32 32, %s9
        %p132 = scmp.lt.s32.totalorder %s131, 63
        %s133 = scalar_select %p132, %s131, 63
        %s134 = smul.addr %s133, 4
        %s135 = scalar_lea.vmem %s0, %s134
        %s136 = smul.u32 32, %s9
      $region28: #{resnet_forward.13} parent=23 // pred_fallthru
        _
    $region24: #{resnet_forward.13} parent=5 // pred_fallthru
      _
    %p137 = scmp.le.s32.totalorder 1, %s9
    %p138 = scmp.lt.s32.totalorder %s9, 3
    %p139 = pnand %p137, %p138
    %p140 = pneg %p139
    // Predicated region
    $region29: #{resnet_forward.13} parent=5 // pred_check
      _
    $region30: #{resnet_forward.13} parent=5 // pred_check_branch
      %142 = sbr.rel (%p139) target = $region32
    $region31: #{resnet_forward.13} parent=5 // pred_region
      %s143 = ssub.s32 %s9, 1
      %s144 = smul.u32 32, %s14
      %p145 = scmp.lt.s32.totalorder %s144, 63
      %s146 = scalar_select %p145, %s144, 63
      %s147 = smul.addr %s146, 4
      %s148 = scalar_lea.vmem %s0, %s147
      %p149 = pneg %p35
      %p150 = pneg %p32
      %p151 = pneg %p56
      %p152 = pneg %p53
      %p153 = pneg %p77
      %p154 = pneg %p74
      %p155 = pneg %p103
      %p156 = pneg %p100
      %s157 = smul.u32 32, %s14
      %p158 = scmp.lt.s32.totalorder %s157, 63
      %s159 = scalar_select %p158, %s157, 63
      %s160 = smul.addr %s159, 4
      %s161 = scalar_lea.vmem %s3, %s160
      %s162 = smul.u32 32, %s14
      %p163 = scmp.lt.s32.totalorder %s162, 63
      %s164 = scalar_select %p163, %s162, 63
      %s165 = smul.addr %s164, 4
      %s166 = scalar_lea.vmem %s0, %s165
      %s167 = smul.u32 32, %s14
      %s168 = smul.u32 32, %s14
      %p169 = scmp.lt.s32.totalorder %s168, 63
      %s170 = scalar_select %p169, %s168, 63
      %s171 = smul.addr %s170, 4
      %s172 = scalar_lea.vmem %s3, %s171
      %s173 = smul.u32 32, %s14
      %v175 = vld [vmem:[%s166] sm:$0xf]
      %v176 = vld [vmem:[%s166 + $0x4] sm:$0xf]
      %v177 = vld [vmem:[%s166 + $0x8] sm:$0xf]
      %v178 = vld [vmem:[%s166 + $0xc] sm:$0xf]
      %v179 = vld [vmem:[%s166 + $0x10] sm:$0xf]
      %v180 = vld [vmem:[%s166 + $0x14] sm:$0xf]
      %v181 = vld [vmem:[%s166 + $0x18] sm:$0xf]
      %v182 = vld [vmem:[%s166 + $0x1c] sm:$0xf]
      %v183 = vld [vmem:[%s166 + $0x20] sm:$0xf]
      %v184 = vld [vmem:[%s166 + $0x24] sm:$0xf]
      %v185 = vld [vmem:[%s166 + $0x28] sm:$0xf]
      %v186 = vld [vmem:[%s166 + $0x2c] sm:$0xf]
      %v187 = vld [vmem:[%s166 + $0x30] sm:$0xf]
      %v188 = vld [vmem:[%s166 + $0x34] sm:$0xf]
      %v189 = vld [vmem:[%s166 + $0x38] sm:$0xf]
      %v190 = vld [vmem:[%s166 + $0x3c] sm:$0xf]
      %v191 = vld [vmem:[%s166 + $0x40] sm:$0xf]
      %v192 = vld [vmem:[%s166 + $0x44] sm:$0xf]
      %v193 = vld [vmem:[%s166 + $0x48] sm:$0xf]
      %v194 = vld [vmem:[%s166 + $0x4c] sm:$0xf]
      %v195 = vld [vmem:[%s166 + $0x50] sm:$0xf]
      %v196 = vld [vmem:[%s166 + $0x54] sm:$0xf]
      %v197 = vld [vmem:[%s166 + $0x58] sm:$0xf]
      %v198 = vld [vmem:[%s166 + $0x5c] sm:$0xf]
      %v199 = vld [vmem:[%s166 + $0x60] sm:$0xf]
      %v200 = vld [vmem:[%s166 + $0x64] sm:$0xf]
      %v201 = vld [vmem:[%s166 + $0x68] sm:$0xf]
      %v202 = vld [vmem:[%s166 + $0x6c] sm:$0xf]
      %v203 = vld [vmem:[%s166 + $0x70] sm:$0xf]
      %v204 = vld [vmem:[%s166 + $0x74] sm:$0xf]
      %v205 = vld [vmem:[%s166 + $0x78] sm:$0xf]
      %v206 = vld [vmem:[%s166 + $0x7c] sm:$0xf]
      %v207 = vld [vmem:[%s1] sm:$0xf]
      %v208 = vld [vmem:[%s1 + $0x4] sm:$0xf]
      %v209 = vld [vmem:[%s1 + $0x8] sm:$0xf]
      %v210 = vld [vmem:[%s1 + $0xc] sm:$0xf]
      %v211 = vld [vmem:[%s1 + $0x10] sm:$0xf]
      %v212 = vld [vmem:[%s1 + $0x14] sm:$0xf]
      %v213 = vld [vmem:[%s1 + $0x18] sm:$0xf]
      %v214 = vld [vmem:[%s1 + $0x1c] sm:$0xf]
      %v215 = vld [vmem:[%s1 + $0x20] sm:$0xf]
      %v216 = vld [vmem:[%s2] sm:$0x1]
      %v218 = vperm.slane %v216, 0
      %v252 = vunpack.c.l.b16 %v175
      %v253 = vunpack.c.l.b16 %v176
      %v254 = vunpack.c.l.b16 %v177
      %v255 = vunpack.c.l.b16 %v178
      %v256 = vunpack.c.l.b16 %v179
      %v257 = vunpack.c.l.b16 %v180
      %v258 = vunpack.c.l.b16 %v181
      %v259 = vunpack.c.l.b16 %v182
      %v260 = vunpack.c.l.b16 %v183
      %v261 = vunpack.c.l.b16 %v184
      %v262 = vunpack.c.l.b16 %v185
      %v263 = vunpack.c.l.b16 %v186
      %v264 = vunpack.c.l.b16 %v187
      %v265 = vunpack.c.l.b16 %v188
      %v266 = vunpack.c.l.b16 %v189
      %v267 = vunpack.c.l.b16 %v190
      %v268 = vunpack.c.l.b16 %v191
      %v269 = vunpack.c.l.b16 %v192
      %v270 = vunpack.c.l.b16 %v193
      %v271 = vunpack.c.l.b16 %v194
      %v272 = vunpack.c.l.b16 %v195
      %v273 = vunpack.c.l.b16 %v196
      %v274 = vunpack.c.l.b16 %v197
      %v275 = vunpack.c.l.b16 %v198
      %v276 = vunpack.c.l.b16 %v199
      %v277 = vunpack.c.l.b16 %v200
      %v278 = vunpack.c.l.b16 %v201
      %v279 = vunpack.c.l.b16 %v202
      %v280 = vunpack.c.l.b16 %v203
      %v281 = vunpack.c.l.b16 %v204
      %v282 = vunpack.c.l.b16 %v205
      %v283 = vunpack.c.l.b16 %v206
      %v284 = vpack.c.b16 %v253, %v252
      %v285 = vpack.c.b16 %v255, %v254
      %v286 = vpack.c.b16 %v257, %v256
      %v287 = vpack.c.b16 %v259, %v258
      %v288 = vpack.c.b16 %v261, %v260
      %v289 = vpack.c.b16 %v263, %v262
      %v290 = vpack.c.b16 %v265, %v264
      %v291 = vpack.c.b16 %v267, %v266
      %v292 = vpack.c.b16 %v269, %v268
      %v293 = vpack.c.b16 %v271, %v270
      %v294 = vpack.c.b16 %v273, %v272
      %v295 = vpack.c.b16 %v275, %v274
      %v296 = vpack.c.b16 %v277, %v276
      %v297 = vpack.c.b16 %v279, %v278
      %v298 = vpack.c.b16 %v281, %v280
      %v299 = vpack.c.b16 %v283, %v282
      %v309 = vunpack.c.l.b16 %v207
      %v310 = vunpack.c.l.b16 %v208
      %v311 = vunpack.c.l.b16 %v209
      %v312 = vunpack.c.l.b16 %v210
      %v313 = vunpack.c.l.b16 %v211
      %v314 = vunpack.c.l.b16 %v212
      %v315 = vunpack.c.l.b16 %v213
      %v316 = vunpack.c.l.b16 %v214
      %v317 = vunpack.c.l.b16 %v215
      %v318 = vpack.c.b16 %v310, %v309
      %v319 = vpack.c.b16 %v312, %v311
      %v320 = vpack.c.b16 %v314, %v313
      %v321 = vpack.c.b16 %v316, %v315
      %v322 = vpack.c.b16 %v317, %v317
      %vm327 = vcmask 588800
      %v329 = vsel %vm327, %v284, 0
      %v332 = vsel %vm327, %v285, 0
      %v335 = vsel %vm327, %v286, 0
      %v338 = vsel %vm327, %v287, 0
      %v341 = vsel %vm327, %v288, 0
      %v344 = vsel %vm327, %v289, 0
      %v347 = vsel %vm327, %v290, 0
      %v350 = vsel %vm327, %v291, 0
      %v353 = vsel %vm327, %v292, 0
      %v356 = vsel %vm327, %v293, 0
      %v359 = vsel %vm327, %v294, 0
      %v362 = vsel %vm327, %v295, 0
      %v365 = vsel %vm327, %v296, 0
      %v368 = vsel %vm327, %v297, 0
      %v371 = vsel %vm327, %v298, 0
      %v374 = vsel %vm327, %v299, 0
      %vm376 = vcmask 1043456
      %v378 = vsel %vm376, %v322, 0
      %380 = vmatpush.bf16.msra.mxu0 0
      %381 = vmatpush.bf16.msra.mxu0 0
      %382 = vmatpush.bf16.msra.mxu0 0
      %383 = vmatpush.bf16.msra.mxu0 %v378
      %384 = vmatpush.bf16.msra.mxu0 %v321
      %385 = vmatpush.bf16.msra.mxu0 %v320
      %386 = vmatpush.bf16.msra.mxu0 %v319
      %387 = vmatpush.bf16.msra.mxu0 %v318
      %388 = vmatmul.bf16.gmra.mxu0 %v329
      %v389 = vpop.f32.mrf.mxu0
      %v390 = vadd.f32 %v218, %v389
      %v391 = vpop.f32.mrf.mxu0
      %v392 = vadd.f32 %v218, %v391
      %393 = vmatmul.bf16.gmra.mxu0 %v332
      %v394 = vpop.f32.mrf.mxu0
      %v395 = vadd.f32 %v218, %v394
      %v396 = vpop.f32.mrf.mxu0
      %v397 = vadd.f32 %v218, %v396
      %398 = vmatmul.bf16.gmra.mxu0 %v335
      %v399 = vpop.f32.mrf.mxu0
      %v400 = vadd.f32 %v218, %v399
      %v401 = vpop.f32.mrf.mxu0
      %v402 = vadd.f32 %v218, %v401
      %403 = vmatmul.bf16.gmra.mxu0 %v338
      %v404 = vpop.f32.mrf.mxu0
      %v405 = vadd.f32 %v218, %v404
      %v406 = vpop.f32.mrf.mxu0
      %v407 = vadd.f32 %v218, %v406
      %408 = vmatmul.bf16.gmra.mxu0 %v341
      %v409 = vpop.f32.mrf.mxu0
      %v410 = vadd.f32 %v218, %v409
      %v411 = vpop.f32.mrf.mxu0
      %v412 = vadd.f32 %v218, %v411
      %413 = vmatmul.bf16.gmra.mxu0 %v344
      %v414 = vpop.f32.mrf.mxu0
      %v415 = vadd.f32 %v218, %v414
      %v416 = vpop.f32.mrf.mxu0
      %v417 = vadd.f32 %v218, %v416
      %418 = vmatmul.bf16.gmra.mxu0 %v347
      %v419 = vpop.f32.mrf.mxu0
      %v420 = vadd.f32 %v218, %v419
      %v421 = vpop.f32.mrf.mxu0
      %v422 = vadd.f32 %v218, %v421
      %423 = vmatmul.bf16.gmra.mxu0 %v350
      %v424 = vpop.f32.mrf.mxu0
      %v425 = vadd.f32 %v218, %v424
      %v426 = vpop.f32.mrf.mxu0
      %v427 = vadd.f32 %v218, %v426
      %428 = vmatmul.bf16.gmra.mxu0 %v353
      %v429 = vpop.f32.mrf.mxu0
      %v430 = vadd.f32 %v218, %v429
      %v431 = vpop.f32.mrf.mxu0
      %v432 = vadd.f32 %v218, %v431
      %433 = vmatmul.bf16.gmra.mxu0 %v356
      %v434 = vpop.f32.mrf.mxu0
      %v435 = vadd.f32 %v218, %v434
      %v436 = vpop.f32.mrf.mxu0
      %v437 = vadd.f32 %v218, %v436
      %438 = vmatmul.bf16.gmra.mxu0 %v359
      %v439 = vpop.f32.mrf.mxu0
      %v440 = vadd.f32 %v218, %v439
      %v441 = vpop.f32.mrf.mxu0
      %v442 = vadd.f32 %v218, %v441
      %443 = vmatmul.bf16.gmra.mxu0 %v362
      %v444 = vpop.f32.mrf.mxu0
      %v445 = vadd.f32 %v218, %v444
      %v446 = vpop.f32.mrf.mxu0
      %v447 = vadd.f32 %v218, %v446
      %448 = vmatmul.bf16.gmra.mxu0 %v365
      %v449 = vpop.f32.mrf.mxu0
      %v450 = vadd.f32 %v218, %v449
      %v451 = vpop.f32.mrf.mxu0
      %v452 = vadd.f32 %v218, %v451
      %453 = vmatmul.bf16.gmra.mxu0 %v368
      %v454 = vpop.f32.mrf.mxu0
      %v455 = vadd.f32 %v218, %v454
      %v456 = vpop.f32.mrf.mxu0
      %v457 = vadd.f32 %v218, %v456
      %458 = vmatmul.bf16.gmra.mxu0 %v371
      %v459 = vpop.f32.mrf.mxu0
      %v460 = vadd.f32 %v218, %v459
      %v461 = vpop.f32.mrf.mxu0
      %v462 = vadd.f32 %v218, %v461
      %463 = vmatmul.bf16.gmra.mxu0 %v374
      %v464 = vpop.f32.mrf.mxu0
      %v465 = vadd.f32 %v218, %v464
      %v466 = vpop.f32.mrf.mxu0
      %v467 = vadd.f32 %v218, %v466
      %468 = vdwg.mxu0
      %v469 = vmax.f32 %v390, 0.0
      %v470 = vmax.f32 %v392, 0.0
      %v471 = vmax.f32 %v395, 0.0
      %v472 = vmax.f32 %v397, 0.0
      %v473 = vmax.f32 %v400, 0.0
      %v474 = vmax.f32 %v402, 0.0
      %v475 = vmax.f32 %v405, 0.0
      %v476 = vmax.f32 %v407, 0.0
      %v477 = vmax.f32 %v410, 0.0
      %v478 = vmax.f32 %v412, 0.0
      %v479 = vmax.f32 %v415, 0.0
      %v480 = vmax.f32 %v417, 0.0
      %v481 = vmax.f32 %v420, 0.0
      %v482 = vmax.f32 %v422, 0.0
      %v483 = vmax.f32 %v425, 0.0
      %v484 = vmax.f32 %v427, 0.0
      %v485 = vmax.f32 %v430, 0.0
      %v486 = vmax.f32 %v432, 0.0
      %v487 = vmax.f32 %v435, 0.0
      %v488 = vmax.f32 %v437, 0.0
      %v489 = vmax.f32 %v440, 0.0
      %v490 = vmax.f32 %v442, 0.0
      %v491 = vmax.f32 %v445, 0.0
      %v492 = vmax.f32 %v447, 0.0
      %v493 = vmax.f32 %v450, 0.0
      %v494 = vmax.f32 %v452, 0.0
      %v495 = vmax.f32 %v455, 0.0
      %v496 = vmax.f32 %v457, 0.0
      %v497 = vmax.f32 %v460, 0.0
      %v498 = vmax.f32 %v462, 0.0
      %v499 = vmax.f32 %v465, 0.0
      %v500 = vmax.f32 %v467, 0.0
      %v501 = vpack.c.bf16 %v469, %v469
      %v502 = vpack.c.bf16 %v470, %v470
      %v503 = vpack.c.bf16 %v471, %v471
      %v504 = vpack.c.bf16 %v472, %v472
      %v505 = vpack.c.bf16 %v473, %v473
      %v506 = vpack.c.bf16 %v474, %v474
      %v507 = vpack.c.bf16 %v475, %v475
      %v508 = vpack.c.bf16 %v476, %v476
      %v509 = vpack.c.bf16 %v477, %v477
      %v510 = vpack.c.bf16 %v478, %v478
      %v511 = vpack.c.bf16 %v479, %v479
      %v512 = vpack.c.bf16 %v480, %v480
      %v513 = vpack.c.bf16 %v481, %v481
      %v514 = vpack.c.bf16 %v482, %v482
      %v515 = vpack.c.bf16 %v483, %v483
      %v516 = vpack.c.bf16 %v484, %v484
      %v517 = vpack.c.bf16 %v485, %v485
      %v518 = vpack.c.bf16 %v486, %v486
      %v519 = vpack.c.bf16 %v487, %v487
      %v520 = vpack.c.bf16 %v488, %v488
      %v521 = vpack.c.bf16 %v489, %v489
      %v522 = vpack.c.bf16 %v490, %v490
      %v523 = vpack.c.bf16 %v491, %v491
      %v524 = vpack.c.bf16 %v492, %v492
      %v525 = vpack.c.bf16 %v493, %v493
      %v526 = vpack.c.bf16 %v494, %v494
      %v527 = vpack.c.bf16 %v495, %v495
      %v528 = vpack.c.bf16 %v496, %v496
      %v529 = vpack.c.bf16 %v497, %v497
      %v530 = vpack.c.bf16 %v498, %v498
      %v531 = vpack.c.bf16 %v499, %v499
      %v532 = vpack.c.bf16 %v500, %v500
      %533 = vst [vmem:[%s172] sm:$0xf] %v501
      %534 = vst [vmem:[%s172 + $0x4] sm:$0xf] %v502
      %535 = vst [vmem:[%s172 + $0x8] sm:$0xf] %v503
      %536 = vst [vmem:[%s172 + $0xc] sm:$0xf] %v504
      %537 = vst [vmem:[%s172 + $0x10] sm:$0xf] %v505
      %538 = vst [vmem:[%s172 + $0x14] sm:$0xf] %v506
      %539 = vst [vmem:[%s172 + $0x18] sm:$0xf] %v507
      %540 = vst [vmem:[%s172 + $0x1c] sm:$0xf] %v508
      %541 = vst [vmem:[%s172 + $0x20] sm:$0xf] %v509
      %542 = vst [vmem:[%s172 + $0x24] sm:$0xf] %v510
      %543 = vst [vmem:[%s172 + $0x28] sm:$0xf] %v511
      %544 = vst [vmem:[%s172 + $0x2c] sm:$0xf] %v512
      %545 = vst [vmem:[%s172 + $0x30] sm:$0xf] %v513
      %546 = vst [vmem:[%s172 + $0x34] sm:$0xf] %v514
      %547 = vst [vmem:[%s172 + $0x38] sm:$0xf] %v515
      %548 = vst [vmem:[%s172 + $0x3c] sm:$0xf] %v516
      %549 = vst [vmem:[%s172 + $0x40] sm:$0xf] %v517
      %550 = vst [vmem:[%s172 + $0x44] sm:$0xf] %v518
      %551 = vst [vmem:[%s172 + $0x48] sm:$0xf] %v519
      %552 = vst [vmem:[%s172 + $0x4c] sm:$0xf] %v520
      %553 = vst [vmem:[%s172 + $0x50] sm:$0xf] %v521
      %554 = vst [vmem:[%s172 + $0x54] sm:$0xf] %v522
      %555 = vst [vmem:[%s172 + $0x58] sm:$0xf] %v523
      %556 = vst [vmem:[%s172 + $0x5c] sm:$0xf] %v524
      %557 = vst [vmem:[%s172 + $0x60] sm:$0xf] %v525
      %558 = vst [vmem:[%s172 + $0x64] sm:$0xf] %v526
      %559 = vst [vmem:[%s172 + $0x68] sm:$0xf] %v527
      %560 = vst [vmem:[%s172 + $0x6c] sm:$0xf] %v528
      %561 = vst [vmem:[%s172 + $0x70] sm:$0xf] %v529
      %562 = vst [vmem:[%s172 + $0x74] sm:$0xf] %v530
      %563 = vst [vmem:[%s172 + $0x78] sm:$0xf] %v531
      %564 = vst [vmem:[%s172 + $0x7c] sm:$0xf] %v532
      %s565 = smul.u32 32, %s14
      %p566 = scmp.lt.s32.totalorder %s565, 63
      %s567 = scalar_select %p566, %s565, 63
      %s568 = smul.addr %s567, 4
      %s569 = scalar_lea.vmem %s3, %s568
      // Predicated region
      $region33: #{resnet_forward.13} parent=31 // pred_check
        %p570 = pneg %p100
      $region34: #{resnet_forward.13} parent=31 // pred_check_branch
        %572 = sbr.rel (%p570) target = $region36
      $region35: #{resnet_forward.13} parent=31 // pred_region
        %s573 = smul.u32 32, %s14
      $region36: #{resnet_forward.13} parent=31 // pred_fallthru
        _
    $region32: #{resnet_forward.13} parent=5 // pred_fallthru
      _
    %p574 = scmp.le.s32.totalorder 2, %s9
    // Predicated region
    $region37: #{resnet_forward.13} parent=5 // pred_check
      %p575 = pneg %p574
    $region38: #{resnet_forward.13} parent=5 // pred_check_branch
      %577 = sbr.rel (%p575) target = $region40
    $region39: #{resnet_forward.13} parent=5 // pred_region
      %s578 = ssub.s32 %s9, 2
      // Predicated region
      $region41: #{resnet_forward.13} parent=39 // pred_check
        %p579 = pneg %p106
      $region42: #{resnet_forward.13} parent=39 // pred_check_branch
        %581 = sbr.rel (%p579) target = $region44
      $region43: #{resnet_forward.13} parent=39 // pred_region
        %s582 = smul.u32 32, %s15
        %p583 = scmp.lt.s32.totalorder %s582, 63
        %s584 = scalar_select %p583, %s582, 63
        %s585 = smul.addr %s584, 4
        %s586 = scalar_lea.vmem %s3, %s585
      $region44: #{resnet_forward.13} parent=39 // pred_fallthru
        _
    $region40: #{resnet_forward.13} parent=5 // pred_fallthru
      _
  $region6: #{resnet_forward.13} parent=0 // loop_footer
    %s13 = sadd.s32 1, %s9
  $region7: #{resnet_forward.13} parent=0 // loop_footer_branch
    %8 = sbr.rel target = $region3
  $region8: #{resnet_forward.13} parent=0 // loop_exit
    _

// kernel: resnet_forward.17
$region0: #{resnet_forward.17}
  #allocation0 [shape = 'u32[]', space=smem, size = 0x4, offset = 0x4, fixed_abs, tag = 'smem constant byte address 0x4 - core index']
  #allocation1 [shape = 'u32[72,128]{1,0:T(1,128)}', space=vmem, size = 0x9000, scoped, tag = 'internal scratch']
  %s0 = inlined_call_operand.vmem [shape: bf16[128,8], index: 0, kind: input, shape index: {}]
  %s1 = inlined_call_operand.vmem [shape: bf16[8,128], index: 1, kind: input, shape index: {}]
  %s2 = inlined_call_operand.vmem [shape: f32[1,128], index: 2, kind: input, shape index: {}]
  %s3 = inlined_call_operand.vmem [shape: bf16[128,128], index: 3, kind: output, shape index: {}]
  %s4 = sld [smem:[#allocation0]]
  $region45: #{resnet_forward.17} parent=0
    _
  %s6 = ssub.s32 1, %s4
  %s7 = scalar_select 0, %s6, %s4
  loop: start=0, step=1, limit=4
  $region2: #{resnet_forward.17} parent=0 // loop_pre_header
    _
  $region3: #{resnet_forward.17} parent=0 // loop_header
    %s9 = sphi 0, %s13
    %p10 = scmp.ge.s32.totalorder %s9, 4
    %s19 = sphi 0, %s21
    %s22 = sphi 0, %s19
    %s23 = sphi 0, %s22
    %s39 = sphi 0, %s23
    %s43 = sphi 0, %s43
    %s45 = sphi 0, %s43
    %s46 = sphi 0, %s45
    %s60 = sphi 0, %s46
    %s64 = sphi 0, %s64
    %s66 = sphi 0, %s64
    %s67 = sphi 0, %s66
    %s81 = sphi 0, %s67
    %s87 = sphi 0, %s89
    %s90 = sphi 0, %s87
    %s91 = sphi 0, %s90
    %s107 = sphi 0, %s91
  $region4: #{resnet_forward.17} parent=0 // loop_header_branch
    %12 = sbr.rel (%p10) target = $region8
  $region5: #{resnet_forward.17} parent=0 // loop_body
    %s14 = ssub.s32 %s9, 1
    %s15 = ssub.s32 %s9, 2
    %s16 = sadd.s32 %s9, 1
    %s17 = ssub.s32 %s9, %s16
    %p18 = scmp.eq.s32.totalorder %s17, 0
    %s20 = sadd.s32 %s19, 1
    %s21 = scalar_select %p18, %s19, %s20
    %p24 = pneg %p18
    %p25 = scmp.eq.s32.totalorder %s9, 1
    %p26 = por %p24, %p25
    %p27 = scmp.ne.s32.totalorder %s19, %s22
    %p28 = scmp.eq.s32.totalorder %s9, 0
    %p29 = por %p27, %p28
    %p30 = scmp.ne.s32.totalorder %s19, %s22
    %p31 = scmp.eq.s32.totalorder %s14, 1
    %p32 = por %p30, %p31
    %p33 = scmp.ne.s32.totalorder %s22, %s23
    %p34 = scmp.eq.s32.totalorder %s14, 0
    %p35 = por %p33, %p34
    %p36 = scmp.ne.s32.totalorder %s22, %s23
    %p37 = scmp.eq.s32.totalorder %s15, 1
    %p38 = por %p36, %p37
    %p40 = scmp.ne.s32.totalorder %s23, %s39
    %p41 = scmp.eq.s32.totalorder %s15, 0
    %p42 = por %p40, %p41
    %s44 = sadd.s32 %s43, 1
    %p47 = scmp.eq.s32.totalorder %s9, 1
    %p48 = scmp.ne.s32.totalorder %s43, %s45
    %p49 = scmp.eq.s32.totalorder %s9, 0
    %p50 = por %p48, %p49
    %p51 = scmp.ne.s32.totalorder %s43, %s45
    %p52 = scmp.eq.s32.totalorder %s14, 1
    %p53 = por %p51, %p52
    %p54 = scmp.ne.s32.totalorder %s45, %s46
    %p55 = scmp.eq.s32.totalorder %s14, 0
    %p56 = por %p54, %p55
    %p57 = scmp.ne.s32.totalorder %s45, %s46
    %p58 = scmp.eq.s32.totalorder %s15, 1
    %p59 = por %p57, %p58
    %p61 = scmp.ne.s32.totalorder %s46, %s60
    %p62 = scmp.eq.s32.totalorder %s15, 0
    %p63 = por %p61, %p62
    %s65 = sadd.s32 %s64, 1
    %p68 = scmp.eq.s32.totalorder %s9, 1
    %p69 = scmp.ne.s32.totalorder %s64, %s66
    %p70 = scmp.eq.s32.totalorder %s9, 0
    %p71 = por %p69, %p70
    %p72 = scmp.ne.s32.totalorder %s64, %s66
    %p73 = scmp.eq.s32.totalorder %s14, 1
    %p74 = por %p72, %p73
    %p75 = scmp.ne.s32.totalorder %s66, %s67
    %p76 = scmp.eq.s32.totalorder %s14, 0
    %p77 = por %p75, %p76
    %p78 = scmp.ne.s32.totalorder %s66, %s67
    %p79 = scmp.eq.s32.totalorder %s15, 1
    %p80 = por %p78, %p79
    %p82 = scmp.ne.s32.totalorder %s67, %s81
    %p83 = scmp.eq.s32.totalorder %s15, 0
    %p84 = por %p82, %p83
    %s85 = ssub.s32 %s9, %s16
    %p86 = scmp.eq.s32.totalorder %s85, 0
    %s88 = sadd.s32 %s87, 1
    %s89 = scalar_select %p86, %s87, %s88
    %p92 = pneg %p86
    %p93 = scmp.eq.s32.totalorder %s9, 1
    %p94 = por %p92, %p93
    %p95 = scmp.ne.s32.totalorder %s87, %s90
    %p96 = scmp.eq.s32.totalorder %s9, 0
    %p97 = por %p95, %p96
    %p98 = scmp.ne.s32.totalorder %s87, %s90
    %p99 = scmp.eq.s32.totalorder %s14, 1
    %p100 = por %p98, %p99
    %p101 = scmp.ne.s32.totalorder %s90, %s91
    %p102 = scmp.eq.s32.totalorder %s14, 0
    %p103 = por %p101, %p102
    %p104 = scmp.ne.s32.totalorder %s90, %s91
    %p105 = scmp.eq.s32.totalorder %s15, 1
    %p106 = por %p104, %p105
    %p108 = scmp.ne.s32.totalorder %s91, %s107
    %p109 = scmp.eq.s32.totalorder %s15, 0
    %p110 = por %p108, %p109
    %p111 = scmp.le.s32.totalorder 1, %s9
    %p112 = scmp.lt.s32.totalorder %s9, 3
    %p113 = pnand %p111, %p112
    %p114 = pneg %p113
    // Predicated region
    $region9: #{resnet_forward.17} parent=5 // pred_check
      _
    $region10: #{resnet_forward.17} parent=5 // pred_check_branch
      %116 = sbr.rel (%p113) target = $region12
    $region11: #{resnet_forward.17} parent=5 // pred_region
      %s117 = ssub.s32 %s9, 1
      // Predicated region
      $region13: #{resnet_forward.17} parent=11 // pred_check
        %p118 = pneg %p56
      $region14: #{resnet_forward.17} parent=11 // pred_check_branch
        %120 = sbr.rel (%p118) target = $region16
      $region15: #{resnet_forward.17} parent=11 // pred_region
        _
      $region16: #{resnet_forward.17} parent=11 // pred_fallthru
        _
      // Predicated region
      $region17: #{resnet_forward.17} parent=11 // pred_check
        %p121 = pneg %p77
      $region18: #{resnet_forward.17} parent=11 // pred_check_branch
        %123 = sbr.rel (%p121) target = $region20
      $region19: #{resnet_forward.17} parent=11 // pred_region
        _
      $region20: #{resnet_forward.17} parent=11 // pred_fallthru
        _
    $region12: #{resnet_forward.17} parent=5 // pred_fallthru
      _
    %p124 = scmp.lt.s32.totalorder %s9, 2
    // Predicated region
    $region21: #{resnet_forward.17} parent=5 // pred_check
      %p125 = pneg %p124
    $region22: #{resnet_forward.17} parent=5 // pred_check_branch
      %127 = sbr.rel (%p125) target = $region24
    $region23: #{resnet_forward.17} parent=5 // pred_region
      // Predicated region
      $region25: #{resnet_forward.17} parent=23 // pred_check
        %p128 = pneg %p29
      $region26: #{resnet_forward.17} parent=23 // pred_check_branch
        %130 = sbr.rel (%p128) target = $region28
      $region27: #{resnet_forward.17} parent=23 // pred_region
        %s131 = smul.u32 8, %s9
        %p132 = scmp.lt.s32.totalorder %s131, 15
        %s133 = scalar_select %p132, %s131, 15
        %s134 = smul.addr %s133, 4
        %s135 = scalar_lea.vmem %s0, %s134
        %s136 = smul.u32 8, %s9
      $region28: #{resnet_forward.17} parent=23 // pred_fallthru
        _
    $region24: #{resnet_forward.17} parent=5 // pred_fallthru
      _
    %p137 = scmp.le.s32.totalorder 1, %s9
    %p138 = scmp.lt.s32.totalorder %s9, 3
    %p139 = pnand %p137, %p138
    %p140 = pneg %p139
    // Predicated region
    $region29: #{resnet_forward.17} parent=5 // pred_check
      _
    $region30: #{resnet_forward.17} parent=5 // pred_check_branch
      %142 = sbr.rel (%p139) target = $region32
    $region31: #{resnet_forward.17} parent=5 // pred_region
      %s143 = ssub.s32 %s9, 1
      %s144 = smul.u32 8, %s14
      %p145 = scmp.lt.s32.totalorder %s144, 15
      %s146 = scalar_select %p145, %s144, 15
      %s147 = smul.addr %s146, 4
      %s148 = scalar_lea.vmem %s0, %s147
      %p149 = pneg %p35
      %p150 = pneg %p32
      %p151 = pneg %p56
      %p152 = pneg %p53
      %p153 = pneg %p77
      %p154 = pneg %p74
      %p155 = pneg %p103
      %p156 = pneg %p100
      %s157 = smul.u32 8, %s14
      %p158 = scmp.lt.s32.totalorder %s157, 15
      %s159 = scalar_select %p158, %s157, 15
      %s160 = smul.addr %s159, 4
      %s161 = scalar_lea.vmem %s3, %s160
      %s162 = smul.u32 8, %s14
      %p163 = scmp.lt.s32.totalorder %s162, 15
      %s164 = scalar_select %p163, %s162, 15
      %s165 = smul.addr %s164, 4
      %s166 = scalar_lea.vmem %s0, %s165
      %s167 = smul.u32 8, %s14
      %s168 = smul.u32 8, %s14
      %p169 = scmp.lt.s32.totalorder %s168, 15
      %s170 = scalar_select %p169, %s168, 15
      %s171 = smul.addr %s170, 4
      %s172 = scalar_lea.vmem %s3, %s171
      %s173 = smul.u32 8, %s14
      %v175 = vld [vmem:[%s166] sm:$0xf]
      %v176 = vld [vmem:[%s166 + $0x4] sm:$0xf]
      %v177 = vld [vmem:[%s166 + $0x8] sm:$0xf]
      %v178 = vld [vmem:[%s166 + $0xc] sm:$0xf]
      %v179 = vld [vmem:[%s166 + $0x10] sm:$0xf]
      %v180 = vld [vmem:[%s166 + $0x14] sm:$0xf]
      %v181 = vld [vmem:[%s166 + $0x18] sm:$0xf]
      %v182 = vld [vmem:[%s166 + $0x1c] sm:$0xf]
      %v183 = vld [vmem:[%s1] sm:$0xf]
      %v184 = vld [vmem:[%s2] sm:$0x1]
      %v186 = vperm.slane %v184, 0
      %v196 = vunpack.c.l.b16 %v175
      %v197 = vunpack.c.l.b16 %v176
      %v198 = vunpack.c.l.b16 %v177
      %v199 = vunpack.c.l.b16 %v178
      %v200 = vunpack.c.l.b16 %v179
      %v201 = vunpack.c.l.b16 %v180
      %v202 = vunpack.c.l.b16 %v181
      %v203 = vunpack.c.l.b16 %v182
      %v204 = vpack.c.b16 %v197, %v196
      %v205 = vpack.c.b16 %v199, %v198
      %v206 = vpack.c.b16 %v201, %v200
      %v207 = vpack.c.b16 %v203, %v202
      %vm208 = vcmask 64512
      %v210 = vsel %vm208, %v204, 0
      %v213 = vsel %vm208, %v205, 0
      %v216 = vsel %vm208, %v206, 0
      %v219 = vsel %vm208, %v207, 0
      %vm221 = vcmask 1043456
      %v223 = vsel %vm221, %v183, 0
      %225 = vmatpush.bf16.msra.mxu0 0
      %226 = vmatpush.bf16.msra.mxu0 0
      %227 = vmatpush.bf16.msra.mxu0 0
      %228 = vmatpush.bf16.msra.mxu0 0
      %229 = vmatpush.bf16.msra.mxu0 0
      %230 = vmatpush.bf16.msra.mxu0 0
      %231 = vmatpush.bf16.msra.mxu0 0
      %232 = vmatpush.bf16.msra.mxu0 %v223
      %233 = vmatmul.bf16.gmra.mxu0 %v210
      %v234 = vpop.f32.mrf.mxu0
      %v235 = vadd.f32 %v186, %v234
      %v236 = vpop.f32.mrf.mxu0
      %v237 = vadd.f32 %v186, %v236
      %238 = vmatmul.bf16.gmra.mxu0 %v213
      %v239 = vpop.f32.mrf.mxu0
      %v240 = vadd.f32 %v186, %v239
      %v241 = vpop.f32.mrf.mxu0
      %v242 = vadd.f32 %v186, %v241
      %243 = vmatmul.bf16.gmra.mxu0 %v216
      %v244 = vpop.f32.mrf.mxu0
      %v245 = vadd.f32 %v186, %v244
      %v246 = vpop.f32.mrf.mxu0
      %v247 = vadd.f32 %v186, %v246
      %248 = vmatmul.bf16.gmra.mxu0 %v219
      %v249 = vpop.f32.mrf.mxu0
      %v250 = vadd.f32 %v186, %v249
      %v251 = vpop.f32.mrf.mxu0
      %v252 = vadd.f32 %v186, %v251
      %253 = vdwg.mxu0
      %v254 = vpack.c.bf16 %v235, %v235
      %v255 = vpack.c.bf16 %v237, %v237
      %v256 = vpack.c.bf16 %v240, %v240
      %v257 = vpack.c.bf16 %v242, %v242
      %v258 = vpack.c.bf16 %v245, %v245
      %v259 = vpack.c.bf16 %v247, %v247
      %v260 = vpack.c.bf16 %v250, %v250
      %v261 = vpack.c.bf16 %v252, %v252
      %262 = vst [vmem:[%s172] sm:$0xf] %v254
      %263 = vst [vmem:[%s172 + $0x4] sm:$0xf] %v255
      %264 = vst [vmem:[%s172 + $0x8] sm:$0xf] %v256
      %265 = vst [vmem:[%s172 + $0xc] sm:$0xf] %v257
      %266 = vst [vmem:[%s172 + $0x10] sm:$0xf] %v258
      %267 = vst [vmem:[%s172 + $0x14] sm:$0xf] %v259
      %268 = vst [vmem:[%s172 + $0x18] sm:$0xf] %v260
      %269 = vst [vmem:[%s172 + $0x1c] sm:$0xf] %v261
      %s270 = smul.u32 8, %s14
      %p271 = scmp.lt.s32.totalorder %s270, 15
      %s272 = scalar_select %p271, %s270, 15
      %s273 = smul.addr %s272, 4
      %s274 = scalar_lea.vmem %s3, %s273
      // Predicated region
      $region33: #{resnet_forward.17} parent=31 // pred_check
        %p275 = pneg %p100
      $region34: #{resnet_forward.17} parent=31 // pred_check_branch
        %277 = sbr.rel (%p275) target = $region36
      $region35: #{resnet_forward.17} parent=31 // pred_region
        %s278 = smul.u32 8, %s14
      $region36: #{resnet_forward.17} parent=31 // pred_fallthru
        _
    $region32: #{resnet_forward.17} parent=5 // pred_fallthru
      _
    %p279 = scmp.le.s32.totalorder 2, %s9
    // Predicated region
    $region37: #{resnet_forward.17} parent=5 // pred_check
      %p280 = pneg %p279
    $region38: #{resnet_forward.17} parent=5 // pred_check_branch
      %282 = sbr.rel (%p280) target = $region40
    $region39: #{resnet_forward.17} parent=5 // pred_region
      %s283 = ssub.s32 %s9, 2
      // Predicated region
      $region41: #{resnet_forward.17} parent=39 // pred_check
        %p284 = pneg %p106
      $region42: #{resnet_forward.17} parent=39 // pred_check_branch
        %286 = sbr.rel (%p284) target = $region44
      $region43: #{resnet_forward.17} parent=39 // pred_region
        %s287 = smul.u32 8, %s15
        %p288 = scmp.lt.s32.totalorder %s287, 15
        %s289 = scalar_select %p288, %s287, 15
        %s290 = smul.addr %s289, 4
        %s291 = scalar_lea.vmem %s3, %s290
      $region44: #{resnet_forward.17} parent=39 // pred_fallthru
        _
    $region40: #{resnet_forward.17} parent=5 // pred_fallthru
      _
  $region6: #{resnet_forward.17} parent=0 // loop_footer
    %s13 = sadd.s32 1, %s9
  $region7: #{resnet_forward.17} parent=0 // loop_footer_branch
    %8 = sbr.rel target = $region3
  $region8: #{resnet_forward.17} parent=0 // loop_exit
    _

// kernel: resnet_forward.15
$region0: #{resnet_forward.15}
  #allocation0 [shape = 'u32[]', space=smem, size = 0x4, offset = 0x4, fixed_abs, tag = 'smem constant byte address 0x4 - core index']
  #allocation1 [shape = 'u32[72,128]{1,0:T(1,128)}', space=vmem, size = 0x9000, scoped, tag = 'internal scratch']
  %s0 = inlined_call_operand.vmem [shape: bf16[512,72], index: 0, kind: input, shape index: {}]
  %s1 = inlined_call_operand.vmem [shape: bf16[72,128], index: 1, kind: input, shape index: {}]
  %s2 = inlined_call_operand.vmem [shape: f32[1,128], index: 2, kind: input, shape index: {}]
  %s3 = inlined_call_operand.vmem [shape: bf16[512,128], index: 3, kind: input, shape index: {}]
  %s4 = inlined_call_operand.vmem [shape: bf16[512,128], index: 4, kind: output, shape index: {}]
  %s5 = sld [smem:[#allocation0]]
  $region49: #{resnet_forward.15} parent=0
    _
  %s7 = ssub.s32 1, %s5
  %s8 = scalar_select 0, %s7, %s5
  loop: start=0, step=1, limit=4
  $region2: #{resnet_forward.15} parent=0 // loop_pre_header
    _
  $region3: #{resnet_forward.15} parent=0 // loop_header
    %s10 = sphi 0, %s14
    %p11 = scmp.ge.s32.totalorder %s10, 4
    %s20 = sphi 0, %s22
    %s23 = sphi 0, %s20
    %s24 = sphi 0, %s23
    %s40 = sphi 0, %s24
    %s44 = sphi 0, %s44
    %s46 = sphi 0, %s44
    %s47 = sphi 0, %s46
    %s61 = sphi 0, %s47
    %s65 = sphi 0, %s65
    %s67 = sphi 0, %s65
    %s68 = sphi 0, %s67
    %s82 = sphi 0, %s68
    %s88 = sphi 0, %s90
    %s91 = sphi 0, %s88
    %s92 = sphi 0, %s91
    %s108 = sphi 0, %s92
    %s114 = sphi 0, %s116
    %s117 = sphi 0, %s114
    %s118 = sphi 0, %s117
    %s134 = sphi 0, %s118
  $region4: #{resnet_forward.15} parent=0 // loop_header_branch
    %13 = sbr.rel (%p11) target = $region8
  $region5: #{resnet_forward.15} parent=0 // loop_body
    %s15 = ssub.s32 %s10, 1
    %s16 = ssub.s32 %s10, 2
    %s17 = sadd.s32 %s10, 1
    %s18 = ssub.s32 %s10, %s17
    %p19 = scmp.eq.s32.totalorder %s18, 0
    %s21 = sadd.s32 %s20, 1
    %s22 = scalar_select %p19, %s20, %s21
    %p25 = pneg %p19
    %p26 = scmp.eq.s32.totalorder %s10, 1
    %p27 = por %p25, %p26
    %p28 = scmp.ne.s32.totalorder %s20, %s23
    %p29 = scmp.eq.s32.totalorder %s10, 0
    %p30 = por %p28, %p29
    %p31 = scmp.ne.s32.totalorder %s20, %s23
    %p32 = scmp.eq.s32.totalorder %s15, 1
    %p33 = por %p31, %p32
    %p34 = scmp.ne.s32.totalorder %s23, %s24
    %p35 = scmp.eq.s32.totalorder %s15, 0
    %p36 = por %p34, %p35
    %p37 = scmp.ne.s32.totalorder %s23, %s24
    %p38 = scmp.eq.s32.totalorder %s16, 1
    %p39 = por %p37, %p38
    %p41 = scmp.ne.s32.totalorder %s24, %s40
    %p42 = scmp.eq.s32.totalorder %s16, 0
    %p43 = por %p41, %p42
    %s45 = sadd.s32 %s44, 1
    %p48 = scmp.eq.s32.totalorder %s10, 1
    %p49 = scmp.ne.s32.totalorder %s44, %s46
    %p50 = scmp.eq.s32.totalorder %s10, 0
    %p51 = por %p49, %p50
    %p52 = scmp.ne.s32.totalorder %s44, %s46
    %p53 = scmp.eq.s32.totalorder %s15, 1
    %p54 = por %p52, %p53
    %p55 = scmp.ne.s32.totalorder %s46, %s47
    %p56 = scmp.eq.s32.totalorder %s15, 0
    %p57 = por %p55, %p56
    %p58 = scmp.ne.s32.totalorder %s46, %s47
    %p59 = scmp.eq.s32.totalorder %s16, 1
    %p60 = por %p58, %p59
    %p62 = scmp.ne.s32.totalorder %s47, %s61
    %p63 = scmp.eq.s32.totalorder %s16, 0
    %p64 = por %p62, %p63
    %s66 = sadd.s32 %s65, 1
    %p69 = scmp.eq.s32.totalorder %s10, 1
    %p70 = scmp.ne.s32.totalorder %s65, %s67
    %p71 = scmp.eq.s32.totalorder %s10, 0
    %p72 = por %p70, %p71
    %p73 = scmp.ne.s32.totalorder %s65, %s67
    %p74 = scmp.eq.s32.totalorder %s15, 1
    %p75 = por %p73, %p74
    %p76 = scmp.ne.s32.totalorder %s67, %s68
    %p77 = scmp.eq.s32.totalorder %s15, 0
    %p78 = por %p76, %p77
    %p79 = scmp.ne.s32.totalorder %s67, %s68
    %p80 = scmp.eq.s32.totalorder %s16, 1
    %p81 = por %p79, %p80
    %p83 = scmp.ne.s32.totalorder %s68, %s82
    %p84 = scmp.eq.s32.totalorder %s16, 0
    %p85 = por %p83, %p84
    %s86 = ssub.s32 %s10, %s17
    %p87 = scmp.eq.s32.totalorder %s86, 0
    %s89 = sadd.s32 %s88, 1
    %s90 = scalar_select %p87, %s88, %s89
    %p93 = pneg %p87
    %p94 = scmp.eq.s32.totalorder %s10, 1
    %p95 = por %p93, %p94
    %p96 = scmp.ne.s32.totalorder %s88, %s91
    %p97 = scmp.eq.s32.totalorder %s10, 0
    %p98 = por %p96, %p97
    %p99 = scmp.ne.s32.totalorder %s88, %s91
    %p100 = scmp.eq.s32.totalorder %s15, 1
    %p101 = por %p99, %p100
    %p102 = scmp.ne.s32.totalorder %s91, %s92
    %p103 = scmp.eq.s32.totalorder %s15, 0
    %p104 = por %p102, %p103
    %p105 = scmp.ne.s32.totalorder %s91, %s92
    %p106 = scmp.eq.s32.totalorder %s16, 1
    %p107 = por %p105, %p106
    %p109 = scmp.ne.s32.totalorder %s92, %s108
    %p110 = scmp.eq.s32.totalorder %s16, 0
    %p111 = por %p109, %p110
    %s112 = ssub.s32 %s10, %s17
    %p113 = scmp.eq.s32.totalorder %s112, 0
    %s115 = sadd.s32 %s114, 1
    %s116 = scalar_select %p113, %s114, %s115
    %p119 = pneg %p113
    %p120 = scmp.eq.s32.totalorder %s10, 1
    %p121 = por %p119, %p120
    %p122 = scmp.ne.s32.totalorder %s114, %s117
    %p123 = scmp.eq.s32.totalorder %s10, 0
    %p124 = por %p122, %p123
    %p125 = scmp.ne.s32.totalorder %s114, %s117
    %p126 = scmp.eq.s32.totalorder %s15, 1
    %p127 = por %p125, %p126
    %p128 = scmp.ne.s32.totalorder %s117, %s118
    %p129 = scmp.eq.s32.totalorder %s15, 0
    %p130 = por %p128, %p129
    %p131 = scmp.ne.s32.totalorder %s117, %s118
    %p132 = scmp.eq.s32.totalorder %s16, 1
    %p133 = por %p131, %p132
    %p135 = scmp.ne.s32.totalorder %s118, %s134
    %p136 = scmp.eq.s32.totalorder %s16, 0
    %p137 = por %p135, %p136
    %p138 = scmp.le.s32.totalorder 1, %s10
    %p139 = scmp.lt.s32.totalorder %s10, 3
    %p140 = pnand %p138, %p139
    %p141 = pneg %p140
    // Predicated region
    $region9: #{resnet_forward.15} parent=5 // pred_check
      _
    $region10: #{resnet_forward.15} parent=5 // pred_check_branch
      %143 = sbr.rel (%p140) target = $region12
    $region11: #{resnet_forward.15} parent=5 // pred_region
      %s144 = ssub.s32 %s10, 1
      // Predicated region
      $region13: #{resnet_forward.15} parent=11 // pred_check
        %p145 = pneg %p57
      $region14: #{resnet_forward.15} parent=11 // pred_check_branch
        %147 = sbr.rel (%p145) target = $region16
      $region15: #{resnet_forward.15} parent=11 // pred_region
        _
      $region16: #{resnet_forward.15} parent=11 // pred_fallthru
        _
      // Predicated region
      $region17: #{resnet_forward.15} parent=11 // pred_check
        %p148 = pneg %p78
      $region18: #{resnet_forward.15} parent=11 // pred_check_branch
        %150 = sbr.rel (%p148) target = $region20
      $region19: #{resnet_forward.15} parent=11 // pred_region
        _
      $region20: #{resnet_forward.15} parent=11 // pred_fallthru
        _
    $region12: #{resnet_forward.15} parent=5 // pred_fallthru
      _
    %p151 = scmp.lt.s32.totalorder %s10, 2
    // Predicated region
    $region21: #{resnet_forward.15} parent=5 // pred_check
      %p152 = pneg %p151
    $region22: #{resnet_forward.15} parent=5 // pred_check_branch
      %154 = sbr.rel (%p152) target = $region24
    $region23: #{resnet_forward.15} parent=5 // pred_region
      // Predicated region
      $region25: #{resnet_forward.15} parent=23 // pred_check
        %p155 = pneg %p30
      $region26: #{resnet_forward.15} parent=23 // pred_check_branch
        %157 = sbr.rel (%p155) target = $region28
      $region27: #{resnet_forward.15} parent=23 // pred_region
        %s158 = smul.u32 32, %s10
        %p159 = scmp.lt.s32.totalorder %s158, 63
        %s160 = scalar_select %p159, %s158, 63
        %s161 = smul.addr %s160, 4
        %s162 = scalar_lea.vmem %s0, %s161
        %s163 = smul.u32 32, %s10
      $region28: #{resnet_forward.15} parent=23 // pred_fallthru
        _
      // Predicated region
      $region29: #{resnet_forward.15} parent=23 // pred_check
        %p164 = pneg %p98
      $region30: #{resnet_forward.15} parent=23 // pred_check_branch
        %166 = sbr.rel (%p164) target = $region32
      $region31: #{resnet_forward.15} parent=23 // pred_region
        %s167 = smul.u32 32, %s10
        %p168 = scmp.lt.s32.totalorder %s167, 63
        %s169 = scalar_select %p168, %s167, 63
        %s170 = smul.addr %s169, 4
        %s171 = scalar_lea.vmem %s3, %s170
        %s172 = smul.u32 32, %s10
      $region32: #{resnet_forward.15} parent=23 // pred_fallthru
        _
    $region24: #{resnet_forward.15} parent=5 // pred_fallthru
      _
    %p173 = scmp.le.s32.totalorder 1, %s10
    %p174 = scmp.lt.s32.totalorder %s10, 3
    %p175 = pnand %p173, %p174
    %p176 = pneg %p175
    // Predicated region
    $region33: #{resnet_forward.15} parent=5 // pred_check
      _
    $region34: #{resnet_forward.15} parent=5 // pred_check_branch
      %178 = sbr.rel (%p175) target = $region36
    $region35: #{resnet_forward.15} parent=5 // pred_region
      %s179 = ssub.s32 %s10, 1
      %s180 = smul.u32 32, %s15
      %p181 = scmp.lt.s32.totalorder %s180, 63
      %s182 = scalar_select %p181, %s180, 63
      %s183 = smul.addr %s182, 4
      %s184 = scalar_lea.vmem %s0, %s183
      %p185 = pneg %p36
      %p186 = pneg %p33
      %p187 = pneg %p57
      %p188 = pneg %p54
      %p189 = pneg %p78
      %p190 = pneg %p75
      %s191 = smul.u32 32, %s15
      %p192 = scmp.lt.s32.totalorder %s191, 63
      %s193 = scalar_select %p192, %s191, 63
      %s194 = smul.addr %s193, 4
      %s195 = scalar_lea.vmem %s3, %s194
      %p196 = pneg %p104
      %p197 = pneg %p101
      %p198 = pneg %p130
      %p199 = pneg %p127
      %s200 = smul.u32 32, %s15
      %p201 = scmp.lt.s32.totalorder %s200, 63
      %s202 = scalar_select %p201, %s200, 63
      %s203 = smul.addr %s202, 4
      %s204 = scalar_lea.vmem %s4, %s203
      %s205 = smul.u32 32, %s15
      %p206 = scmp.lt.s32.totalorder %s205, 63
      %s207 = scalar_select %p206, %s205, 63
      %s208 = smul.addr %s207, 4
      %s209 = scalar_lea.vmem %s0, %s208
      %s210 = smul.u32 32, %s15
      %s211 = smul.u32 32, %s15
      %p212 = scmp.lt.s32.totalorder %s211, 63
      %s213 = scalar_select %p212, %s211, 63
      %s214 = smul.addr %s213, 4
      %s215 = scalar_lea.vmem %s3, %s214
      %s216 = smul.u32 32, %s15
      %s217 = smul.u32 32, %s15
      %p218 = scmp.lt.s32.totalorder %s217, 63
      %s219 = scalar_select %p218, %s217, 63
      %s220 = smul.addr %s219, 4
      %s221 = scalar_lea.vmem %s4, %s220
      %s222 = smul.u32 32, %s15
      %v224 = vld [vmem:[%s209] sm:$0xf]
      %v225 = vld [vmem:[%s209 + $0x4] sm:$0xf]
      %v226 = vld [vmem:[%s209 + $0x8] sm:$0xf]
      %v227 = vld [vmem:[%s209 + $0xc] sm:$0xf]
      %v228 = vld [vmem:[%s209 + $0x10] sm:$0xf]
      %v229 = vld [vmem:[%s209 + $0x14] sm:$0xf]
      %v230 = vld [vmem:[%s209 + $0x18] sm:$0xf]
      %v231 = vld [vmem:[%s209 + $0x1c] sm:$0xf]
      %v232 = vld [vmem:[%s209 + $0x20] sm:$0xf]
      %v233 = vld [vmem:[%s209 + $0x24] sm:$0xf]
      %v234 = vld [vmem:[%s209 + $0x28] sm:$0xf]
      %v235 = vld [vmem:[%s209 + $0x2c] sm:$0xf]
      %v236 = vld [vmem:[%s209 + $0x30] sm:$0xf]
      %v237 = vld [vmem:[%s209 + $0x34] sm:$0xf]
      %v238 = vld [vmem:[%s209 + $0x38] sm:$0xf]
      %v239 = vld [vmem:[%s209 + $0x3c] sm:$0xf]
      %v240 = vld [vmem:[%s209 + $0x40] sm:$0xf]
      %v241 = vld [vmem:[%s209 + $0x44] sm:$0xf]
      %v242 = vld [vmem:[%s209 + $0x48] sm:$0xf]
      %v243 = vld [vmem:[%s209 + $0x4c] sm:$0xf]
      %v244 = vld [vmem:[%s209 + $0x50] sm:$0xf]
      %v245 = vld [vmem:[%s209 + $0x54] sm:$0xf]
      %v246 = vld [vmem:[%s209 + $0x58] sm:$0xf]
      %v247 = vld [vmem:[%s209 + $0x5c] sm:$0xf]
      %v248 = vld [vmem:[%s209 + $0x60] sm:$0xf]
      %v249 = vld [vmem:[%s209 + $0x64] sm:$0xf]
      %v250 = vld [vmem:[%s209 + $0x68] sm:$0xf]
      %v251 = vld [vmem:[%s209 + $0x6c] sm:$0xf]
      %v252 = vld [vmem:[%s209 + $0x70] sm:$0xf]
      %v253 = vld [vmem:[%s209 + $0x74] sm:$0xf]
      %v254 = vld [vmem:[%s209 + $0x78] sm:$0xf]
      %v255 = vld [vmem:[%s209 + $0x7c] sm:$0xf]
      %v256 = vld [vmem:[%s1] sm:$0xf]
      %v257 = vld [vmem:[%s1 + $0x4] sm:$0xf]
      %v258 = vld [vmem:[%s1 + $0x8] sm:$0xf]
      %v259 = vld [vmem:[%s1 + $0xc] sm:$0xf]
      %v260 = vld [vmem:[%s1 + $0x10] sm:$0xf]
      %v261 = vld [vmem:[%s1 + $0x14] sm:$0xf]
      %v262 = vld [vmem:[%s1 + $0x18] sm:$0xf]
      %v263 = vld [vmem:[%s1 + $0x1c] sm:$0xf]
      %v264 = vld [vmem:[%s1 + $0x20] sm:$0xf]
      %v265 = vld [vmem:[%s2] sm:$0x1]
      %v267 = vperm.slane %v265, 0
      %v301 = vunpack.c.l.b16 %v224
      %v302 = vunpack.c.l.b16 %v225
      %v303 = vunpack.c.l.b16 %v226
      %v304 = vunpack.c.l.b16 %v227
      %v305 = vunpack.c.l.b16 %v228
      %v306 = vunpack.c.l.b16 %v229
      %v307 = vunpack.c.l.b16 %v230
      %v308 = vunpack.c.l.b16 %v231
      %v309 = vunpack.c.l.b16 %v232
      %v310 = vunpack.c.l.b16 %v233
      %v311 = vunpack.c.l.b16 %v234
      %v312 = vunpack.c.l.b16 %v235
      %v313 = vunpack.c.l.b16 %v236
      %v314 = vunpack.c.l.b16 %v237
      %v315 = vunpack.c.l.b16 %v238
      %v316 = vunpack.c.l.b16 %v239
      %v317 = vunpack.c.l.b16 %v240
      %v318 = vunpack.c.l.b16 %v241
      %v319 = vunpack.c.l.b16 %v242
      %v320 = vunpack.c.l.b16 %v243
      %v321 = vunpack.c.l.b16 %v244
      %v322 = vunpack.c.l.b16 %v245
      %v323 = vunpack.c.l.b16 %v246
      %v324 = vunpack.c.l.b16 %v247
      %v325 = vunpack.c.l.b16 %v248
      %v326 = vunpack.c.l.b16 %v249
      %v327 = vunpack.c.l.b16 %v250
      %v328 = vunpack.c.l.b16 %v251
      %v329 = vunpack.c.l.b16 %v252
      %v330 = vunpack.c.l.b16 %v253
      %v331 = vunpack.c.l.b16 %v254
      %v332 = vunpack.c.l.b16 %v255
      %v333 = vpack.c.b16 %v302, %v301
      %v334 = vpack.c.b16 %v304, %v303
      %v335 = vpack.c.b16 %v306, %v305
      %v336 = vpack.c.b16 %v308, %v307
      %v337 = vpack.c.b16 %v310, %v309
      %v338 = vpack.c.b16 %v312, %v311
      %v339 = vpack.c.b16 %v314, %v313
      %v340 = vpack.c.b16 %v316, %v315
      %v341 = vpack.c.b16 %v318, %v317
      %v342 = vpack.c.b16 %v320, %v319
      %v343 = vpack.c.b16 %v322, %v321
      %v344 = vpack.c.b16 %v324, %v323
      %v345 = vpack.c.b16 %v326, %v325
      %v346 = vpack.c.b16 %v328, %v327
      %v347 = vpack.c.b16 %v330, %v329
      %v348 = vpack.c.b16 %v332, %v331
      %v358 = vunpack.c.l.b16 %v256
      %v359 = vunpack.c.l.b16 %v257
      %v360 = vunpack.c.l.b16 %v258
      %v361 = vunpack.c.l.b16 %v259
      %v362 = vunpack.c.l.b16 %v260
      %v363 = vunpack.c.l.b16 %v261
      %v364 = vunpack.c.l.b16 %v262
      %v365 = vunpack.c.l.b16 %v263
      %v366 = vunpack.c.l.b16 %v264
      %v367 = vpack.c.b16 %v359, %v358
      %v368 = vpack.c.b16 %v361, %v360
      %v369 = vpack.c.b16 %v363, %v362
      %v370 = vpack.c.b16 %v365, %v364
      %v371 = vpack.c.b16 %v366, %v366
      %vm376 = vcmask 588800
      %v378 = vsel %vm376, %v333, 0
      %v381 = vsel %vm376, %v334, 0
      %v384 = vsel %vm376, %v335, 0
      %v387 = vsel %vm376, %v336, 0
      %v390 = vsel %vm376, %v337, 0
      %v393 = vsel %vm376, %v338, 0
      %v396 = vsel %vm376, %v339, 0
      %v399 = vsel %vm376, %v340, 0
      %v402 = vsel %vm376, %v341, 0
      %v405 = vsel %vm376, %v342, 0
      %v408 = vsel %vm376, %v343, 0
      %v411 = vsel %vm376, %v344, 0
      %v414 = vsel %vm376, %v345, 0
      %v417 = vsel %vm376, %v346, 0
      %v420 = vsel %vm376, %v347, 0
      %v423 = vsel %vm376, %v348, 0
      %vm425 = vcmask 1043456
      %v427 = vsel %vm425, %v371, 0
      %429 = vmatpush.bf16.msra.mxu0 0
      %430 = vmatpush.bf16.msra.mxu0 0
      %431 = vmatpush.bf16.msra.mxu0 0
      %432 = vmatpush.bf16.msra.mxu0 %v427
      %433 = vmatpush.bf16.msra.mxu0 %v370
      %434 = vmatpush.bf16.msra.mxu0 %v369
      %435 = vmatpush.bf16.msra.mxu0 %v368
      %436 = vmatpush.bf16.msra.mxu0 %v367
      %437 = vmatmul.bf16.gmra.mxu0 %v378
      %v438 = vpop.f32.mrf.mxu0
      %v439 = vadd.f32 %v267, %v438
      %v440 = vpop.f32.mrf.mxu0
      %v441 = vadd.f32 %v267, %v440
      %442 = vmatmul.bf16.gmra.mxu0 %v381
      %v443 = vpop.f32.mrf.mxu0
      %v444 = vadd.f32 %v267, %v443
      %v445 = vpop.f32.mrf.mxu0
      %v446 = vadd.f32 %v267, %v445
      %447 = vmatmul.bf16.gmra.mxu0 %v384
      %v448 = vpop.f32.mrf.mxu0
      %v449 = vadd.f32 %v267, %v448
      %v450 = vpop.f32.mrf.mxu0
      %v451 = vadd.f32 %v267, %v450
      %452 = vmatmul.bf16.gmra.mxu0 %v387
      %v453 = vpop.f32.mrf.mxu0
      %v454 = vadd.f32 %v267, %v453
      %v455 = vpop.f32.mrf.mxu0
      %v456 = vadd.f32 %v267, %v455
      %457 = vmatmul.bf16.gmra.mxu0 %v390
      %v458 = vpop.f32.mrf.mxu0
      %v459 = vadd.f32 %v267, %v458
      %v460 = vpop.f32.mrf.mxu0
      %v461 = vadd.f32 %v267, %v460
      %462 = vmatmul.bf16.gmra.mxu0 %v393
      %v463 = vpop.f32.mrf.mxu0
      %v464 = vadd.f32 %v267, %v463
      %v465 = vpop.f32.mrf.mxu0
      %v466 = vadd.f32 %v267, %v465
      %467 = vmatmul.bf16.gmra.mxu0 %v396
      %v468 = vpop.f32.mrf.mxu0
      %v469 = vadd.f32 %v267, %v468
      %v470 = vpop.f32.mrf.mxu0
      %v471 = vadd.f32 %v267, %v470
      %472 = vmatmul.bf16.gmra.mxu0 %v399
      %v473 = vpop.f32.mrf.mxu0
      %v474 = vadd.f32 %v267, %v473
      %v475 = vpop.f32.mrf.mxu0
      %v476 = vadd.f32 %v267, %v475
      %477 = vmatmul.bf16.gmra.mxu0 %v402
      %v478 = vpop.f32.mrf.mxu0
      %v479 = vadd.f32 %v267, %v478
      %v480 = vpop.f32.mrf.mxu0
      %v481 = vadd.f32 %v267, %v480
      %482 = vmatmul.bf16.gmra.mxu0 %v405
      %v483 = vpop.f32.mrf.mxu0
      %v484 = vadd.f32 %v267, %v483
      %v485 = vpop.f32.mrf.mxu0
      %v486 = vadd.f32 %v267, %v485
      %487 = vmatmul.bf16.gmra.mxu0 %v408
      %v488 = vpop.f32.mrf.mxu0
      %v489 = vadd.f32 %v267, %v488
      %v490 = vpop.f32.mrf.mxu0
      %v491 = vadd.f32 %v267, %v490
      %492 = vmatmul.bf16.gmra.mxu0 %v411
      %v493 = vpop.f32.mrf.mxu0
      %v494 = vadd.f32 %v267, %v493
      %v495 = vpop.f32.mrf.mxu0
      %v496 = vadd.f32 %v267, %v495
      %497 = vmatmul.bf16.gmra.mxu0 %v414
      %v498 = vpop.f32.mrf.mxu0
      %v499 = vadd.f32 %v267, %v498
      %v500 = vpop.f32.mrf.mxu0
      %v501 = vadd.f32 %v267, %v500
      %502 = vmatmul.bf16.gmra.mxu0 %v417
      %v503 = vpop.f32.mrf.mxu0
      %v504 = vadd.f32 %v267, %v503
      %v505 = vpop.f32.mrf.mxu0
      %v506 = vadd.f32 %v267, %v505
      %507 = vmatmul.bf16.gmra.mxu0 %v420
      %v508 = vpop.f32.mrf.mxu0
      %v509 = vadd.f32 %v267, %v508
      %v510 = vpop.f32.mrf.mxu0
      %v511 = vadd.f32 %v267, %v510
      %512 = vmatmul.bf16.gmra.mxu0 %v423
      %v513 = vpop.f32.mrf.mxu0
      %v514 = vadd.f32 %v267, %v513
      %v515 = vpop.f32.mrf.mxu0
      %v516 = vadd.f32 %v267, %v515
      %517 = vdwg.mxu0
      %v518 = vld [vmem:[%s215] sm:$0xf]
      %v519 = vld [vmem:[%s215 + $0x4] sm:$0xf]
      %v520 = vld [vmem:[%s215 + $0x8] sm:$0xf]
      %v521 = vld [vmem:[%s215 + $0xc] sm:$0xf]
      %v522 = vld [vmem:[%s215 + $0x10] sm:$0xf]
      %v523 = vld [vmem:[%s215 + $0x14] sm:$0xf]
      %v524 = vld [vmem:[%s215 + $0x18] sm:$0xf]
      %v525 = vld [vmem:[%s215 + $0x1c] sm:$0xf]
      %v526 = vld [vmem:[%s215 + $0x20] sm:$0xf]
      %v527 = vld [vmem:[%s215 + $0x24] sm:$0xf]
      %v528 = vld [vmem:[%s215 + $0x28] sm:$0xf]
      %v529 = vld [vmem:[%s215 + $0x2c] sm:$0xf]
      %v530 = vld [vmem:[%s215 + $0x30] sm:$0xf]
      %v531 = vld [vmem:[%s215 + $0x34] sm:$0xf]
      %v532 = vld [vmem:[%s215 + $0x38] sm:$0xf]
      %v533 = vld [vmem:[%s215 + $0x3c] sm:$0xf]
      %v534 = vld [vmem:[%s215 + $0x40] sm:$0xf]
      %v535 = vld [vmem:[%s215 + $0x44] sm:$0xf]
      %v536 = vld [vmem:[%s215 + $0x48] sm:$0xf]
      %v537 = vld [vmem:[%s215 + $0x4c] sm:$0xf]
      %v538 = vld [vmem:[%s215 + $0x50] sm:$0xf]
      %v539 = vld [vmem:[%s215 + $0x54] sm:$0xf]
      %v540 = vld [vmem:[%s215 + $0x58] sm:$0xf]
      %v541 = vld [vmem:[%s215 + $0x5c] sm:$0xf]
      %v542 = vld [vmem:[%s215 + $0x60] sm:$0xf]
      %v543 = vld [vmem:[%s215 + $0x64] sm:$0xf]
      %v544 = vld [vmem:[%s215 + $0x68] sm:$0xf]
      %v545 = vld [vmem:[%s215 + $0x6c] sm:$0xf]
      %v546 = vld [vmem:[%s215 + $0x70] sm:$0xf]
      %v547 = vld [vmem:[%s215 + $0x74] sm:$0xf]
      %v548 = vld [vmem:[%s215 + $0x78] sm:$0xf]
      %v549 = vld [vmem:[%s215 + $0x7c] sm:$0xf]
      %v550 = vunpack.c.l.bf16 %v518
      %v551 = vunpack.c.l.bf16 %v519
      %v552 = vunpack.c.l.bf16 %v520
      %v553 = vunpack.c.l.bf16 %v521
      %v554 = vunpack.c.l.bf16 %v522
      %v555 = vunpack.c.l.bf16 %v523
      %v556 = vunpack.c.l.bf16 %v524
      %v557 = vunpack.c.l.bf16 %v525
      %v558 = vunpack.c.l.bf16 %v526
      %v559 = vunpack.c.l.bf16 %v527
      %v560 = vunpack.c.l.bf16 %v528
      %v561 = vunpack.c.l.bf16 %v529
      %v562 = vunpack.c.l.bf16 %v530
      %v563 = vunpack.c.l.bf16 %v531
      %v564 = vunpack.c.l.bf16 %v532
      %v565 = vunpack.c.l.bf16 %v533
      %v566 = vunpack.c.l.bf16 %v534
      %v567 = vunpack.c.l.bf16 %v535
      %v568 = vunpack.c.l.bf16 %v536
      %v569 = vunpack.c.l.bf16 %v537
      %v570 = vunpack.c.l.bf16 %v538
      %v571 = vunpack.c.l.bf16 %v539
      %v572 = vunpack.c.l.bf16 %v540
      %v573 = vunpack.c.l.bf16 %v541
      %v574 = vunpack.c.l.bf16 %v542
      %v575 = vunpack.c.l.bf16 %v543
      %v576 = vunpack.c.l.bf16 %v544
      %v577 = vunpack.c.l.bf16 %v545
      %v578 = vunpack.c.l.bf16 %v546
      %v579 = vunpack.c.l.bf16 %v547
      %v580 = vunpack.c.l.bf16 %v548
      %v581 = vunpack.c.l.bf16 %v549
      %v582 = vadd.f32 %v439, %v550
      %v583 = vadd.f32 %v441, %v551
      %v584 = vadd.f32 %v444, %v552
      %v585 = vadd.f32 %v446, %v553
      %v586 = vadd.f32 %v449, %v554
      %v587 = vadd.f32 %v451, %v555
      %v588 = vadd.f32 %v454, %v556
      %v589 = vadd.f32 %v456, %v557
      %v590 = vadd.f32 %v459, %v558
      %v591 = vadd.f32 %v461, %v559
      %v592 = vadd.f32 %v464, %v560
      %v593 = vadd.f32 %v466, %v561
      %v594 = vadd.f32 %v469, %v562
      %v595 = vadd.f32 %v471, %v563
      %v596 = vadd.f32 %v474, %v564
      %v597 = vadd.f32 %v476, %v565
      %v598 = vadd.f32 %v479, %v566
      %v599 = vadd.f32 %v481, %v567
      %v600 = vadd.f32 %v484, %v568
      %v601 = vadd.f32 %v486, %v569
      %v602 = vadd.f32 %v489, %v570
      %v603 = vadd.f32 %v491, %v571
      %v604 = vadd.f32 %v494, %v572
      %v605 = vadd.f32 %v496, %v573
      %v606 = vadd.f32 %v499, %v574
      %v607 = vadd.f32 %v501, %v575
      %v608 = vadd.f32 %v504, %v576
      %v609 = vadd.f32 %v506, %v577
      %v610 = vadd.f32 %v509, %v578
      %v611 = vadd.f32 %v511, %v579
      %v612 = vadd.f32 %v514, %v580
      %v613 = vadd.f32 %v516, %v581
      %v614 = vmax.f32 %v582, 0.0
      %v615 = vmax.f32 %v583, 0.0
      %v616 = vmax.f32 %v584, 0.0
      %v617 = vmax.f32 %v585, 0.0
      %v618 = vmax.f32 %v586, 0.0
      %v619 = vmax.f32 %v587, 0.0
      %v620 = vmax.f32 %v588, 0.0
      %v621 = vmax.f32 %v589, 0.0
      %v622 = vmax.f32 %v590, 0.0
      %v623 = vmax.f32 %v591, 0.0
      %v624 = vmax.f32 %v592, 0.0
      %v625 = vmax.f32 %v593, 0.0
      %v626 = vmax.f32 %v594, 0.0
      %v627 = vmax.f32 %v595, 0.0
      %v628 = vmax.f32 %v596, 0.0
      %v629 = vmax.f32 %v597, 0.0
      %v630 = vmax.f32 %v598, 0.0
      %v631 = vmax.f32 %v599, 0.0
      %v632 = vmax.f32 %v600, 0.0
      %v633 = vmax.f32 %v601, 0.0
      %v634 = vmax.f32 %v602, 0.0
      %v635 = vmax.f32 %v603, 0.0
      %v636 = vmax.f32 %v604, 0.0
      %v637 = vmax.f32 %v605, 0.0
      %v638 = vmax.f32 %v606, 0.0
      %v639 = vmax.f32 %v607, 0.0
      %v640 = vmax.f32 %v608, 0.0
      %v641 = vmax.f32 %v609, 0.0
      %v642 = vmax.f32 %v610, 0.0
      %v643 = vmax.f32 %v611, 0.0
      %v644 = vmax.f32 %v612, 0.0
      %v645 = vmax.f32 %v613, 0.0
      %v646 = vpack.c.bf16 %v614, %v614
      %v647 = vpack.c.bf16 %v615, %v615
      %v648 = vpack.c.bf16 %v616, %v616
      %v649 = vpack.c.bf16 %v617, %v617
      %v650 = vpack.c.bf16 %v618, %v618
      %v651 = vpack.c.bf16 %v619, %v619
      %v652 = vpack.c.bf16 %v620, %v620
      %v653 = vpack.c.bf16 %v621, %v621
      %v654 = vpack.c.bf16 %v622, %v622
      %v655 = vpack.c.bf16 %v623, %v623
      %v656 = vpack.c.bf16 %v624, %v624
      %v657 = vpack.c.bf16 %v625, %v625
      %v658 = vpack.c.bf16 %v626, %v626
      %v659 = vpack.c.bf16 %v627, %v627
      %v660 = vpack.c.bf16 %v628, %v628
      %v661 = vpack.c.bf16 %v629, %v629
      %v662 = vpack.c.bf16 %v630, %v630
      %v663 = vpack.c.bf16 %v631, %v631
      %v664 = vpack.c.bf16 %v632, %v632
      %v665 = vpack.c.bf16 %v633, %v633
      %v666 = vpack.c.bf16 %v634, %v634
      %v667 = vpack.c.bf16 %v635, %v635
      %v668 = vpack.c.bf16 %v636, %v636
      %v669 = vpack.c.bf16 %v637, %v637
      %v670 = vpack.c.bf16 %v638, %v638
      %v671 = vpack.c.bf16 %v639, %v639
      %v672 = vpack.c.bf16 %v640, %v640
      %v673 = vpack.c.bf16 %v641, %v641
      %v674 = vpack.c.bf16 %v642, %v642
      %v675 = vpack.c.bf16 %v643, %v643
      %v676 = vpack.c.bf16 %v644, %v644
      %v677 = vpack.c.bf16 %v645, %v645
      %678 = vst [vmem:[%s221] sm:$0xf] %v646
      %679 = vst [vmem:[%s221 + $0x4] sm:$0xf] %v647
      %680 = vst [vmem:[%s221 + $0x8] sm:$0xf] %v648
      %681 = vst [vmem:[%s221 + $0xc] sm:$0xf] %v649
      %682 = vst [vmem:[%s221 + $0x10] sm:$0xf] %v650
      %683 = vst [vmem:[%s221 + $0x14] sm:$0xf] %v651
      %684 = vst [vmem:[%s221 + $0x18] sm:$0xf] %v652
      %685 = vst [vmem:[%s221 + $0x1c] sm:$0xf] %v653
      %686 = vst [vmem:[%s221 + $0x20] sm:$0xf] %v654
      %687 = vst [vmem:[%s221 + $0x24] sm:$0xf] %v655
      %688 = vst [vmem:[%s221 + $0x28] sm:$0xf] %v656
      %689 = vst [vmem:[%s221 + $0x2c] sm:$0xf] %v657
      %690 = vst [vmem:[%s221 + $0x30] sm:$0xf] %v658
      %691 = vst [vmem:[%s221 + $0x34] sm:$0xf] %v659
      %692 = vst [vmem:[%s221 + $0x38] sm:$0xf] %v660
      %693 = vst [vmem:[%s221 + $0x3c] sm:$0xf] %v661
      %694 = vst [vmem:[%s221 + $0x40] sm:$0xf] %v662
      %695 = vst [vmem:[%s221 + $0x44] sm:$0xf] %v663
      %696 = vst [vmem:[%s221 + $0x48] sm:$0xf] %v664
      %697 = vst [vmem:[%s221 + $0x4c] sm:$0xf] %v665
      %698 = vst [vmem:[%s221 + $0x50] sm:$0xf] %v666
      %699 = vst [vmem:[%s221 + $0x54] sm:$0xf] %v667
      %700 = vst [vmem:[%s221 + $0x58] sm:$0xf] %v668
      %701 = vst [vmem:[%s221 + $0x5c] sm:$0xf] %v669
      %702 = vst [vmem:[%s221 + $0x60] sm:$0xf] %v670
      %703 = vst [vmem:[%s221 + $0x64] sm:$0xf] %v671
      %704 = vst [vmem:[%s221 + $0x68] sm:$0xf] %v672
      %705 = vst [vmem:[%s221 + $0x6c] sm:$0xf] %v673
      %706 = vst [vmem:[%s221 + $0x70] sm:$0xf] %v674
      %707 = vst [vmem:[%s221 + $0x74] sm:$0xf] %v675
      %708 = vst [vmem:[%s221 + $0x78] sm:$0xf] %v676
      %709 = vst [vmem:[%s221 + $0x7c] sm:$0xf] %v677
      %s710 = smul.u32 32, %s15
      %p711 = scmp.lt.s32.totalorder %s710, 63
      %s712 = scalar_select %p711, %s710, 63
      %s713 = smul.addr %s712, 4
      %s714 = scalar_lea.vmem %s4, %s713
      // Predicated region
      $region37: #{resnet_forward.15} parent=35 // pred_check
        %p715 = pneg %p127
      $region38: #{resnet_forward.15} parent=35 // pred_check_branch
        %717 = sbr.rel (%p715) target = $region40
      $region39: #{resnet_forward.15} parent=35 // pred_region
        %s718 = smul.u32 32, %s15
      $region40: #{resnet_forward.15} parent=35 // pred_fallthru
        _
    $region36: #{resnet_forward.15} parent=5 // pred_fallthru
      _
    %p719 = scmp.le.s32.totalorder 2, %s10
    // Predicated region
    $region41: #{resnet_forward.15} parent=5 // pred_check
      %p720 = pneg %p719
    $region42: #{resnet_forward.15} parent=5 // pred_check_branch
      %722 = sbr.rel (%p720) target = $region44
    $region43: #{resnet_forward.15} parent=5 // pred_region
      %s723 = ssub.s32 %s10, 2
      // Predicated region
      $region45: #{resnet_forward.15} parent=43 // pred_check
        %p724 = pneg %p133
      $region46: #{resnet_forward.15} parent=43 // pred_check_branch
        %726 = sbr.rel (%p724) target = $region48
      $region47: #{resnet_forward.15} parent=43 // pred_region
        %s727 = smul.u32 32, %s16
        %p728 = scmp.lt.s32.totalorder %s727, 63
        %s729 = scalar_select %p728, %s727, 63
        %s730 = smul.addr %s729, 4
        %s731 = scalar_lea.vmem %s4, %s730
      $region48: #{resnet_forward.15} parent=43 // pred_fallthru
        _
    $region44: #{resnet_forward.15} parent=5 // pred_fallthru
      _
  $region6: #{resnet_forward.15} parent=0 // loop_footer
    %s14 = sadd.s32 1, %s10
  $region7: #{resnet_forward.15} parent=0 // loop_footer_branch
    %9 = sbr.rel target = $region3
  $region8: #{resnet_forward.15} parent=0 // loop_exit
    _

// kernel: resnet_forward.16
$region0: #{resnet_forward.16}
  #allocation0 [shape = 'u32[]', space=smem, size = 0x4, offset = 0x4, fixed_abs, tag = 'smem constant byte address 0x4 - core index']
  #allocation1 [shape = 'u32[72,128]{1,0:T(1,128)}', space=vmem, size = 0x9000, scoped, tag = 'internal scratch']
  %s0 = inlined_call_operand.vmem [shape: bf16[128,72], index: 0, kind: input, shape index: {}]
  %s1 = inlined_call_operand.vmem [shape: bf16[72,128], index: 1, kind: input, shape index: {}]
  %s2 = inlined_call_operand.vmem [shape: f32[1,128], index: 2, kind: input, shape index: {}]
  %s3 = inlined_call_operand.vmem [shape: bf16[128,128], index: 3, kind: output, shape index: {}]
  %s4 = sld [smem:[#allocation0]]
  $region45: #{resnet_forward.16} parent=0
    _
  %s6 = ssub.s32 1, %s4
  %s7 = scalar_select 0, %s6, %s4
  loop: start=0, step=1, limit=4
  $region2: #{resnet_forward.16} parent=0 // loop_pre_header
    _
  $region3: #{resnet_forward.16} parent=0 // loop_header
    %s9 = sphi 0, %s13
    %p10 = scmp.ge.s32.totalorder %s9, 4
    %s19 = sphi 0, %s21
    %s22 = sphi 0, %s19
    %s23 = sphi 0, %s22
    %s39 = sphi 0, %s23
    %s43 = sphi 0, %s43
    %s45 = sphi 0, %s43
    %s46 = sphi 0, %s45
    %s60 = sphi 0, %s46
    %s64 = sphi 0, %s64
    %s66 = sphi 0, %s64
    %s67 = sphi 0, %s66
    %s81 = sphi 0, %s67
    %s87 = sphi 0, %s89
    %s90 = sphi 0, %s87
    %s91 = sphi 0, %s90
    %s107 = sphi 0, %s91
  $region4: #{resnet_forward.16} parent=0 // loop_header_branch
    %12 = sbr.rel (%p10) target = $region8
  $region5: #{resnet_forward.16} parent=0 // loop_body
    %s14 = ssub.s32 %s9, 1
    %s15 = ssub.s32 %s9, 2
    %s16 = sadd.s32 %s9, 1
    %s17 = ssub.s32 %s9, %s16
    %p18 = scmp.eq.s32.totalorder %s17, 0
    %s20 = sadd.s32 %s19, 1
    %s21 = scalar_select %p18, %s19, %s20
    %p24 = pneg %p18
    %p25 = scmp.eq.s32.totalorder %s9, 1
    %p26 = por %p24, %p25
    %p27 = scmp.ne.s32.totalorder %s19, %s22
    %p28 = scmp.eq.s32.totalorder %s9, 0
    %p29 = por %p27, %p28
    %p30 = scmp.ne.s32.totalorder %s19, %s22
    %p31 = scmp.eq.s32.totalorder %s14, 1
    %p32 = por %p30, %p31
    %p33 = scmp.ne.s32.totalorder %s22, %s23
    %p34 = scmp.eq.s32.totalorder %s14, 0
    %p35 = por %p33, %p34
    %p36 = scmp.ne.s32.totalorder %s22, %s23
    %p37 = scmp.eq.s32.totalorder %s15, 1
    %p38 = por %p36, %p37
    %p40 = scmp.ne.s32.totalorder %s23, %s39
    %p41 = scmp.eq.s32.totalorder %s15, 0
    %p42 = por %p40, %p41
    %s44 = sadd.s32 %s43, 1
    %p47 = scmp.eq.s32.totalorder %s9, 1
    %p48 = scmp.ne.s32.totalorder %s43, %s45
    %p49 = scmp.eq.s32.totalorder %s9, 0
    %p50 = por %p48, %p49
    %p51 = scmp.ne.s32.totalorder %s43, %s45
    %p52 = scmp.eq.s32.totalorder %s14, 1
    %p53 = por %p51, %p52
    %p54 = scmp.ne.s32.totalorder %s45, %s46
    %p55 = scmp.eq.s32.totalorder %s14, 0
    %p56 = por %p54, %p55
    %p57 = scmp.ne.s32.totalorder %s45, %s46
    %p58 = scmp.eq.s32.totalorder %s15, 1
    %p59 = por %p57, %p58
    %p61 = scmp.ne.s32.totalorder %s46, %s60
    %p62 = scmp.eq.s32.totalorder %s15, 0
    %p63 = por %p61, %p62
    %s65 = sadd.s32 %s64, 1
    %p68 = scmp.eq.s32.totalorder %s9, 1
    %p69 = scmp.ne.s32.totalorder %s64, %s66
    %p70 = scmp.eq.s32.totalorder %s9, 0
    %p71 = por %p69, %p70
    %p72 = scmp.ne.s32.totalorder %s64, %s66
    %p73 = scmp.eq.s32.totalorder %s14, 1
    %p74 = por %p72, %p73
    %p75 = scmp.ne.s32.totalorder %s66, %s67
    %p76 = scmp.eq.s32.totalorder %s14, 0
    %p77 = por %p75, %p76
    %p78 = scmp.ne.s32.totalorder %s66, %s67
    %p79 = scmp.eq.s32.totalorder %s15, 1
    %p80 = por %p78, %p79
    %p82 = scmp.ne.s32.totalorder %s67, %s81
    %p83 = scmp.eq.s32.totalorder %s15, 0
    %p84 = por %p82, %p83
    %s85 = ssub.s32 %s9, %s16
    %p86 = scmp.eq.s32.totalorder %s85, 0
    %s88 = sadd.s32 %s87, 1
    %s89 = scalar_select %p86, %s87, %s88
    %p92 = pneg %p86
    %p93 = scmp.eq.s32.totalorder %s9, 1
    %p94 = por %p92, %p93
    %p95 = scmp.ne.s32.totalorder %s87, %s90
    %p96 = scmp.eq.s32.totalorder %s9, 0
    %p97 = por %p95, %p96
    %p98 = scmp.ne.s32.totalorder %s87, %s90
    %p99 = scmp.eq.s32.totalorder %s14, 1
    %p100 = por %p98, %p99
    %p101 = scmp.ne.s32.totalorder %s90, %s91
    %p102 = scmp.eq.s32.totalorder %s14, 0
    %p103 = por %p101, %p102
    %p104 = scmp.ne.s32.totalorder %s90, %s91
    %p105 = scmp.eq.s32.totalorder %s15, 1
    %p106 = por %p104, %p105
    %p108 = scmp.ne.s32.totalorder %s91, %s107
    %p109 = scmp.eq.s32.totalorder %s15, 0
    %p110 = por %p108, %p109
    %p111 = scmp.le.s32.totalorder 1, %s9
    %p112 = scmp.lt.s32.totalorder %s9, 3
    %p113 = pnand %p111, %p112
    %p114 = pneg %p113
    // Predicated region
    $region9: #{resnet_forward.16} parent=5 // pred_check
      _
    $region10: #{resnet_forward.16} parent=5 // pred_check_branch
      %116 = sbr.rel (%p113) target = $region12
    $region11: #{resnet_forward.16} parent=5 // pred_region
      %s117 = ssub.s32 %s9, 1
      // Predicated region
      $region13: #{resnet_forward.16} parent=11 // pred_check
        %p118 = pneg %p56
      $region14: #{resnet_forward.16} parent=11 // pred_check_branch
        %120 = sbr.rel (%p118) target = $region16
      $region15: #{resnet_forward.16} parent=11 // pred_region
        _
      $region16: #{resnet_forward.16} parent=11 // pred_fallthru
        _
      // Predicated region
      $region17: #{resnet_forward.16} parent=11 // pred_check
        %p121 = pneg %p77
      $region18: #{resnet_forward.16} parent=11 // pred_check_branch
        %123 = sbr.rel (%p121) target = $region20
      $region19: #{resnet_forward.16} parent=11 // pred_region
        _
      $region20: #{resnet_forward.16} parent=11 // pred_fallthru
        _
    $region12: #{resnet_forward.16} parent=5 // pred_fallthru
      _
    %p124 = scmp.lt.s32.totalorder %s9, 2
    // Predicated region
    $region21: #{resnet_forward.16} parent=5 // pred_check
      %p125 = pneg %p124
    $region22: #{resnet_forward.16} parent=5 // pred_check_branch
      %127 = sbr.rel (%p125) target = $region24
    $region23: #{resnet_forward.16} parent=5 // pred_region
      // Predicated region
      $region25: #{resnet_forward.16} parent=23 // pred_check
        %p128 = pneg %p29
      $region26: #{resnet_forward.16} parent=23 // pred_check_branch
        %130 = sbr.rel (%p128) target = $region28
      $region27: #{resnet_forward.16} parent=23 // pred_region
        %s131 = smul.u32 8, %s9
        %p132 = scmp.lt.s32.totalorder %s131, 15
        %s133 = scalar_select %p132, %s131, 15
        %s134 = smul.addr %s133, 4
        %s135 = scalar_lea.vmem %s0, %s134
        %s136 = smul.u32 8, %s9
      $region28: #{resnet_forward.16} parent=23 // pred_fallthru
        _
    $region24: #{resnet_forward.16} parent=5 // pred_fallthru
      _
    %p137 = scmp.le.s32.totalorder 1, %s9
    %p138 = scmp.lt.s32.totalorder %s9, 3
    %p139 = pnand %p137, %p138
    %p140 = pneg %p139
    // Predicated region
    $region29: #{resnet_forward.16} parent=5 // pred_check
      _
    $region30: #{resnet_forward.16} parent=5 // pred_check_branch
      %142 = sbr.rel (%p139) target = $region32
    $region31: #{resnet_forward.16} parent=5 // pred_region
      %s143 = ssub.s32 %s9, 1
      %s144 = smul.u32 8, %s14
      %p145 = scmp.lt.s32.totalorder %s144, 15
      %s146 = scalar_select %p145, %s144, 15
      %s147 = smul.addr %s146, 4
      %s148 = scalar_lea.vmem %s0, %s147
      %p149 = pneg %p35
      %p150 = pneg %p32
      %p151 = pneg %p56
      %p152 = pneg %p53
      %p153 = pneg %p77
      %p154 = pneg %p74
      %p155 = pneg %p103
      %p156 = pneg %p100
      %s157 = smul.u32 8, %s14
      %p158 = scmp.lt.s32.totalorder %s157, 15
      %s159 = scalar_select %p158, %s157, 15
      %s160 = smul.addr %s159, 4
      %s161 = scalar_lea.vmem %s3, %s160
      %s162 = smul.u32 8, %s14
      %p163 = scmp.lt.s32.totalorder %s162, 15
      %s164 = scalar_select %p163, %s162, 15
      %s165 = smul.addr %s164, 4
      %s166 = scalar_lea.vmem %s0, %s165
      %s167 = smul.u32 8, %s14
      %s168 = smul.u32 8, %s14
      %p169 = scmp.lt.s32.totalorder %s168, 15
      %s170 = scalar_select %p169, %s168, 15
      %s171 = smul.addr %s170, 4
      %s172 = scalar_lea.vmem %s3, %s171
      %s173 = smul.u32 8, %s14
      %v175 = vld [vmem:[%s166] sm:$0xf]
      %v176 = vld [vmem:[%s166 + $0x4] sm:$0xf]
      %v177 = vld [vmem:[%s166 + $0x8] sm:$0xf]
      %v178 = vld [vmem:[%s166 + $0xc] sm:$0xf]
      %v179 = vld [vmem:[%s166 + $0x10] sm:$0xf]
      %v180 = vld [vmem:[%s166 + $0x14] sm:$0xf]
      %v181 = vld [vmem:[%s166 + $0x18] sm:$0xf]
      %v182 = vld [vmem:[%s166 + $0x1c] sm:$0xf]
      %v183 = vld [vmem:[%s1] sm:$0xf]
      %v184 = vld [vmem:[%s1 + $0x4] sm:$0xf]
      %v185 = vld [vmem:[%s1 + $0x8] sm:$0xf]
      %v186 = vld [vmem:[%s1 + $0xc] sm:$0xf]
      %v187 = vld [vmem:[%s1 + $0x10] sm:$0xf]
      %v188 = vld [vmem:[%s1 + $0x14] sm:$0xf]
      %v189 = vld [vmem:[%s1 + $0x18] sm:$0xf]
      %v190 = vld [vmem:[%s1 + $0x1c] sm:$0xf]
      %v191 = vld [vmem:[%s1 + $0x20] sm:$0xf]
      %v192 = vld [vmem:[%s2] sm:$0x1]
      %v194 = vperm.slane %v192, 0
      %v204 = vunpack.c.l.b16 %v175
      %v205 = vunpack.c.l.b16 %v176
      %v206 = vunpack.c.l.b16 %v177
      %v207 = vunpack.c.l.b16 %v178
      %v208 = vunpack.c.l.b16 %v179
      %v209 = vunpack.c.l.b16 %v180
      %v210 = vunpack.c.l.b16 %v181
      %v211 = vunpack.c.l.b16 %v182
      %v212 = vpack.c.b16 %v205, %v204
      %v213 = vpack.c.b16 %v207, %v206
      %v214 = vpack.c.b16 %v209, %v208
      %v215 = vpack.c.b16 %v211, %v210
      %v225 = vunpack.c.l.b16 %v183
      %v226 = vunpack.c.l.b16 %v184
      %v227 = vunpack.c.l.b16 %v185
      %v228 = vunpack.c.l.b16 %v186
      %v229 = vunpack.c.l.b16 %v187
      %v230 = vunpack.c.l.b16 %v188
      %v231 = vunpack.c.l.b16 %v189
      %v232 = vunpack.c.l.b16 %v190
      %v233 = vunpack.c.l.b16 %v191
      %v234 = vpack.c.b16 %v226, %v225
      %v235 = vpack.c.b16 %v228, %v227
      %v236 = vpack.c.b16 %v230, %v229
      %v237 = vpack.c.b16 %v232, %v231
      %v238 = vpack.c.b16 %v233, %v233
      %vm243 = vcmask 588800
      %v245 = vsel %vm243, %v212, 0
      %v248 = vsel %vm243, %v213, 0
      %v251 = vsel %vm243, %v214, 0
      %v254 = vsel %vm243, %v215, 0
      %vm256 = vcmask 1043456
      %v258 = vsel %vm256, %v238, 0
      %260 = vmatpush.bf16.msra.mxu0 0
      %261 = vmatpush.bf16.msra.mxu0 0
      %262 = vmatpush.bf16.msra.mxu0 0
      %263 = vmatpush.bf16.msra.mxu0 %v258
      %264 = vmatpush.bf16.msra.mxu0 %v237
      %265 = vmatpush.bf16.msra.mxu0 %v236
      %266 = vmatpush.bf16.msra.mxu0 %v235
      %267 = vmatpush.bf16.msra.mxu0 %v234
      %268 = vmatmul.bf16.gmra.mxu0 %v245
      %v269 = vpop.f32.mrf.mxu0
      %v270 = vadd.f32 %v194, %v269
      %v271 = vpop.f32.mrf.mxu0
      %v272 = vadd.f32 %v194, %v271
      %273 = vmatmul.bf16.gmra.mxu0 %v248
      %v274 = vpop.f32.mrf.mxu0
      %v275 = vadd.f32 %v194, %v274
      %v276 = vpop.f32.mrf.mxu0
      %v277 = vadd.f32 %v194, %v276
      %278 = vmatmul.bf16.gmra.mxu0 %v251
      %v279 = vpop.f32.mrf.mxu0
      %v280 = vadd.f32 %v194, %v279
      %v281 = vpop.f32.mrf.mxu0
      %v282 = vadd.f32 %v194, %v281
      %283 = vmatmul.bf16.gmra.mxu0 %v254
      %v284 = vpop.f32.mrf.mxu0
      %v285 = vadd.f32 %v194, %v284
      %v286 = vpop.f32.mrf.mxu0
      %v287 = vadd.f32 %v194, %v286
      %288 = vdwg.mxu0
      %v289 = vmax.f32 %v270, 0.0
      %v290 = vmax.f32 %v272, 0.0
      %v291 = vmax.f32 %v275, 0.0
      %v292 = vmax.f32 %v277, 0.0
      %v293 = vmax.f32 %v280, 0.0
      %v294 = vmax.f32 %v282, 0.0
      %v295 = vmax.f32 %v285, 0.0
      %v296 = vmax.f32 %v287, 0.0
      %v297 = vpack.c.bf16 %v289, %v289
      %v298 = vpack.c.bf16 %v290, %v290
      %v299 = vpack.c.bf16 %v291, %v291
      %v300 = vpack.c.bf16 %v292, %v292
      %v301 = vpack.c.bf16 %v293, %v293
      %v302 = vpack.c.bf16 %v294, %v294
      %v303 = vpack.c.bf16 %v295, %v295
      %v304 = vpack.c.bf16 %v296, %v296
      %305 = vst [vmem:[%s172] sm:$0xf] %v297
      %306 = vst [vmem:[%s172 + $0x4] sm:$0xf] %v298
      %307 = vst [vmem:[%s172 + $0x8] sm:$0xf] %v299
      %308 = vst [vmem:[%s172 + $0xc] sm:$0xf] %v300
      %309 = vst [vmem:[%s172 + $0x10] sm:$0xf] %v301
      %310 = vst [vmem:[%s172 + $0x14] sm:$0xf] %v302
      %311 = vst [vmem:[%s172 + $0x18] sm:$0xf] %v303
      %312 = vst [vmem:[%s172 + $0x1c] sm:$0xf] %v304
      %s313 = smul.u32 8, %s14
      %p314 = scmp.lt.s32.totalorder %s313, 15
      %s315 = scalar_select %p314, %s313, 15
      %s316 = smul.addr %s315, 4
      %s317 = scalar_lea.vmem %s3, %s316
      // Predicated region
      $region33: #{resnet_forward.16} parent=31 // pred_check
        %p318 = pneg %p100
      $region34: #{resnet_forward.16} parent=31 // pred_check_branch
        %320 = sbr.rel (%p318) target = $region36
      $region35: #{resnet_forward.16} parent=31 // pred_region
        %s321 = smul.u32 8, %s14
      $region36: #{resnet_forward.16} parent=31 // pred_fallthru
        _
    $region32: #{resnet_forward.16} parent=5 // pred_fallthru
      _
    %p322 = scmp.le.s32.totalorder 2, %s9
    // Predicated region
    $region37: #{resnet_forward.16} parent=5 // pred_check
      %p323 = pneg %p322
    $region38: #{resnet_forward.16} parent=5 // pred_check_branch
      %325 = sbr.rel (%p323) target = $region40
    $region39: #{resnet_forward.16} parent=5 // pred_region
      %s326 = ssub.s32 %s9, 2
      // Predicated region
      $region41: #{resnet_forward.16} parent=39 // pred_check
        %p327 = pneg %p106
      $region42: #{resnet_forward.16} parent=39 // pred_check_branch
        %329 = sbr.rel (%p327) target = $region44
      $region43: #{resnet_forward.16} parent=39 // pred_region
        %s330 = smul.u32 8, %s15
        %p331 = scmp.lt.s32.totalorder %s330, 15
        %s332 = scalar_select %p331, %s330, 15
        %s333 = smul.addr %s332, 4
        %s334 = scalar_lea.vmem %s3, %s333
      $region44: #{resnet_forward.16} parent=39 // pred_fallthru
        _
    $region40: #{resnet_forward.16} parent=5 // pred_fallthru
      _
  $region6: #{resnet_forward.16} parent=0 // loop_footer
    %s13 = sadd.s32 1, %s9
  $region7: #{resnet_forward.16} parent=0 // loop_footer_branch
    %8 = sbr.rel target = $region3
  $region8: #{resnet_forward.16} parent=0 // loop_exit
    _

// kernel: resnet_forward.20
$region0: #{resnet_forward.20}
  #allocation0 [shape = 'u32[]', space=smem, size = 0x4, offset = 0x4, fixed_abs, tag = 'smem constant byte address 0x4 - core index']
  #allocation1 [shape = 'u32[72,128]{1,0:T(1,128)}', space=vmem, size = 0x9000, scoped, tag = 'internal scratch']
  %s0 = inlined_call_operand.vmem [shape: bf16[32,16], index: 0, kind: input, shape index: {}]
  %s1 = inlined_call_operand.vmem [shape: bf16[16,128], index: 1, kind: input, shape index: {}]
  %s2 = inlined_call_operand.vmem [shape: f32[1,128], index: 2, kind: input, shape index: {}]
  %s3 = inlined_call_operand.vmem [shape: bf16[32,128], index: 3, kind: output, shape index: {}]
  %s4 = sld [smem:[#allocation0]]
  $region45: #{resnet_forward.20} parent=0
    _
  %s6 = ssub.s32 1, %s4
  %s7 = scalar_select 0, %s6, %s4
  loop: start=0, step=1, limit=4
  $region2: #{resnet_forward.20} parent=0 // loop_pre_header
    _
  $region3: #{resnet_forward.20} parent=0 // loop_header
    %s9 = sphi 0, %s13
    %p10 = scmp.ge.s32.totalorder %s9, 4
    %s19 = sphi 0, %s21
    %s22 = sphi 0, %s19
    %s23 = sphi 0, %s22
    %s39 = sphi 0, %s23
    %s43 = sphi 0, %s43
    %s45 = sphi 0, %s43
    %s46 = sphi 0, %s45
    %s60 = sphi 0, %s46
    %s64 = sphi 0, %s64
    %s66 = sphi 0, %s64
    %s67 = sphi 0, %s66
    %s81 = sphi 0, %s67
    %s87 = sphi 0, %s89
    %s90 = sphi 0, %s87
    %s91 = sphi 0, %s90
    %s107 = sphi 0, %s91
  $region4: #{resnet_forward.20} parent=0 // loop_header_branch
    %12 = sbr.rel (%p10) target = $region8
  $region5: #{resnet_forward.20} parent=0 // loop_body
    %s14 = ssub.s32 %s9, 1
    %s15 = ssub.s32 %s9, 2
    %s16 = sadd.s32 %s9, 1
    %s17 = ssub.s32 %s9, %s16
    %p18 = scmp.eq.s32.totalorder %s17, 0
    %s20 = sadd.s32 %s19, 1
    %s21 = scalar_select %p18, %s19, %s20
    %p24 = pneg %p18
    %p25 = scmp.eq.s32.totalorder %s9, 1
    %p26 = por %p24, %p25
    %p27 = scmp.ne.s32.totalorder %s19, %s22
    %p28 = scmp.eq.s32.totalorder %s9, 0
    %p29 = por %p27, %p28
    %p30 = scmp.ne.s32.totalorder %s19, %s22
    %p31 = scmp.eq.s32.totalorder %s14, 1
    %p32 = por %p30, %p31
    %p33 = scmp.ne.s32.totalorder %s22, %s23
    %p34 = scmp.eq.s32.totalorder %s14, 0
    %p35 = por %p33, %p34
    %p36 = scmp.ne.s32.totalorder %s22, %s23
    %p37 = scmp.eq.s32.totalorder %s15, 1
    %p38 = por %p36, %p37
    %p40 = scmp.ne.s32.totalorder %s23, %s39
    %p41 = scmp.eq.s32.totalorder %s15, 0
    %p42 = por %p40, %p41
    %s44 = sadd.s32 %s43, 1
    %p47 = scmp.eq.s32.totalorder %s9, 1
    %p48 = scmp.ne.s32.totalorder %s43, %s45
    %p49 = scmp.eq.s32.totalorder %s9, 0
    %p50 = por %p48, %p49
    %p51 = scmp.ne.s32.totalorder %s43, %s45
    %p52 = scmp.eq.s32.totalorder %s14, 1
    %p53 = por %p51, %p52
    %p54 = scmp.ne.s32.totalorder %s45, %s46
    %p55 = scmp.eq.s32.totalorder %s14, 0
    %p56 = por %p54, %p55
    %p57 = scmp.ne.s32.totalorder %s45, %s46
    %p58 = scmp.eq.s32.totalorder %s15, 1
    %p59 = por %p57, %p58
    %p61 = scmp.ne.s32.totalorder %s46, %s60
    %p62 = scmp.eq.s32.totalorder %s15, 0
    %p63 = por %p61, %p62
    %s65 = sadd.s32 %s64, 1
    %p68 = scmp.eq.s32.totalorder %s9, 1
    %p69 = scmp.ne.s32.totalorder %s64, %s66
    %p70 = scmp.eq.s32.totalorder %s9, 0
    %p71 = por %p69, %p70
    %p72 = scmp.ne.s32.totalorder %s64, %s66
    %p73 = scmp.eq.s32.totalorder %s14, 1
    %p74 = por %p72, %p73
    %p75 = scmp.ne.s32.totalorder %s66, %s67
    %p76 = scmp.eq.s32.totalorder %s14, 0
    %p77 = por %p75, %p76
    %p78 = scmp.ne.s32.totalorder %s66, %s67
    %p79 = scmp.eq.s32.totalorder %s15, 1
    %p80 = por %p78, %p79
    %p82 = scmp.ne.s32.totalorder %s67, %s81
    %p83 = scmp.eq.s32.totalorder %s15, 0
    %p84 = por %p82, %p83
    %s85 = ssub.s32 %s9, %s16
    %p86 = scmp.eq.s32.totalorder %s85, 0
    %s88 = sadd.s32 %s87, 1
    %s89 = scalar_select %p86, %s87, %s88
    %p92 = pneg %p86
    %p93 = scmp.eq.s32.totalorder %s9, 1
    %p94 = por %p92, %p93
    %p95 = scmp.ne.s32.totalorder %s87, %s90
    %p96 = scmp.eq.s32.totalorder %s9, 0
    %p97 = por %p95, %p96
    %p98 = scmp.ne.s32.totalorder %s87, %s90
    %p99 = scmp.eq.s32.totalorder %s14, 1
    %p100 = por %p98, %p99
    %p101 = scmp.ne.s32.totalorder %s90, %s91
    %p102 = scmp.eq.s32.totalorder %s14, 0
    %p103 = por %p101, %p102
    %p104 = scmp.ne.s32.totalorder %s90, %s91
    %p105 = scmp.eq.s32.totalorder %s15, 1
    %p106 = por %p104, %p105
    %p108 = scmp.ne.s32.totalorder %s91, %s107
    %p109 = scmp.eq.s32.totalorder %s15, 0
    %p110 = por %p108, %p109
    %p111 = scmp.le.s32.totalorder 1, %s9
    %p112 = scmp.lt.s32.totalorder %s9, 3
    %p113 = pnand %p111, %p112
    %p114 = pneg %p113
    // Predicated region
    $region9: #{resnet_forward.20} parent=5 // pred_check
      _
    $region10: #{resnet_forward.20} parent=5 // pred_check_branch
      %116 = sbr.rel (%p113) target = $region12
    $region11: #{resnet_forward.20} parent=5 // pred_region
      %s117 = ssub.s32 %s9, 1
      // Predicated region
      $region13: #{resnet_forward.20} parent=11 // pred_check
        %p118 = pneg %p56
      $region14: #{resnet_forward.20} parent=11 // pred_check_branch
        %120 = sbr.rel (%p118) target = $region16
      $region15: #{resnet_forward.20} parent=11 // pred_region
        _
      $region16: #{resnet_forward.20} parent=11 // pred_fallthru
        _
      // Predicated region
      $region17: #{resnet_forward.20} parent=11 // pred_check
        %p121 = pneg %p77
      $region18: #{resnet_forward.20} parent=11 // pred_check_branch
        %123 = sbr.rel (%p121) target = $region20
      $region19: #{resnet_forward.20} parent=11 // pred_region
        _
      $region20: #{resnet_forward.20} parent=11 // pred_fallthru
        _
    $region12: #{resnet_forward.20} parent=5 // pred_fallthru
      _
    %p124 = scmp.lt.s32.totalorder %s9, 2
    // Predicated region
    $region21: #{resnet_forward.20} parent=5 // pred_check
      %p125 = pneg %p124
    $region22: #{resnet_forward.20} parent=5 // pred_check_branch
      %127 = sbr.rel (%p125) target = $region24
    $region23: #{resnet_forward.20} parent=5 // pred_region
      // Predicated region
      $region25: #{resnet_forward.20} parent=23 // pred_check
        %p128 = pneg %p29
      $region26: #{resnet_forward.20} parent=23 // pred_check_branch
        %130 = sbr.rel (%p128) target = $region28
      $region27: #{resnet_forward.20} parent=23 // pred_region
        %s131 = smul.u32 2, %s9
        %p132 = scmp.lt.s32.totalorder %s131, 3
        %s133 = scalar_select %p132, %s131, 3
        %s134 = smul.addr %s133, 4
        %s135 = scalar_lea.vmem %s0, %s134
        %s136 = smul.u32 2, %s9
      $region28: #{resnet_forward.20} parent=23 // pred_fallthru
        _
    $region24: #{resnet_forward.20} parent=5 // pred_fallthru
      _
    %p137 = scmp.le.s32.totalorder 1, %s9
    %p138 = scmp.lt.s32.totalorder %s9, 3
    %p139 = pnand %p137, %p138
    %p140 = pneg %p139
    // Predicated region
    $region29: #{resnet_forward.20} parent=5 // pred_check
      _
    $region30: #{resnet_forward.20} parent=5 // pred_check_branch
      %142 = sbr.rel (%p139) target = $region32
    $region31: #{resnet_forward.20} parent=5 // pred_region
      %s143 = ssub.s32 %s9, 1
      %s144 = smul.u32 2, %s14
      %p145 = scmp.lt.s32.totalorder %s144, 3
      %s146 = scalar_select %p145, %s144, 3
      %s147 = smul.addr %s146, 4
      %s148 = scalar_lea.vmem %s0, %s147
      %p149 = pneg %p35
      %p150 = pneg %p32
      %p151 = pneg %p56
      %p152 = pneg %p53
      %p153 = pneg %p77
      %p154 = pneg %p74
      %p155 = pneg %p103
      %p156 = pneg %p100
      %s157 = smul.u32 2, %s14
      %p158 = scmp.lt.s32.totalorder %s157, 3
      %s159 = scalar_select %p158, %s157, 3
      %s160 = smul.addr %s159, 4
      %s161 = scalar_lea.vmem %s3, %s160
      %s162 = smul.u32 2, %s14
      %p163 = scmp.lt.s32.totalorder %s162, 3
      %s164 = scalar_select %p163, %s162, 3
      %s165 = smul.addr %s164, 4
      %s166 = scalar_lea.vmem %s0, %s165
      %s167 = smul.u32 2, %s14
      %s168 = smul.u32 2, %s14
      %p169 = scmp.lt.s32.totalorder %s168, 3
      %s170 = scalar_select %p169, %s168, 3
      %s171 = smul.addr %s170, 4
      %s172 = scalar_lea.vmem %s3, %s171
      %s173 = smul.u32 2, %s14
      %v175 = vld [vmem:[%s166] sm:$0xf]
      %v176 = vld [vmem:[%s166 + $0x4] sm:$0xf]
      %v177 = vld [vmem:[%s1] sm:$0xf]
      %v178 = vld [vmem:[%s1 + $0x4] sm:$0xf]
      %v179 = vld [vmem:[%s2] sm:$0x1]
      %v181 = vperm.slane %v179, 0
      %v185 = vunpack.c.l.b16 %v175
      %v186 = vunpack.c.l.b16 %v176
      %v187 = vpack.c.b16 %v186, %v185
      %v190 = vunpack.c.l.b16 %v177
      %v191 = vunpack.c.l.b16 %v178
      %v192 = vpack.c.b16 %v191, %v190
      %vm194 = vcmask 130048
      %v196 = vsel %vm194, %v187, 0
      %198 = vmatpush.bf16.msra.mxu0 0
      %199 = vmatpush.bf16.msra.mxu0 0
      %200 = vmatpush.bf16.msra.mxu0 0
      %201 = vmatpush.bf16.msra.mxu0 0
      %202 = vmatpush.bf16.msra.mxu0 0
      %203 = vmatpush.bf16.msra.mxu0 0
      %204 = vmatpush.bf16.msra.mxu0 0
      %205 = vmatpush.bf16.msra.mxu0 %v192
      %206 = vmatmul.bf16.gmra.mxu0 %v196
      %v207 = vpop.f32.mrf.mxu0
      %v208 = vadd.f32 %v181, %v207
      %v209 = vpop.f32.mrf.mxu0
      %v210 = vadd.f32 %v181, %v209
      %211 = vdwg.mxu0
      %v212 = vpack.c.bf16 %v208, %v208
      %v213 = vpack.c.bf16 %v210, %v210
      %214 = vst [vmem:[%s172] sm:$0xf] %v212
      %215 = vst [vmem:[%s172 + $0x4] sm:$0xf] %v213
      %s216 = smul.u32 2, %s14
      %p217 = scmp.lt.s32.totalorder %s216, 3
      %s218 = scalar_select %p217, %s216, 3
      %s219 = smul.addr %s218, 4
      %s220 = scalar_lea.vmem %s3, %s219
      // Predicated region
      $region33: #{resnet_forward.20} parent=31 // pred_check
        %p221 = pneg %p100
      $region34: #{resnet_forward.20} parent=31 // pred_check_branch
        %223 = sbr.rel (%p221) target = $region36
      $region35: #{resnet_forward.20} parent=31 // pred_region
        %s224 = smul.u32 2, %s14
      $region36: #{resnet_forward.20} parent=31 // pred_fallthru
        _
    $region32: #{resnet_forward.20} parent=5 // pred_fallthru
      _
    %p225 = scmp.le.s32.totalorder 2, %s9
    // Predicated region
    $region37: #{resnet_forward.20} parent=5 // pred_check
      %p226 = pneg %p225
    $region38: #{resnet_forward.20} parent=5 // pred_check_branch
      %228 = sbr.rel (%p226) target = $region40
    $region39: #{resnet_forward.20} parent=5 // pred_region
      %s229 = ssub.s32 %s9, 2
      // Predicated region
      $region41: #{resnet_forward.20} parent=39 // pred_check
        %p230 = pneg %p106
      $region42: #{resnet_forward.20} parent=39 // pred_check_branch
        %232 = sbr.rel (%p230) target = $region44
      $region43: #{resnet_forward.20} parent=39 // pred_region
        %s233 = smul.u32 2, %s15
        %p234 = scmp.lt.s32.totalorder %s233, 3
        %s235 = scalar_select %p234, %s233, 3
        %s236 = smul.addr %s235, 4
        %s237 = scalar_lea.vmem %s3, %s236
      $region44: #{resnet_forward.20} parent=39 // pred_fallthru
        _
    $region40: #{resnet_forward.20} parent=5 // pred_fallthru
      _
  $region6: #{resnet_forward.20} parent=0 // loop_footer
    %s13 = sadd.s32 1, %s9
  $region7: #{resnet_forward.20} parent=0 // loop_footer_branch
    %8 = sbr.rel target = $region3
  $region8: #{resnet_forward.20} parent=0 // loop_exit
    _

// kernel: resnet_forward.18
$region0: #{resnet_forward.18}
  #allocation0 [shape = 'u32[]', space=smem, size = 0x4, offset = 0x4, fixed_abs, tag = 'smem constant byte address 0x4 - core index']
  #allocation1 [shape = 'u32[72,128]{1,0:T(1,128)}', space=vmem, size = 0x9000, scoped, tag = 'internal scratch']
  %s0 = inlined_call_operand.vmem [shape: bf16[128,144], index: 0, kind: input, shape index: {}]
  %s1 = inlined_call_operand.vmem [shape: bf16[144,128], index: 1, kind: input, shape index: {}]
  %s2 = inlined_call_operand.vmem [shape: f32[1,128], index: 2, kind: input, shape index: {}]
  %s3 = inlined_call_operand.vmem [shape: bf16[128,128], index: 3, kind: input, shape index: {}]
  %s4 = inlined_call_operand.vmem [shape: bf16[128,128], index: 4, kind: output, shape index: {}]
  %s5 = sld [smem:[#allocation0]]
  $region49: #{resnet_forward.18} parent=0
    _
  %s7 = ssub.s32 1, %s5
  %s8 = scalar_select 0, %s7, %s5
  loop: start=0, step=1, limit=4
  $region2: #{resnet_forward.18} parent=0 // loop_pre_header
    _
  $region3: #{resnet_forward.18} parent=0 // loop_header
    %s10 = sphi 0, %s14
    %p11 = scmp.ge.s32.totalorder %s10, 4
    %s20 = sphi 0, %s22
    %s23 = sphi 0, %s20
    %s24 = sphi 0, %s23
    %s40 = sphi 0, %s24
    %s44 = sphi 0, %s44
    %s46 = sphi 0, %s44
    %s47 = sphi 0, %s46
    %s61 = sphi 0, %s47
    %s65 = sphi 0, %s65
    %s67 = sphi 0, %s65
    %s68 = sphi 0, %s67
    %s82 = sphi 0, %s68
    %s88 = sphi 0, %s90
    %s91 = sphi 0, %s88
    %s92 = sphi 0, %s91
    %s108 = sphi 0, %s92
    %s114 = sphi 0, %s116
    %s117 = sphi 0, %s114
    %s118 = sphi 0, %s117
    %s134 = sphi 0, %s118
  $region4: #{resnet_forward.18} parent=0 // loop_header_branch
    %13 = sbr.rel (%p11) target = $region8
  $region5: #{resnet_forward.18} parent=0 // loop_body
    %s15 = ssub.s32 %s10, 1
    %s16 = ssub.s32 %s10, 2
    %s17 = sadd.s32 %s10, 1
    %s18 = ssub.s32 %s10, %s17
    %p19 = scmp.eq.s32.totalorder %s18, 0
    %s21 = sadd.s32 %s20, 1
    %s22 = scalar_select %p19, %s20, %s21
    %p25 = pneg %p19
    %p26 = scmp.eq.s32.totalorder %s10, 1
    %p27 = por %p25, %p26
    %p28 = scmp.ne.s32.totalorder %s20, %s23
    %p29 = scmp.eq.s32.totalorder %s10, 0
    %p30 = por %p28, %p29
    %p31 = scmp.ne.s32.totalorder %s20, %s23
    %p32 = scmp.eq.s32.totalorder %s15, 1
    %p33 = por %p31, %p32
    %p34 = scmp.ne.s32.totalorder %s23, %s24
    %p35 = scmp.eq.s32.totalorder %s15, 0
    %p36 = por %p34, %p35
    %p37 = scmp.ne.s32.totalorder %s23, %s24
    %p38 = scmp.eq.s32.totalorder %s16, 1
    %p39 = por %p37, %p38
    %p41 = scmp.ne.s32.totalorder %s24, %s40
    %p42 = scmp.eq.s32.totalorder %s16, 0
    %p43 = por %p41, %p42
    %s45 = sadd.s32 %s44, 1
    %p48 = scmp.eq.s32.totalorder %s10, 1
    %p49 = scmp.ne.s32.totalorder %s44, %s46
    %p50 = scmp.eq.s32.totalorder %s10, 0
    %p51 = por %p49, %p50
    %p52 = scmp.ne.s32.totalorder %s44, %s46
    %p53 = scmp.eq.s32.totalorder %s15, 1
    %p54 = por %p52, %p53
    %p55 = scmp.ne.s32.totalorder %s46, %s47
    %p56 = scmp.eq.s32.totalorder %s15, 0
    %p57 = por %p55, %p56
    %p58 = scmp.ne.s32.totalorder %s46, %s47
    %p59 = scmp.eq.s32.totalorder %s16, 1
    %p60 = por %p58, %p59
    %p62 = scmp.ne.s32.totalorder %s47, %s61
    %p63 = scmp.eq.s32.totalorder %s16, 0
    %p64 = por %p62, %p63
    %s66 = sadd.s32 %s65, 1
    %p69 = scmp.eq.s32.totalorder %s10, 1
    %p70 = scmp.ne.s32.totalorder %s65, %s67
    %p71 = scmp.eq.s32.totalorder %s10, 0
    %p72 = por %p70, %p71
    %p73 = scmp.ne.s32.totalorder %s65, %s67
    %p74 = scmp.eq.s32.totalorder %s15, 1
    %p75 = por %p73, %p74
    %p76 = scmp.ne.s32.totalorder %s67, %s68
    %p77 = scmp.eq.s32.totalorder %s15, 0
    %p78 = por %p76, %p77
    %p79 = scmp.ne.s32.totalorder %s67, %s68
    %p80 = scmp.eq.s32.totalorder %s16, 1
    %p81 = por %p79, %p80
    %p83 = scmp.ne.s32.totalorder %s68, %s82
    %p84 = scmp.eq.s32.totalorder %s16, 0
    %p85 = por %p83, %p84
    %s86 = ssub.s32 %s10, %s17
    %p87 = scmp.eq.s32.totalorder %s86, 0
    %s89 = sadd.s32 %s88, 1
    %s90 = scalar_select %p87, %s88, %s89
    %p93 = pneg %p87
    %p94 = scmp.eq.s32.totalorder %s10, 1
    %p95 = por %p93, %p94
    %p96 = scmp.ne.s32.totalorder %s88, %s91
    %p97 = scmp.eq.s32.totalorder %s10, 0
    %p98 = por %p96, %p97
    %p99 = scmp.ne.s32.totalorder %s88, %s91
    %p100 = scmp.eq.s32.totalorder %s15, 1
    %p101 = por %p99, %p100
    %p102 = scmp.ne.s32.totalorder %s91, %s92
    %p103 = scmp.eq.s32.totalorder %s15, 0
    %p104 = por %p102, %p103
    %p105 = scmp.ne.s32.totalorder %s91, %s92
    %p106 = scmp.eq.s32.totalorder %s16, 1
    %p107 = por %p105, %p106
    %p109 = scmp.ne.s32.totalorder %s92, %s108
    %p110 = scmp.eq.s32.totalorder %s16, 0
    %p111 = por %p109, %p110
    %s112 = ssub.s32 %s10, %s17
    %p113 = scmp.eq.s32.totalorder %s112, 0
    %s115 = sadd.s32 %s114, 1
    %s116 = scalar_select %p113, %s114, %s115
    %p119 = pneg %p113
    %p120 = scmp.eq.s32.totalorder %s10, 1
    %p121 = por %p119, %p120
    %p122 = scmp.ne.s32.totalorder %s114, %s117
    %p123 = scmp.eq.s32.totalorder %s10, 0
    %p124 = por %p122, %p123
    %p125 = scmp.ne.s32.totalorder %s114, %s117
    %p126 = scmp.eq.s32.totalorder %s15, 1
    %p127 = por %p125, %p126
    %p128 = scmp.ne.s32.totalorder %s117, %s118
    %p129 = scmp.eq.s32.totalorder %s15, 0
    %p130 = por %p128, %p129
    %p131 = scmp.ne.s32.totalorder %s117, %s118
    %p132 = scmp.eq.s32.totalorder %s16, 1
    %p133 = por %p131, %p132
    %p135 = scmp.ne.s32.totalorder %s118, %s134
    %p136 = scmp.eq.s32.totalorder %s16, 0
    %p137 = por %p135, %p136
    %p138 = scmp.le.s32.totalorder 1, %s10
    %p139 = scmp.lt.s32.totalorder %s10, 3
    %p140 = pnand %p138, %p139
    %p141 = pneg %p140
    // Predicated region
    $region9: #{resnet_forward.18} parent=5 // pred_check
      _
    $region10: #{resnet_forward.18} parent=5 // pred_check_branch
      %143 = sbr.rel (%p140) target = $region12
    $region11: #{resnet_forward.18} parent=5 // pred_region
      %s144 = ssub.s32 %s10, 1
      // Predicated region
      $region13: #{resnet_forward.18} parent=11 // pred_check
        %p145 = pneg %p57
      $region14: #{resnet_forward.18} parent=11 // pred_check_branch
        %147 = sbr.rel (%p145) target = $region16
      $region15: #{resnet_forward.18} parent=11 // pred_region
        _
      $region16: #{resnet_forward.18} parent=11 // pred_fallthru
        _
      // Predicated region
      $region17: #{resnet_forward.18} parent=11 // pred_check
        %p148 = pneg %p78
      $region18: #{resnet_forward.18} parent=11 // pred_check_branch
        %150 = sbr.rel (%p148) target = $region20
      $region19: #{resnet_forward.18} parent=11 // pred_region
        _
      $region20: #{resnet_forward.18} parent=11 // pred_fallthru
        _
    $region12: #{resnet_forward.18} parent=5 // pred_fallthru
      _
    %p151 = scmp.lt.s32.totalorder %s10, 2
    // Predicated region
    $region21: #{resnet_forward.18} parent=5 // pred_check
      %p152 = pneg %p151
    $region22: #{resnet_forward.18} parent=5 // pred_check_branch
      %154 = sbr.rel (%p152) target = $region24
    $region23: #{resnet_forward.18} parent=5 // pred_region
      // Predicated region
      $region25: #{resnet_forward.18} parent=23 // pred_check
        %p155 = pneg %p30
      $region26: #{resnet_forward.18} parent=23 // pred_check_branch
        %157 = sbr.rel (%p155) target = $region28
      $region27: #{resnet_forward.18} parent=23 // pred_region
        %s158 = smul.u32 8, %s10
        %p159 = scmp.lt.s32.totalorder %s158, 15
        %s160 = scalar_select %p159, %s158, 15
        %s161 = smul.addr %s160, 2
        %s162 = smul.addr %s161, 4
        %s163 = scalar_lea.vmem %s0, %s162
        %s164 = smul.u32 8, %s10
      $region28: #{resnet_forward.18} parent=23 // pred_fallthru
        _
      // Predicated region
      $region29: #{resnet_forward.18} parent=23 // pred_check
        %p165 = pneg %p98
      $region30: #{resnet_forward.18} parent=23 // pred_check_branch
        %167 = sbr.rel (%p165) target = $region32
      $region31: #{resnet_forward.18} parent=23 // pred_region
        %s168 = smul.u32 8, %s10
        %p169 = scmp.lt.s32.totalorder %s168, 15
        %s170 = scalar_select %p169, %s168, 15
        %s171 = smul.addr %s170, 4
        %s172 = scalar_lea.vmem %s3, %s171
        %s173 = smul.u32 8, %s10
      $region32: #{resnet_forward.18} parent=23 // pred_fallthru
        _
    $region24: #{resnet_forward.18} parent=5 // pred_fallthru
      _
    %p174 = scmp.le.s32.totalorder 1, %s10
    %p175 = scmp.lt.s32.totalorder %s10, 3
    %p176 = pnand %p174, %p175
    %p177 = pneg %p176
    // Predicated region
    $region33: #{resnet_forward.18} parent=5 // pred_check
      _
    $region34: #{resnet_forward.18} parent=5 // pred_check_branch
      %179 = sbr.rel (%p176) target = $region36
    $region35: #{resnet_forward.18} parent=5 // pred_region
      %s180 = ssub.s32 %s10, 1
      %s181 = smul.u32 8, %s15
      %p182 = scmp.lt.s32.totalorder %s181, 15
      %s183 = scalar_select %p182, %s181, 15
      %s184 = smul.addr %s183, 2
      %s185 = smul.addr %s184, 4
      %s186 = scalar_lea.vmem %s0, %s185
      %p187 = pneg %p36
      %p188 = pneg %p33
      %p189 = pneg %p57
      %p190 = pneg %p54
      %p191 = pneg %p78
      %p192 = pneg %p75
      %s193 = smul.u32 8, %s15
      %p194 = scmp.lt.s32.totalorder %s193, 15
      %s195 = scalar_select %p194, %s193, 15
      %s196 = smul.addr %s195, 4
      %s197 = scalar_lea.vmem %s3, %s196
      %p198 = pneg %p104
      %p199 = pneg %p101
      %p200 = pneg %p130
      %p201 = pneg %p127
      %s202 = smul.u32 8, %s15
      %p203 = scmp.lt.s32.totalorder %s202, 15
      %s204 = scalar_select %p203, %s202, 15
      %s205 = smul.addr %s204, 4
      %s206 = scalar_lea.vmem %s4, %s205
      %s207 = smul.u32 8, %s15
      %p208 = scmp.lt.s32.totalorder %s207, 15
      %s209 = scalar_select %p208, %s207, 15
      %s210 = smul.addr %s209, 2
      %s211 = smul.addr %s210, 4
      %s212 = scalar_lea.vmem %s0, %s211
      %s213 = smul.u32 8, %s15
      %s214 = smul.u32 8, %s15
      %p215 = scmp.lt.s32.totalorder %s214, 15
      %s216 = scalar_select %p215, %s214, 15
      %s217 = smul.addr %s216, 4
      %s218 = scalar_lea.vmem %s3, %s217
      %s219 = smul.u32 8, %s15
      %s220 = smul.u32 8, %s15
      %p221 = scmp.lt.s32.totalorder %s220, 15
      %s222 = scalar_select %p221, %s220, 15
      %s223 = smul.addr %s222, 4
      %s224 = scalar_lea.vmem %s4, %s223
      %s225 = smul.u32 8, %s15
      %v227 = vld [vmem:[%s212] sm:$0xff]
      %v228 = vld [vmem:[%s212 + $0x8] sm:$0xff]
      %v229 = vld [vmem:[%s212 + $0x10] sm:$0xff]
      %v230 = vld [vmem:[%s212 + $0x18] sm:$0xff]
      %v231 = vld [vmem:[%s212 + $0x20] sm:$0xff]
      %v232 = vld [vmem:[%s212 + $0x28] sm:$0xff]
      %v233 = vld [vmem:[%s212 + $0x30] sm:$0xff]
      %v234 = vld [vmem:[%s212 + $0x38] sm:$0xff]
      %v235 = vld [vmem:[%s1] sm:$0xf]
      %v236 = vld [vmem:[%s1 + $0x4] sm:$0xf]
      %v237 = vld [vmem:[%s1 + $0x8] sm:$0xf]
      %v238 = vld [vmem:[%s1 + $0xc] sm:$0xf]
      %v239 = vld [vmem:[%s1 + $0x10] sm:$0xf]
      %v240 = vld [vmem:[%s1 + $0x14] sm:$0xf]
      %v241 = vld [vmem:[%s1 + $0x18] sm:$0xf]
      %v242 = vld [vmem:[%s1 + $0x1c] sm:$0xf]
      %v243 = vld [vmem:[%s1 + $0x20] sm:$0xf]
      %v244 = vld [vmem:[%s1 + $0x24] sm:$0xf]
      %v245 = vld [vmem:[%s1 + $0x28] sm:$0xf]
      %v246 = vld [vmem:[%s1 + $0x2c] sm:$0xf]
      %v247 = vld [vmem:[%s1 + $0x30] sm:$0xf]
      %v248 = vld [vmem:[%s1 + $0x34] sm:$0xf]
      %v249 = vld [vmem:[%s1 + $0x38] sm:$0xf]
      %v250 = vld [vmem:[%s1 + $0x3c] sm:$0xf]
      %v251 = vld [vmem:[%s1 + $0x40] sm:$0xf]
      %v252 = vld [vmem:[%s1 + $0x44] sm:$0xf]
      %v253 = vld [vmem:[%s2] sm:$0x1]
      %v255 = vperm.slane %v253, 0
      %v265 = vunpack.c.l.b16 %v227
      %v266 = vunpack.c.h.b16 %v227
      %v267 = vunpack.c.l.b16 %v228
      %v268 = vunpack.c.h.b16 %v228
      %v269 = vunpack.c.l.b16 %v229
      %v270 = vunpack.c.h.b16 %v229
      %v271 = vunpack.c.l.b16 %v230
      %v272 = vunpack.c.h.b16 %v230
      %v273 = vunpack.c.l.b16 %v231
      %v274 = vunpack.c.h.b16 %v231
      %v275 = vunpack.c.l.b16 %v232
      %v276 = vunpack.c.h.b16 %v232
      %v277 = vunpack.c.l.b16 %v233
      %v278 = vunpack.c.h.b16 %v233
      %v279 = vunpack.c.l.b16 %v234
      %v280 = vunpack.c.h.b16 %v234
      %v281 = vpack.c.b16 %v267, %v265
      %v282 = vpack.c.b16 %v268, %v266
      %v283 = vpack.c.b16 %v271, %v269
      %v284 = vpack.c.b16 %v272, %v270
      %v285 = vpack.c.b16 %v275, %v273
      %v286 = vpack.c.b16 %v276, %v274
      %v287 = vpack.c.b16 %v279, %v277
      %v288 = vpack.c.b16 %v280, %v278
      %v311 = vunpack.c.l.b16 %v235
      %v312 = vunpack.c.l.b16 %v236
      %v313 = vunpack.c.l.b16 %v237
      %v314 = vunpack.c.l.b16 %v238
      %v315 = vunpack.c.l.b16 %v239
      %v316 = vunpack.c.l.b16 %v240
      %v317 = vunpack.c.l.b16 %v241
      %v318 = vunpack.c.l.b16 %v242
      %v319 = vunpack.c.l.b16 %v243
      %v320 = vunpack.c.l.b16 %v244
      %v321 = vunpack.c.l.b16 %v245
      %v322 = vunpack.c.l.b16 %v246
      %v323 = vunpack.c.l.b16 %v247
      %v324 = vunpack.c.l.b16 %v248
      %v325 = vunpack.c.l.b16 %v249
      %v326 = vunpack.c.l.b16 %v250
      %v327 = vunpack.c.l.b16 %v251
      %v328 = vunpack.c.l.b16 %v252
      %v329 = vpack.c.b16 %v312, %v311
      %v330 = vpack.c.b16 %v314, %v313
      %v331 = vpack.c.b16 %v316, %v315
      %v332 = vpack.c.b16 %v318, %v317
      %v333 = vpack.c.b16 %v320, %v319
      %v334 = vpack.c.b16 %v322, %v321
      %v335 = vpack.c.b16 %v324, %v323
      %v336 = vpack.c.b16 %v326, %v325
      %v337 = vpack.c.b16 %v328, %v327
      %vm347 = vcmask 130048
      %v349 = vsel %vm347, %v282, 0
      %v352 = vsel %vm347, %v284, 0
      %v355 = vsel %vm347, %v286, 0
      %v358 = vsel %vm347, %v288, 0
      %360 = vmatpush.bf16.msra.mxu0 %v336
      %361 = vmatpush.bf16.msra.mxu0 %v335
      %362 = vmatpush.bf16.msra.mxu0 %v334
      %363 = vmatpush.bf16.msra.mxu0 %v333
      %364 = vmatpush.bf16.msra.mxu0 %v332
      %365 = vmatpush.bf16.msra.mxu0 %v331
      %366 = vmatpush.bf16.msra.mxu0 %v330
      %367 = vmatpush.bf16.msra.mxu0 %v329
      %368 = vmatmul.bf16.gmra.mxu0 %v281
      %v369 = vpop.f32.mrf.mxu0
      %v370 = vadd.f32 %v255, %v369
      %v371 = vpop.f32.mrf.mxu0
      %v372 = vadd.f32 %v255, %v371
      %373 = vmatmul.bf16.gmra.mxu0 %v283
      %v374 = vpop.f32.mrf.mxu0
      %v375 = vadd.f32 %v255, %v374
      %v376 = vpop.f32.mrf.mxu0
      %v377 = vadd.f32 %v255, %v376
      %378 = vmatmul.bf16.gmra.mxu0 %v285
      %v379 = vpop.f32.mrf.mxu0
      %v380 = vadd.f32 %v255, %v379
      %v381 = vpop.f32.mrf.mxu0
      %v382 = vadd.f32 %v255, %v381
      %383 = vmatmul.bf16.gmra.mxu0 %v287
      %v384 = vpop.f32.mrf.mxu0
      %v385 = vadd.f32 %v255, %v384
      %v386 = vpop.f32.mrf.mxu0
      %v387 = vadd.f32 %v255, %v386
      %388 = vdwg.mxu0
      %389 = vmatpush.bf16.msra.mxu0 0
      %390 = vmatpush.bf16.msra.mxu0 0
      %391 = vmatpush.bf16.msra.mxu0 0
      %392 = vmatpush.bf16.msra.mxu0 0
      %393 = vmatpush.bf16.msra.mxu0 0
      %394 = vmatpush.bf16.msra.mxu0 0
      %395 = vmatpush.bf16.msra.mxu0 0
      %396 = vmatpush.bf16.msra.mxu0 %v337
      %397 = vmatmul.bf16.gmra.mxu0 %v349
      %v398 = vpop.f32.mrf.mxu0
      %v399 = vadd.f32 %v370, %v398
      %v400 = vpop.f32.mrf.mxu0
      %v401 = vadd.f32 %v372, %v400
      %402 = vmatmul.bf16.gmra.mxu0 %v352
      %v403 = vpop.f32.mrf.mxu0
      %v404 = vadd.f32 %v375, %v403
      %v405 = vpop.f32.mrf.mxu0
      %v406 = vadd.f32 %v377, %v405
      %407 = vmatmul.bf16.gmra.mxu0 %v355
      %v408 = vpop.f32.mrf.mxu0
      %v409 = vadd.f32 %v380, %v408
      %v410 = vpop.f32.mrf.mxu0
      %v411 = vadd.f32 %v382, %v410
      %412 = vmatmul.bf16.gmra.mxu0 %v358
      %v413 = vpop.f32.mrf.mxu0
      %v414 = vadd.f32 %v385, %v413
      %v415 = vpop.f32.mrf.mxu0
      %v416 = vadd.f32 %v387, %v415
      %417 = vdwg.mxu0
      %v418 = vld [vmem:[%s218] sm:$0xf]
      %v419 = vld [vmem:[%s218 + $0x4] sm:$0xf]
      %v420 = vld [vmem:[%s218 + $0x8] sm:$0xf]
      %v421 = vld [vmem:[%s218 + $0xc] sm:$0xf]
      %v422 = vld [vmem:[%s218 + $0x10] sm:$0xf]
      %v423 = vld [vmem:[%s218 + $0x14] sm:$0xf]
      %v424 = vld [vmem:[%s218 + $0x18] sm:$0xf]
      %v425 = vld [vmem:[%s218 + $0x1c] sm:$0xf]
      %v426 = vunpack.c.l.bf16 %v418
      %v427 = vunpack.c.l.bf16 %v419
      %v428 = vunpack.c.l.bf16 %v420
      %v429 = vunpack.c.l.bf16 %v421
      %v430 = vunpack.c.l.bf16 %v422
      %v431 = vunpack.c.l.bf16 %v423
      %v432 = vunpack.c.l.bf16 %v424
      %v433 = vunpack.c.l.bf16 %v425
      %v434 = vadd.f32 %v399, %v426
      %v435 = vadd.f32 %v401, %v427
      %v436 = vadd.f32 %v404, %v428
      %v437 = vadd.f32 %v406, %v429
      %v438 = vadd.f32 %v409, %v430
      %v439 = vadd.f32 %v411, %v431
      %v440 = vadd.f32 %v414, %v432
      %v441 = vadd.f32 %v416, %v433
      %v442 = vmax.f32 %v434, 0.0
      %v443 = vmax.f32 %v435, 0.0
      %v444 = vmax.f32 %v436, 0.0
      %v445 = vmax.f32 %v437, 0.0
      %v446 = vmax.f32 %v438, 0.0
      %v447 = vmax.f32 %v439, 0.0
      %v448 = vmax.f32 %v440, 0.0
      %v449 = vmax.f32 %v441, 0.0
      %v450 = vpack.c.bf16 %v442, %v442
      %v451 = vpack.c.bf16 %v443, %v443
      %v452 = vpack.c.bf16 %v444, %v444
      %v453 = vpack.c.bf16 %v445, %v445
      %v454 = vpack.c.bf16 %v446, %v446
      %v455 = vpack.c.bf16 %v447, %v447
      %v456 = vpack.c.bf16 %v448, %v448
      %v457 = vpack.c.bf16 %v449, %v449
      %458 = vst [vmem:[%s224] sm:$0xf] %v450
      %459 = vst [vmem:[%s224 + $0x4] sm:$0xf] %v451
      %460 = vst [vmem:[%s224 + $0x8] sm:$0xf] %v452
      %461 = vst [vmem:[%s224 + $0xc] sm:$0xf] %v453
      %462 = vst [vmem:[%s224 + $0x10] sm:$0xf] %v454
      %463 = vst [vmem:[%s224 + $0x14] sm:$0xf] %v455
      %464 = vst [vmem:[%s224 + $0x18] sm:$0xf] %v456
      %465 = vst [vmem:[%s224 + $0x1c] sm:$0xf] %v457
      %s466 = smul.u32 8, %s15
      %p467 = scmp.lt.s32.totalorder %s466, 15
      %s468 = scalar_select %p467, %s466, 15
      %s469 = smul.addr %s468, 4
      %s470 = scalar_lea.vmem %s4, %s469
      // Predicated region
      $region37: #{resnet_forward.18} parent=35 // pred_check
        %p471 = pneg %p127
      $region38: #{resnet_forward.18} parent=35 // pred_check_branch
        %473 = sbr.rel (%p471) target = $region40
      $region39: #{resnet_forward.18} parent=35 // pred_region
        %s474 = smul.u32 8, %s15
      $region40: #{resnet_forward.18} parent=35 // pred_fallthru
        _
    $region36: #{resnet_forward.18} parent=5 // pred_fallthru
      _
    %p475 = scmp.le.s32.totalorder 2, %s10
    // Predicated region
    $region41: #{resnet_forward.18} parent=5 // pred_check
      %p476 = pneg %p475
    $region42: #{resnet_forward.18} parent=5 // pred_check_branch
      %478 = sbr.rel (%p476) target = $region44
    $region43: #{resnet_forward.18} parent=5 // pred_region
      %s479 = ssub.s32 %s10, 2
      // Predicated region
      $region45: #{resnet_forward.18} parent=43 // pred_check
        %p480 = pneg %p133
      $region46: #{resnet_forward.18} parent=43 // pred_check_branch
        %482 = sbr.rel (%p480) target = $region48
      $region47: #{resnet_forward.18} parent=43 // pred_region
        %s483 = smul.u32 8, %s16
        %p484 = scmp.lt.s32.totalorder %s483, 15
        %s485 = scalar_select %p484, %s483, 15
        %s486 = smul.addr %s485, 4
        %s487 = scalar_lea.vmem %s4, %s486
      $region48: #{resnet_forward.18} parent=43 // pred_fallthru
        _
    $region44: #{resnet_forward.18} parent=5 // pred_fallthru
      _
  $region6: #{resnet_forward.18} parent=0 // loop_footer
    %s14 = sadd.s32 1, %s10
  $region7: #{resnet_forward.18} parent=0 // loop_footer_branch
    %9 = sbr.rel target = $region3
  $region8: #{resnet_forward.18} parent=0 // loop_exit
    _

// kernel: resnet_forward.19
$region0: #{resnet_forward.19}
  #allocation0 [shape = 'u32[]', space=smem, size = 0x4, offset = 0x4, fixed_abs, tag = 'smem constant byte address 0x4 - core index']
  #allocation1 [shape = 'u32[72,128]{1,0:T(1,128)}', space=vmem, size = 0x9000, scoped, tag = 'internal scratch']
  %s0 = inlined_call_operand.vmem [shape: bf16[32,144], index: 0, kind: input, shape index: {}]
  %s1 = inlined_call_operand.vmem [shape: bf16[144,128], index: 1, kind: input, shape index: {}]
  %s2 = inlined_call_operand.vmem [shape: f32[1,128], index: 2, kind: input, shape index: {}]
  %s3 = inlined_call_operand.vmem [shape: bf16[32,128], index: 3, kind: output, shape index: {}]
  %s4 = sld [smem:[#allocation0]]
  $region45: #{resnet_forward.19} parent=0
    _
  %s6 = ssub.s32 1, %s4
  %s7 = scalar_select 0, %s6, %s4
  loop: start=0, step=1, limit=4
  $region2: #{resnet_forward.19} parent=0 // loop_pre_header
    _
  $region3: #{resnet_forward.19} parent=0 // loop_header
    %s9 = sphi 0, %s13
    %p10 = scmp.ge.s32.totalorder %s9, 4
    %s19 = sphi 0, %s21
    %s22 = sphi 0, %s19
    %s23 = sphi 0, %s22
    %s39 = sphi 0, %s23
    %s43 = sphi 0, %s43
    %s45 = sphi 0, %s43
    %s46 = sphi 0, %s45
    %s60 = sphi 0, %s46
    %s64 = sphi 0, %s64
    %s66 = sphi 0, %s64
    %s67 = sphi 0, %s66
    %s81 = sphi 0, %s67
    %s87 = sphi 0, %s89
    %s90 = sphi 0, %s87
    %s91 = sphi 0, %s90
    %s107 = sphi 0, %s91
  $region4: #{resnet_forward.19} parent=0 // loop_header_branch
    %12 = sbr.rel (%p10) target = $region8
  $region5: #{resnet_forward.19} parent=0 // loop_body
    %s14 = ssub.s32 %s9, 1
    %s15 = ssub.s32 %s9, 2
    %s16 = sadd.s32 %s9, 1
    %s17 = ssub.s32 %s9, %s16
    %p18 = scmp.eq.s32.totalorder %s17, 0
    %s20 = sadd.s32 %s19, 1
    %s21 = scalar_select %p18, %s19, %s20
    %p24 = pneg %p18
    %p25 = scmp.eq.s32.totalorder %s9, 1
    %p26 = por %p24, %p25
    %p27 = scmp.ne.s32.totalorder %s19, %s22
    %p28 = scmp.eq.s32.totalorder %s9, 0
    %p29 = por %p27, %p28
    %p30 = scmp.ne.s32.totalorder %s19, %s22
    %p31 = scmp.eq.s32.totalorder %s14, 1
    %p32 = por %p30, %p31
    %p33 = scmp.ne.s32.totalorder %s22, %s23
    %p34 = scmp.eq.s32.totalorder %s14, 0
    %p35 = por %p33, %p34
    %p36 = scmp.ne.s32.totalorder %s22, %s23
    %p37 = scmp.eq.s32.totalorder %s15, 1
    %p38 = por %p36, %p37
    %p40 = scmp.ne.s32.totalorder %s23, %s39
    %p41 = scmp.eq.s32.totalorder %s15, 0
    %p42 = por %p40, %p41
    %s44 = sadd.s32 %s43, 1
    %p47 = scmp.eq.s32.totalorder %s9, 1
    %p48 = scmp.ne.s32.totalorder %s43, %s45
    %p49 = scmp.eq.s32.totalorder %s9, 0
    %p50 = por %p48, %p49
    %p51 = scmp.ne.s32.totalorder %s43, %s45
    %p52 = scmp.eq.s32.totalorder %s14, 1
    %p53 = por %p51, %p52
    %p54 = scmp.ne.s32.totalorder %s45, %s46
    %p55 = scmp.eq.s32.totalorder %s14, 0
    %p56 = por %p54, %p55
    %p57 = scmp.ne.s32.totalorder %s45, %s46
    %p58 = scmp.eq.s32.totalorder %s15, 1
    %p59 = por %p57, %p58
    %p61 = scmp.ne.s32.totalorder %s46, %s60
    %p62 = scmp.eq.s32.totalorder %s15, 0
    %p63 = por %p61, %p62
    %s65 = sadd.s32 %s64, 1
    %p68 = scmp.eq.s32.totalorder %s9, 1
    %p69 = scmp.ne.s32.totalorder %s64, %s66
    %p70 = scmp.eq.s32.totalorder %s9, 0
    %p71 = por %p69, %p70
    %p72 = scmp.ne.s32.totalorder %s64, %s66
    %p73 = scmp.eq.s32.totalorder %s14, 1
    %p74 = por %p72, %p73
    %p75 = scmp.ne.s32.totalorder %s66, %s67
    %p76 = scmp.eq.s32.totalorder %s14, 0
    %p77 = por %p75, %p76
    %p78 = scmp.ne.s32.totalorder %s66, %s67
    %p79 = scmp.eq.s32.totalorder %s15, 1
    %p80 = por %p78, %p79
    %p82 = scmp.ne.s32.totalorder %s67, %s81
    %p83 = scmp.eq.s32.totalorder %s15, 0
    %p84 = por %p82, %p83
    %s85 = ssub.s32 %s9, %s16
    %p86 = scmp.eq.s32.totalorder %s85, 0
    %s88 = sadd.s32 %s87, 1
    %s89 = scalar_select %p86, %s87, %s88
    %p92 = pneg %p86
    %p93 = scmp.eq.s32.totalorder %s9, 1
    %p94 = por %p92, %p93
    %p95 = scmp.ne.s32.totalorder %s87, %s90
    %p96 = scmp.eq.s32.totalorder %s9, 0
    %p97 = por %p95, %p96
    %p98 = scmp.ne.s32.totalorder %s87, %s90
    %p99 = scmp.eq.s32.totalorder %s14, 1
    %p100 = por %p98, %p99
    %p101 = scmp.ne.s32.totalorder %s90, %s91
    %p102 = scmp.eq.s32.totalorder %s14, 0
    %p103 = por %p101, %p102
    %p104 = scmp.ne.s32.totalorder %s90, %s91
    %p105 = scmp.eq.s32.totalorder %s15, 1
    %p106 = por %p104, %p105
    %p108 = scmp.ne.s32.totalorder %s91, %s107
    %p109 = scmp.eq.s32.totalorder %s15, 0
    %p110 = por %p108, %p109
    %p111 = scmp.le.s32.totalorder 1, %s9
    %p112 = scmp.lt.s32.totalorder %s9, 3
    %p113 = pnand %p111, %p112
    %p114 = pneg %p113
    // Predicated region
    $region9: #{resnet_forward.19} parent=5 // pred_check
      _
    $region10: #{resnet_forward.19} parent=5 // pred_check_branch
      %116 = sbr.rel (%p113) target = $region12
    $region11: #{resnet_forward.19} parent=5 // pred_region
      %s117 = ssub.s32 %s9, 1
      // Predicated region
      $region13: #{resnet_forward.19} parent=11 // pred_check
        %p118 = pneg %p56
      $region14: #{resnet_forward.19} parent=11 // pred_check_branch
        %120 = sbr.rel (%p118) target = $region16
      $region15: #{resnet_forward.19} parent=11 // pred_region
        _
      $region16: #{resnet_forward.19} parent=11 // pred_fallthru
        _
      // Predicated region
      $region17: #{resnet_forward.19} parent=11 // pred_check
        %p121 = pneg %p77
      $region18: #{resnet_forward.19} parent=11 // pred_check_branch
        %123 = sbr.rel (%p121) target = $region20
      $region19: #{resnet_forward.19} parent=11 // pred_region
        _
      $region20: #{resnet_forward.19} parent=11 // pred_fallthru
        _
    $region12: #{resnet_forward.19} parent=5 // pred_fallthru
      _
    %p124 = scmp.lt.s32.totalorder %s9, 2
    // Predicated region
    $region21: #{resnet_forward.19} parent=5 // pred_check
      %p125 = pneg %p124
    $region22: #{resnet_forward.19} parent=5 // pred_check_branch
      %127 = sbr.rel (%p125) target = $region24
    $region23: #{resnet_forward.19} parent=5 // pred_region
      // Predicated region
      $region25: #{resnet_forward.19} parent=23 // pred_check
        %p128 = pneg %p29
      $region26: #{resnet_forward.19} parent=23 // pred_check_branch
        %130 = sbr.rel (%p128) target = $region28
      $region27: #{resnet_forward.19} parent=23 // pred_region
        %s131 = smul.u32 2, %s9
        %p132 = scmp.lt.s32.totalorder %s131, 3
        %s133 = scalar_select %p132, %s131, 3
        %s134 = smul.addr %s133, 2
        %s135 = smul.addr %s134, 4
        %s136 = scalar_lea.vmem %s0, %s135
        %s137 = smul.u32 2, %s9
      $region28: #{resnet_forward.19} parent=23 // pred_fallthru
        _
    $region24: #{resnet_forward.19} parent=5 // pred_fallthru
      _
    %p138 = scmp.le.s32.totalorder 1, %s9
    %p139 = scmp.lt.s32.totalorder %s9, 3
    %p140 = pnand %p138, %p139
    %p141 = pneg %p140
    // Predicated region
    $region29: #{resnet_forward.19} parent=5 // pred_check
      _
    $region30: #{resnet_forward.19} parent=5 // pred_check_branch
      %143 = sbr.rel (%p140) target = $region32
    $region31: #{resnet_forward.19} parent=5 // pred_region
      %s144 = ssub.s32 %s9, 1
      %s145 = smul.u32 2, %s14
      %p146 = scmp.lt.s32.totalorder %s145, 3
      %s147 = scalar_select %p146, %s145, 3
      %s148 = smul.addr %s147, 2
      %s149 = smul.addr %s148, 4
      %s150 = scalar_lea.vmem %s0, %s149
      %p151 = pneg %p35
      %p152 = pneg %p32
      %p153 = pneg %p56
      %p154 = pneg %p53
      %p155 = pneg %p77
      %p156 = pneg %p74
      %p157 = pneg %p103
      %p158 = pneg %p100
      %s159 = smul.u32 2, %s14
      %p160 = scmp.lt.s32.totalorder %s159, 3
      %s161 = scalar_select %p160, %s159, 3
      %s162 = smul.addr %s161, 4
      %s163 = scalar_lea.vmem %s3, %s162
      %s164 = smul.u32 2, %s14
      %p165 = scmp.lt.s32.totalorder %s164, 3
      %s166 = scalar_select %p165, %s164, 3
      %s167 = smul.addr %s166, 2
      %s168 = smul.addr %s167, 4
      %s169 = scalar_lea.vmem %s0, %s168
      %s170 = smul.u32 2, %s14
      %s171 = smul.u32 2, %s14
      %p172 = scmp.lt.s32.totalorder %s171, 3
      %s173 = scalar_select %p172, %s171, 3
      %s174 = smul.addr %s173, 4
      %s175 = scalar_lea.vmem %s3, %s174
      %s176 = smul.u32 2, %s14
      %v178 = vld [vmem:[%s169] sm:$0xff]
      %v179 = vld [vmem:[%s169 + $0x8] sm:$0xff]
      %v180 = vld [vmem:[%s1] sm:$0xf]
      %v181 = vld [vmem:[%s1 + $0x4] sm:$0xf]
      %v182 = vld [vmem:[%s1 + $0x8] sm:$0xf]
      %v183 = vld [vmem:[%s1 + $0xc] sm:$0xf]
      %v184 = vld [vmem:[%s1 + $0x10] sm:$0xf]
      %v185 = vld [vmem:[%s1 + $0x14] sm:$0xf]
      %v186 = vld [vmem:[%s1 + $0x18] sm:$0xf]
      %v187 = vld [vmem:[%s1 + $0x1c] sm:$0xf]
      %v188 = vld [vmem:[%s1 + $0x20] sm:$0xf]
      %v189 = vld [vmem:[%s1 + $0x24] sm:$0xf]
      %v190 = vld [vmem:[%s1 + $0x28] sm:$0xf]
      %v191 = vld [vmem:[%s1 + $0x2c] sm:$0xf]
      %v192 = vld [vmem:[%s1 + $0x30] sm:$0xf]
      %v193 = vld [vmem:[%s1 + $0x34] sm:$0xf]
      %v194 = vld [vmem:[%s1 + $0x38] sm:$0xf]
      %v195 = vld [vmem:[%s1 + $0x3c] sm:$0xf]
      %v196 = vld [vmem:[%s1 + $0x40] sm:$0xf]
      %v197 = vld [vmem:[%s1 + $0x44] sm:$0xf]
      %v198 = vld [vmem:[%s2] sm:$0x1]
      %v200 = vperm.slane %v198, 0
      %v204 = vunpack.c.l.b16 %v178
      %v205 = vunpack.c.h.b16 %v178
      %v206 = vunpack.c.l.b16 %v179
      %v207 = vunpack.c.h.b16 %v179
      %v208 = vpack.c.b16 %v206, %v204
      %v209 = vpack.c.b16 %v207, %v205
      %v229 = vunpack.c.l.b16 %v180
      %v230 = vunpack.c.l.b16 %v181
      %v231 = vunpack.c.l.b16 %v182
      %v232 = vunpack.c.l.b16 %v183
      %v233 = vunpack.c.l.b16 %v184
      %v234 = vunpack.c.l.b16 %v185
      %v235 = vunpack.c.l.b16 %v186
      %v236 = vunpack.c.l.b16 %v187
      %v237 = vunpack.c.l.b16 %v188
      %v238 = vunpack.c.l.b16 %v189
      %v239 = vunpack.c.l.b16 %v190
      %v240 = vunpack.c.l.b16 %v191
      %v241 = vunpack.c.l.b16 %v192
      %v242 = vunpack.c.l.b16 %v193
      %v243 = vunpack.c.l.b16 %v194
      %v244 = vunpack.c.l.b16 %v195
      %v245 = vunpack.c.l.b16 %v196
      %v246 = vunpack.c.l.b16 %v197
      %v247 = vpack.c.b16 %v230, %v229
      %v248 = vpack.c.b16 %v232, %v231
      %v249 = vpack.c.b16 %v234, %v233
      %v250 = vpack.c.b16 %v236, %v235
      %v251 = vpack.c.b16 %v238, %v237
      %v252 = vpack.c.b16 %v240, %v239
      %v253 = vpack.c.b16 %v242, %v241
      %v254 = vpack.c.b16 %v244, %v243
      %v255 = vpack.c.b16 %v246, %v245
      %vm265 = vcmask 130048
      %v267 = vsel %vm265, %v209, 0
      %269 = vmatpush.bf16.msra.mxu0 %v254
      %270 = vmatpush.bf16.msra.mxu0 %v253
      %271 = vmatpush.bf16.msra.mxu0 %v252
      %272 = vmatpush.bf16.msra.mxu0 %v251
      %273 = vmatpush.bf16.msra.mxu0 %v250
      %274 = vmatpush.bf16.msra.mxu0 %v249
      %275 = vmatpush.bf16.msra.mxu0 %v248
      %276 = vmatpush.bf16.msra.mxu0 %v247
      %277 = vmatmul.bf16.gmra.mxu0 %v208
      %v278 = vpop.f32.mrf.mxu0
      %v279 = vadd.f32 %v200, %v278
      %v280 = vpop.f32.mrf.mxu0
      %v281 = vadd.f32 %v200, %v280
      %282 = vdwg.mxu0
      %283 = vmatpush.bf16.msra.mxu0 0
      %284 = vmatpush.bf16.msra.mxu0 0
      %285 = vmatpush.bf16.msra.mxu0 0
      %286 = vmatpush.bf16.msra.mxu0 0
      %287 = vmatpush.bf16.msra.mxu0 0
      %288 = vmatpush.bf16.msra.mxu0 0
      %289 = vmatpush.bf16.msra.mxu0 0
      %290 = vmatpush.bf16.msra.mxu0 %v255
      %291 = vmatmul.bf16.gmra.mxu0 %v267
      %v292 = vpop.f32.mrf.mxu0
      %v293 = vadd.f32 %v279, %v292
      %v294 = vpop.f32.mrf.mxu0
      %v295 = vadd.f32 %v281, %v294
      %296 = vdwg.mxu0
      %v297 = vmax.f32 %v293, 0.0
      %v298 = vmax.f32 %v295, 0.0
      %v299 = vpack.c.bf16 %v297, %v297
      %v300 = vpack.c.bf16 %v298, %v298
      %301 = vst [vmem:[%s175] sm:$0xf] %v299
      %302 = vst [vmem:[%s175 + $0x4] sm:$0xf] %v300
      %s303 = smul.u32 2, %s14
      %p304 = scmp.lt.s32.totalorder %s303, 3
      %s305 = scalar_select %p304, %s303, 3
      %s306 = smul.addr %s305, 4
      %s307 = scalar_lea.vmem %s3, %s306
      // Predicated region
      $region33: #{resnet_forward.19} parent=31 // pred_check
        %p308 = pneg %p100
      $region34: #{resnet_forward.19} parent=31 // pred_check_branch
        %310 = sbr.rel (%p308) target = $region36
      $region35: #{resnet_forward.19} parent=31 // pred_region
        %s311 = smul.u32 2, %s14
      $region36: #{resnet_forward.19} parent=31 // pred_fallthru
        _
    $region32: #{resnet_forward.19} parent=5 // pred_fallthru
      _
    %p312 = scmp.le.s32.totalorder 2, %s9
    // Predicated region
    $region37: #{resnet_forward.19} parent=5 // pred_check
      %p313 = pneg %p312
    $region38: #{resnet_forward.19} parent=5 // pred_check_branch
      %315 = sbr.rel (%p313) target = $region40
    $region39: #{resnet_forward.19} parent=5 // pred_region
      %s316 = ssub.s32 %s9, 2
      // Predicated region
      $region41: #{resnet_forward.19} parent=39 // pred_check
        %p317 = pneg %p106
      $region42: #{resnet_forward.19} parent=39 // pred_check_branch
        %319 = sbr.rel (%p317) target = $region44
      $region43: #{resnet_forward.19} parent=39 // pred_region
        %s320 = smul.u32 2, %s15
        %p321 = scmp.lt.s32.totalorder %s320, 3
        %s322 = scalar_select %p321, %s320, 3
        %s323 = smul.addr %s322, 4
        %s324 = scalar_lea.vmem %s3, %s323
      $region44: #{resnet_forward.19} parent=39 // pred_fallthru
        _
    $region40: #{resnet_forward.19} parent=5 // pred_fallthru
      _
  $region6: #{resnet_forward.19} parent=0 // loop_footer
    %s13 = sadd.s32 1, %s9
  $region7: #{resnet_forward.19} parent=0 // loop_footer_branch
    %8 = sbr.rel target = $region3
  $region8: #{resnet_forward.19} parent=0 // loop_exit
    _

// kernel: resnet_forward.23
$region0: #{resnet_forward.23}
  #allocation0 [shape = 'u32[]', space=smem, size = 0x4, offset = 0x4, fixed_abs, tag = 'smem constant byte address 0x4 - core index']
  #allocation1 [shape = 'u32[72,128]{1,0:T(1,128)}', space=vmem, size = 0x9000, scoped, tag = 'internal scratch']
  %s0 = inlined_call_operand.vmem [shape: bf16[8,32], index: 0, kind: input, shape index: {}]
  %s1 = inlined_call_operand.vmem [shape: bf16[32,128], index: 1, kind: input, shape index: {}]
  %s2 = inlined_call_operand.vmem [shape: f32[1,128], index: 2, kind: input, shape index: {}]
  %s3 = inlined_call_operand.vmem [shape: bf16[8,128], index: 3, kind: output, shape index: {}]
  %s4 = sld [smem:[#allocation0]]
  $region22: #{resnet_forward.23} parent=0
    _
  %s6 = ssub.s32 1, %s4
  %s7 = scalar_select 0, %s6, %s4
  // Predicated region
  $region2: #{resnet_forward.23} parent=0 // pred_check
    _
  $region3: #{resnet_forward.23} parent=0 // pred_check_branch
    %9 = sbr.rel (0) target = $region5
  $region4: #{resnet_forward.23} parent=0 // pred_region
    _
  $region5: #{resnet_forward.23} parent=0 // pred_fallthru
    _
  // Predicated region
  $region6: #{resnet_forward.23} parent=0 // pred_check
    _
  $region7: #{resnet_forward.23} parent=0 // pred_check_branch
    %11 = sbr.rel (0) target = $region9
  $region8: #{resnet_forward.23} parent=0 // pred_region
    _
  $region9: #{resnet_forward.23} parent=0 // pred_fallthru
    _
  // Predicated region
  $region10: #{resnet_forward.23} parent=0 // pred_check
    _
  $region11: #{resnet_forward.23} parent=0 // pred_check_branch
    %13 = sbr.rel (0) target = $region13
  $region12: #{resnet_forward.23} parent=0 // pred_region
    _
  $region13: #{resnet_forward.23} parent=0 // pred_fallthru
    _
  %v15 = vld [vmem:[%s0] sm:$0xf]
  %v16 = vld [vmem:[%s1] sm:$0xf]
  %v17 = vld [vmem:[%s1 + $0x4] sm:$0xf]
  %v18 = vld [vmem:[%s1 + $0x8] sm:$0xf]
  %v19 = vld [vmem:[%s1 + $0xc] sm:$0xf]
  %v20 = vld [vmem:[%s2] sm:$0x1]
  %v22 = vperm.slane %v20, 0
  %v28 = vunpack.c.l.b16 %v16
  %v29 = vunpack.c.l.b16 %v17
  %v30 = vunpack.c.l.b16 %v18
  %v31 = vunpack.c.l.b16 %v19
  %v32 = vpack.c.b16 %v29, %v28
  %v33 = vpack.c.b16 %v31, %v30
  %vm36 = vcmask 261120
  %v38 = vsel %vm36, %v15, 0
  %40 = vmatpush.bf16.msra.mxu0 0
  %41 = vmatpush.bf16.msra.mxu0 0
  %42 = vmatpush.bf16.msra.mxu0 0
  %43 = vmatpush.bf16.msra.mxu0 0
  %44 = vmatpush.bf16.msra.mxu0 0
  %45 = vmatpush.bf16.msra.mxu0 0
  %46 = vmatpush.bf16.msra.mxu0 %v33
  %47 = vmatpush.bf16.msra.mxu0 %v32
  %48 = vmatmul.bf16.gmra.mxu0 %v38
  %v49 = vpop.f32.mrf.mxu0
  %v50 = vadd.f32 %v22, %v49
  %v51 = vpop.f32.mrf.mxu0
  %52 = vdwg.mxu0
  %v53 = vpack.c.bf16 %v50, %v50
  %54 = vst [vmem:[%s3] sm:$0xf] %v53
  // Predicated region
  $region14: #{resnet_forward.23} parent=0 // pred_check
    _
  $region15: #{resnet_forward.23} parent=0 // pred_check_branch
    %56 = sbr.rel (0) target = $region17
  $region16: #{resnet_forward.23} parent=0 // pred_region
    _
  $region17: #{resnet_forward.23} parent=0 // pred_fallthru
    _
  // Predicated region
  $region18: #{resnet_forward.23} parent=0 // pred_check
    _
  $region19: #{resnet_forward.23} parent=0 // pred_check_branch
    %58 = sbr.rel (0) target = $region21
  $region20: #{resnet_forward.23} parent=0 // pred_region
    _
  $region21: #{resnet_forward.23} parent=0 // pred_fallthru
    _

// kernel: resnet_forward.21
$region0: #{resnet_forward.21}
  #allocation0 [shape = 'u32[]', space=smem, size = 0x4, offset = 0x4, fixed_abs, tag = 'smem constant byte address 0x4 - core index']
  #allocation1 [shape = 'u32[72,128]{1,0:T(1,128)}', space=vmem, size = 0x9000, scoped, tag = 'internal scratch']
  %s0 = inlined_call_operand.vmem [shape: bf16[32,288], index: 0, kind: input, shape index: {}]
  %s1 = inlined_call_operand.vmem [shape: bf16[288,128], index: 1, kind: input, shape index: {}]
  %s2 = inlined_call_operand.vmem [shape: f32[1,128], index: 2, kind: input, shape index: {}]
  %s3 = inlined_call_operand.vmem [shape: bf16[32,128], index: 3, kind: input, shape index: {}]
  %s4 = inlined_call_operand.vmem [shape: bf16[32,128], index: 4, kind: output, shape index: {}]
  %s5 = sld [smem:[#allocation0]]
  $region49: #{resnet_forward.21} parent=0
    _
  %s7 = ssub.s32 1, %s5
  %s8 = scalar_select 0, %s7, %s5
  loop: start=0, step=1, limit=4
  $region2: #{resnet_forward.21} parent=0 // loop_pre_header
    _
  $region3: #{resnet_forward.21} parent=0 // loop_header
    %s10 = sphi 0, %s14
    %p11 = scmp.ge.s32.totalorder %s10, 4
    %s20 = sphi 0, %s22
    %s23 = sphi 0, %s20
    %s24 = sphi 0, %s23
    %s40 = sphi 0, %s24
    %s44 = sphi 0, %s44
    %s46 = sphi 0, %s44
    %s47 = sphi 0, %s46
    %s61 = sphi 0, %s47
    %s65 = sphi 0, %s65
    %s67 = sphi 0, %s65
    %s68 = sphi 0, %s67
    %s82 = sphi 0, %s68
    %s88 = sphi 0, %s90
    %s91 = sphi 0, %s88
    %s92 = sphi 0, %s91
    %s108 = sphi 0, %s92
    %s114 = sphi 0, %s116
    %s117 = sphi 0, %s114
    %s118 = sphi 0, %s117
    %s134 = sphi 0, %s118
  $region4: #{resnet_forward.21} parent=0 // loop_header_branch
    %13 = sbr.rel (%p11) target = $region8
  $region5: #{resnet_forward.21} parent=0 // loop_body
    %s15 = ssub.s32 %s10, 1
    %s16 = ssub.s32 %s10, 2
    %s17 = sadd.s32 %s10, 1
    %s18 = ssub.s32 %s10, %s17
    %p19 = scmp.eq.s32.totalorder %s18, 0
    %s21 = sadd.s32 %s20, 1
    %s22 = scalar_select %p19, %s20, %s21
    %p25 = pneg %p19
    %p26 = scmp.eq.s32.totalorder %s10, 1
    %p27 = por %p25, %p26
    %p28 = scmp.ne.s32.totalorder %s20, %s23
    %p29 = scmp.eq.s32.totalorder %s10, 0
    %p30 = por %p28, %p29
    %p31 = scmp.ne.s32.totalorder %s20, %s23
    %p32 = scmp.eq.s32.totalorder %s15, 1
    %p33 = por %p31, %p32
    %p34 = scmp.ne.s32.totalorder %s23, %s24
    %p35 = scmp.eq.s32.totalorder %s15, 0
    %p36 = por %p34, %p35
    %p37 = scmp.ne.s32.totalorder %s23, %s24
    %p38 = scmp.eq.s32.totalorder %s16, 1
    %p39 = por %p37, %p38
    %p41 = scmp.ne.s32.totalorder %s24, %s40
    %p42 = scmp.eq.s32.totalorder %s16, 0
    %p43 = por %p41, %p42
    %s45 = sadd.s32 %s44, 1
    %p48 = scmp.eq.s32.totalorder %s10, 1
    %p49 = scmp.ne.s32.totalorder %s44, %s46
    %p50 = scmp.eq.s32.totalorder %s10, 0
    %p51 = por %p49, %p50
    %p52 = scmp.ne.s32.totalorder %s44, %s46
    %p53 = scmp.eq.s32.totalorder %s15, 1
    %p54 = por %p52, %p53
    %p55 = scmp.ne.s32.totalorder %s46, %s47
    %p56 = scmp.eq.s32.totalorder %s15, 0
    %p57 = por %p55, %p56
    %p58 = scmp.ne.s32.totalorder %s46, %s47
    %p59 = scmp.eq.s32.totalorder %s16, 1
    %p60 = por %p58, %p59
    %p62 = scmp.ne.s32.totalorder %s47, %s61
    %p63 = scmp.eq.s32.totalorder %s16, 0
    %p64 = por %p62, %p63
    %s66 = sadd.s32 %s65, 1
    %p69 = scmp.eq.s32.totalorder %s10, 1
    %p70 = scmp.ne.s32.totalorder %s65, %s67
    %p71 = scmp.eq.s32.totalorder %s10, 0
    %p72 = por %p70, %p71
    %p73 = scmp.ne.s32.totalorder %s65, %s67
    %p74 = scmp.eq.s32.totalorder %s15, 1
    %p75 = por %p73, %p74
    %p76 = scmp.ne.s32.totalorder %s67, %s68
    %p77 = scmp.eq.s32.totalorder %s15, 0
    %p78 = por %p76, %p77
    %p79 = scmp.ne.s32.totalorder %s67, %s68
    %p80 = scmp.eq.s32.totalorder %s16, 1
    %p81 = por %p79, %p80
    %p83 = scmp.ne.s32.totalorder %s68, %s82
    %p84 = scmp.eq.s32.totalorder %s16, 0
    %p85 = por %p83, %p84
    %s86 = ssub.s32 %s10, %s17
    %p87 = scmp.eq.s32.totalorder %s86, 0
    %s89 = sadd.s32 %s88, 1
    %s90 = scalar_select %p87, %s88, %s89
    %p93 = pneg %p87
    %p94 = scmp.eq.s32.totalorder %s10, 1
    %p95 = por %p93, %p94
    %p96 = scmp.ne.s32.totalorder %s88, %s91
    %p97 = scmp.eq.s32.totalorder %s10, 0
    %p98 = por %p96, %p97
    %p99 = scmp.ne.s32.totalorder %s88, %s91
    %p100 = scmp.eq.s32.totalorder %s15, 1
    %p101 = por %p99, %p100
    %p102 = scmp.ne.s32.totalorder %s91, %s92
    %p103 = scmp.eq.s32.totalorder %s15, 0
    %p104 = por %p102, %p103
    %p105 = scmp.ne.s32.totalorder %s91, %s92
    %p106 = scmp.eq.s32.totalorder %s16, 1
    %p107 = por %p105, %p106
    %p109 = scmp.ne.s32.totalorder %s92, %s108
    %p110 = scmp.eq.s32.totalorder %s16, 0
    %p111 = por %p109, %p110
    %s112 = ssub.s32 %s10, %s17
    %p113 = scmp.eq.s32.totalorder %s112, 0
    %s115 = sadd.s32 %s114, 1
    %s116 = scalar_select %p113, %s114, %s115
    %p119 = pneg %p113
    %p120 = scmp.eq.s32.totalorder %s10, 1
    %p121 = por %p119, %p120
    %p122 = scmp.ne.s32.totalorder %s114, %s117
    %p123 = scmp.eq.s32.totalorder %s10, 0
    %p124 = por %p122, %p123
    %p125 = scmp.ne.s32.totalorder %s114, %s117
    %p126 = scmp.eq.s32.totalorder %s15, 1
    %p127 = por %p125, %p126
    %p128 = scmp.ne.s32.totalorder %s117, %s118
    %p129 = scmp.eq.s32.totalorder %s15, 0
    %p130 = por %p128, %p129
    %p131 = scmp.ne.s32.totalorder %s117, %s118
    %p132 = scmp.eq.s32.totalorder %s16, 1
    %p133 = por %p131, %p132
    %p135 = scmp.ne.s32.totalorder %s118, %s134
    %p136 = scmp.eq.s32.totalorder %s16, 0
    %p137 = por %p135, %p136
    %p138 = scmp.le.s32.totalorder 1, %s10
    %p139 = scmp.lt.s32.totalorder %s10, 3
    %p140 = pnand %p138, %p139
    %p141 = pneg %p140
    // Predicated region
    $region9: #{resnet_forward.21} parent=5 // pred_check
      _
    $region10: #{resnet_forward.21} parent=5 // pred_check_branch
      %143 = sbr.rel (%p140) target = $region12
    $region11: #{resnet_forward.21} parent=5 // pred_region
      %s144 = ssub.s32 %s10, 1
      // Predicated region
      $region13: #{resnet_forward.21} parent=11 // pred_check
        %p145 = pneg %p57
      $region14: #{resnet_forward.21} parent=11 // pred_check_branch
        %147 = sbr.rel (%p145) target = $region16
      $region15: #{resnet_forward.21} parent=11 // pred_region
        _
      $region16: #{resnet_forward.21} parent=11 // pred_fallthru
        _
      // Predicated region
      $region17: #{resnet_forward.21} parent=11 // pred_check
        %p148 = pneg %p78
      $region18: #{resnet_forward.21} parent=11 // pred_check_branch
        %150 = sbr.rel (%p148) target = $region20
      $region19: #{resnet_forward.21} parent=11 // pred_region
        _
      $region20: #{resnet_forward.21} parent=11 // pred_fallthru
        _
    $region12: #{resnet_forward.21} parent=5 // pred_fallthru
      _
    %p151 = scmp.lt.s32.totalorder %s10, 2
    // Predicated region
    $region21: #{resnet_forward.21} parent=5 // pred_check
      %p152 = pneg %p151
    $region22: #{resnet_forward.21} parent=5 // pred_check_branch
      %154 = sbr.rel (%p152) target = $region24
    $region23: #{resnet_forward.21} parent=5 // pred_region
      // Predicated region
      $region25: #{resnet_forward.21} parent=23 // pred_check
        %p155 = pneg %p30
      $region26: #{resnet_forward.21} parent=23 // pred_check_branch
        %157 = sbr.rel (%p155) target = $region28
      $region27: #{resnet_forward.21} parent=23 // pred_region
        %s158 = smul.u32 2, %s10
        %p159 = scmp.lt.s32.totalorder %s158, 3
        %s160 = scalar_select %p159, %s158, 3
        %s161 = smul.addr %s160, 3
        %s162 = smul.addr %s161, 4
        %s163 = scalar_lea.vmem %s0, %s162
        %s164 = smul.u32 2, %s10
      $region28: #{resnet_forward.21} parent=23 // pred_fallthru
        _
      // Predicated region
      $region29: #{resnet_forward.21} parent=23 // pred_check
        %p165 = pneg %p98
      $region30: #{resnet_forward.21} parent=23 // pred_check_branch
        %167 = sbr.rel (%p165) target = $region32
      $region31: #{resnet_forward.21} parent=23 // pred_region
        %s168 = smul.u32 2, %s10
        %p169 = scmp.lt.s32.totalorder %s168, 3
        %s170 = scalar_select %p169, %s168, 3
        %s171 = smul.addr %s170, 4
        %s172 = scalar_lea.vmem %s3, %s171
        %s173 = smul.u32 2, %s10
      $region32: #{resnet_forward.21} parent=23 // pred_fallthru
        _
    $region24: #{resnet_forward.21} parent=5 // pred_fallthru
      _
    %p174 = scmp.le.s32.totalorder 1, %s10
    %p175 = scmp.lt.s32.totalorder %s10, 3
    %p176 = pnand %p174, %p175
    %p177 = pneg %p176
    // Predicated region
    $region33: #{resnet_forward.21} parent=5 // pred_check
      _
    $region34: #{resnet_forward.21} parent=5 // pred_check_branch
      %179 = sbr.rel (%p176) target = $region36
    $region35: #{resnet_forward.21} parent=5 // pred_region
      %s180 = ssub.s32 %s10, 1
      %s181 = smul.u32 2, %s15
      %p182 = scmp.lt.s32.totalorder %s181, 3
      %s183 = scalar_select %p182, %s181, 3
      %s184 = smul.addr %s183, 3
      %s185 = smul.addr %s184, 4
      %s186 = scalar_lea.vmem %s0, %s185
      %p187 = pneg %p36
      %p188 = pneg %p33
      %p189 = pneg %p57
      %p190 = pneg %p54
      %p191 = pneg %p78
      %p192 = pneg %p75
      %s193 = smul.u32 2, %s15
      %p194 = scmp.lt.s32.totalorder %s193, 3
      %s195 = scalar_select %p194, %s193, 3
      %s196 = smul.addr %s195, 4
      %s197 = scalar_lea.vmem %s3, %s196
      %p198 = pneg %p104
      %p199 = pneg %p101
      %p200 = pneg %p130
      %p201 = pneg %p127
      %s202 = smul.u32 2, %s15
      %p203 = scmp.lt.s32.totalorder %s202, 3
      %s204 = scalar_select %p203, %s202, 3
      %s205 = smul.addr %s204, 4
      %s206 = scalar_lea.vmem %s4, %s205
      %s207 = smul.u32 2, %s15
      %p208 = scmp.lt.s32.totalorder %s207, 3
      %s209 = scalar_select %p208, %s207, 3
      %s210 = smul.addr %s209, 3
      %s211 = smul.addr %s210, 4
      %s212 = scalar_lea.vmem %s0, %s211
      %s213 = smul.u32 2, %s15
      %s214 = smul.u32 2, %s15
      %p215 = scmp.lt.s32.totalorder %s214, 3
      %s216 = scalar_select %p215, %s214, 3
      %s217 = smul.addr %s216, 4
      %s218 = scalar_lea.vmem %s3, %s217
      %s219 = smul.u32 2, %s15
      %s220 = smul.u32 2, %s15
      %p221 = scmp.lt.s32.totalorder %s220, 3
      %s222 = scalar_select %p221, %s220, 3
      %s223 = smul.addr %s222, 4
      %s224 = scalar_lea.vmem %s4, %s223
      %s225 = smul.u32 2, %s15
      %v227 = vld [vmem:[%s212] sm:$0xff]
      %v228 = vld [vmem:[%s212 + $0x8] sm:$0xf]
      %v229 = vld [vmem:[%s212 + $0xc] sm:$0xff]
      %v230 = vld [vmem:[%s212 + $0x14] sm:$0xf]
      %v231 = vld [vmem:[%s1] sm:$0xf]
      %v232 = vld [vmem:[%s1 + $0x4] sm:$0xf]
      %v233 = vld [vmem:[%s1 + $0x8] sm:$0xf]
      %v234 = vld [vmem:[%s1 + $0xc] sm:$0xf]
      %v235 = vld [vmem:[%s1 + $0x10] sm:$0xf]
      %v236 = vld [vmem:[%s1 + $0x14] sm:$0xf]
      %v237 = vld [vmem:[%s1 + $0x18] sm:$0xf]
      %v238 = vld [vmem:[%s1 + $0x1c] sm:$0xf]
      %v239 = vld [vmem:[%s1 + $0x20] sm:$0xf]
      %v240 = vld [vmem:[%s1 + $0x24] sm:$0xf]
      %v241 = vld [vmem:[%s1 + $0x28] sm:$0xf]
      %v242 = vld [vmem:[%s1 + $0x2c] sm:$0xf]
      %v243 = vld [vmem:[%s1 + $0x30] sm:$0xf]
      %v244 = vld [vmem:[%s1 + $0x34] sm:$0xf]
      %v245 = vld [vmem:[%s1 + $0x38] sm:$0xf]
      %v246 = vld [vmem:[%s1 + $0x3c] sm:$0xf]
      %v247 = vld [vmem:[%s1 + $0x40] sm:$0xf]
      %v248 = vld [vmem:[%s1 + $0x44] sm:$0xf]
      %v249 = vld [vmem:[%s1 + $0x48] sm:$0xf]
      %v250 = vld [vmem:[%s1 + $0x4c] sm:$0xf]
      %v251 = vld [vmem:[%s1 + $0x50] sm:$0xf]
      %v252 = vld [vmem:[%s1 + $0x54] sm:$0xf]
      %v253 = vld [vmem:[%s1 + $0x58] sm:$0xf]
      %v254 = vld [vmem:[%s1 + $0x5c] sm:$0xf]
      %v255 = vld [vmem:[%s1 + $0x60] sm:$0xf]
      %v256 = vld [vmem:[%s1 + $0x64] sm:$0xf]
      %v257 = vld [vmem:[%s1 + $0x68] sm:$0xf]
      %v258 = vld [vmem:[%s1 + $0x6c] sm:$0xf]
      %v259 = vld [vmem:[%s1 + $0x70] sm:$0xf]
      %v260 = vld [vmem:[%s1 + $0x74] sm:$0xf]
      %v261 = vld [vmem:[%s1 + $0x78] sm:$0xf]
      %v262 = vld [vmem:[%s1 + $0x7c] sm:$0xf]
      %v263 = vld [vmem:[%s1 + $0x80] sm:$0xf]
      %v264 = vld [vmem:[%s1 + $0x84] sm:$0xf]
      %v265 = vld [vmem:[%s1 + $0x88] sm:$0xf]
      %v266 = vld [vmem:[%s1 + $0x8c] sm:$0xf]
      %v267 = vld [vmem:[%s2] sm:$0x1]
      %v269 = vperm.slane %v267, 0
      %v275 = vunpack.c.l.b16 %v227
      %v276 = vunpack.c.h.b16 %v227
      %v277 = vunpack.c.l.b16 %v228
      %v278 = vunpack.c.l.b16 %v229
      %v279 = vunpack.c.h.b16 %v229
      %v280 = vunpack.c.l.b16 %v230
      %v281 = vpack.c.b16 %v278, %v275
      %v282 = vpack.c.b16 %v279, %v276
      %v283 = vpack.c.b16 %v280, %v277
      %v322 = vunpack.c.l.b16 %v231
      %v323 = vunpack.c.l.b16 %v232
      %v324 = vunpack.c.l.b16 %v233
      %v325 = vunpack.c.l.b16 %v234
      %v326 = vunpack.c.l.b16 %v235
      %v327 = vunpack.c.l.b16 %v236
      %v328 = vunpack.c.l.b16 %v237
      %v329 = vunpack.c.l.b16 %v238
      %v330 = vunpack.c.l.b16 %v239
      %v331 = vunpack.c.l.b16 %v240
      %v332 = vunpack.c.l.b16 %v241
      %v333 = vunpack.c.l.b16 %v242
      %v334 = vunpack.c.l.b16 %v243
      %v335 = vunpack.c.l.b16 %v244
      %v336 = vunpack.c.l.b16 %v245
      %v337 = vunpack.c.l.b16 %v246
      %v338 = vunpack.c.l.b16 %v247
      %v339 = vunpack.c.l.b16 %v248
      %v340 = vunpack.c.l.b16 %v249
      %v341 = vunpack.c.l.b16 %v250
      %v342 = vunpack.c.l.b16 %v251
      %v343 = vunpack.c.l.b16 %v252
      %v344 = vunpack.c.l.b16 %v253
      %v345 = vunpack.c.l.b16 %v254
      %v346 = vunpack.c.l.b16 %v255
      %v347 = vunpack.c.l.b16 %v256
      %v348 = vunpack.c.l.b16 %v257
      %v349 = vunpack.c.l.b16 %v258
      %v350 = vunpack.c.l.b16 %v259
      %v351 = vunpack.c.l.b16 %v260
      %v352 = vunpack.c.l.b16 %v261
      %v353 = vunpack.c.l.b16 %v262
      %v354 = vunpack.c.l.b16 %v263
      %v355 = vunpack.c.l.b16 %v264
      %v356 = vunpack.c.l.b16 %v265
      %v357 = vunpack.c.l.b16 %v266
      %v358 = vpack.c.b16 %v323, %v322
      %v359 = vpack.c.b16 %v325, %v324
      %v360 = vpack.c.b16 %v327, %v326
      %v361 = vpack.c.b16 %v329, %v328
      %v362 = vpack.c.b16 %v331, %v330
      %v363 = vpack.c.b16 %v333, %v332
      %v364 = vpack.c.b16 %v335, %v334
      %v365 = vpack.c.b16 %v337, %v336
      %v366 = vpack.c.b16 %v339, %v338
      %v367 = vpack.c.b16 %v341, %v340
      %v368 = vpack.c.b16 %v343, %v342
      %v369 = vpack.c.b16 %v345, %v344
      %v370 = vpack.c.b16 %v347, %v346
      %v371 = vpack.c.b16 %v349, %v348
      %v372 = vpack.c.b16 %v351, %v350
      %v373 = vpack.c.b16 %v353, %v352
      %v374 = vpack.c.b16 %v355, %v354
      %v375 = vpack.c.b16 %v357, %v356
      %vm394 = vcmask 261120
      %v396 = vsel %vm394, %v283, 0
      %398 = vmatpush.bf16.msra.mxu0 %v365
      %399 = vmatpush.bf16.msra.mxu0 %v364
      %400 = vmatpush.bf16.msra.mxu0 %v363
      %401 = vmatpush.bf16.msra.mxu0 %v362
      %402 = vmatpush.bf16.msra.mxu0 %v361
      %403 = vmatpush.bf16.msra.mxu0 %v360
      %404 = vmatpush.bf16.msra.mxu0 %v359
      %405 = vmatpush.bf16.msra.mxu0 %v358
      %406 = vmatmul.bf16.gmra.mxu0 %v281
      %v407 = vpop.f32.mrf.mxu0
      %v408 = vadd.f32 %v269, %v407
      %v409 = vpop.f32.mrf.mxu0
      %v410 = vadd.f32 %v269, %v409
      %411 = vdwg.mxu0
      %412 = vmatpush.bf16.msra.mxu0 %v373
      %413 = vmatpush.bf16.msra.mxu0 %v372
      %414 = vmatpush.bf16.msra.mxu0 %v371
      %415 = vmatpush.bf16.msra.mxu0 %v370
      %416 = vmatpush.bf16.msra.mxu0 %v369
      %417 = vmatpush.bf16.msra.mxu0 %v368
      %418 = vmatpush.bf16.msra.mxu0 %v367
      %419 = vmatpush.bf16.msra.mxu0 %v366
      %420 = vmatmul.bf16.gmra.mxu0 %v282
      %v421 = vpop.f32.mrf.mxu0
      %v422 = vadd.f32 %v408, %v421
      %v423 = vpop.f32.mrf.mxu0
      %v424 = vadd.f32 %v410, %v423
      %425 = vdwg.mxu0
      %426 = vmatpush.bf16.msra.mxu0 0
      %427 = vmatpush.bf16.msra.mxu0 0
      %428 = vmatpush.bf16.msra.mxu0 0
      %429 = vmatpush.bf16.msra.mxu0 0
      %430 = vmatpush.bf16.msra.mxu0 0
      %431 = vmatpush.bf16.msra.mxu0 0
      %432 = vmatpush.bf16.msra.mxu0 %v375
      %433 = vmatpush.bf16.msra.mxu0 %v374
      %434 = vmatmul.bf16.gmra.mxu0 %v396
      %v435 = vpop.f32.mrf.mxu0
      %v436 = vadd.f32 %v422, %v435
      %v437 = vpop.f32.mrf.mxu0
      %v438 = vadd.f32 %v424, %v437
      %439 = vdwg.mxu0
      %v440 = vld [vmem:[%s218] sm:$0xf]
      %v441 = vld [vmem:[%s218 + $0x4] sm:$0xf]
      %v442 = vunpack.c.l.bf16 %v440
      %v443 = vunpack.c.l.bf16 %v441
      %v444 = vadd.f32 %v436, %v442
      %v445 = vadd.f32 %v438, %v443
      %v446 = vmax.f32 %v444, 0.0
      %v447 = vmax.f32 %v445, 0.0
      %v448 = vpack.c.bf16 %v446, %v446
      %v449 = vpack.c.bf16 %v447, %v447
      %450 = vst [vmem:[%s224] sm:$0xf] %v448
      %451 = vst [vmem:[%s224 + $0x4] sm:$0xf] %v449
      %s452 = smul.u32 2, %s15
      %p453 = scmp.lt.s32.totalorder %s452, 3
      %s454 = scalar_select %p453, %s452, 3
      %s455 = smul.addr %s454, 4
      %s456 = scalar_lea.vmem %s4, %s455
      // Predicated region
      $region37: #{resnet_forward.21} parent=35 // pred_check
        %p457 = pneg %p127
      $region38: #{resnet_forward.21} parent=35 // pred_check_branch
        %459 = sbr.rel (%p457) target = $region40
      $region39: #{resnet_forward.21} parent=35 // pred_region
        %s460 = smul.u32 2, %s15
      $region40: #{resnet_forward.21} parent=35 // pred_fallthru
        _
    $region36: #{resnet_forward.21} parent=5 // pred_fallthru
      _
    %p461 = scmp.le.s32.totalorder 2, %s10
    // Predicated region
    $region41: #{resnet_forward.21} parent=5 // pred_check
      %p462 = pneg %p461
    $region42: #{resnet_forward.21} parent=5 // pred_check_branch
      %464 = sbr.rel (%p462) target = $region44
    $region43: #{resnet_forward.21} parent=5 // pred_region
      %s465 = ssub.s32 %s10, 2
      // Predicated region
      $region45: #{resnet_forward.21} parent=43 // pred_check
        %p466 = pneg %p133
      $region46: #{resnet_forward.21} parent=43 // pred_check_branch
        %468 = sbr.rel (%p466) target = $region48
      $region47: #{resnet_forward.21} parent=43 // pred_region
        %s469 = smul.u32 2, %s16
        %p470 = scmp.lt.s32.totalorder %s469, 3
        %s471 = scalar_select %p470, %s469, 3
        %s472 = smul.addr %s471, 4
        %s473 = scalar_lea.vmem %s4, %s472
      $region48: #{resnet_forward.21} parent=43 // pred_fallthru
        _
    $region44: #{resnet_forward.21} parent=5 // pred_fallthru
      _
  $region6: #{resnet_forward.21} parent=0 // loop_footer
    %s14 = sadd.s32 1, %s10
  $region7: #{resnet_forward.21} parent=0 // loop_footer_branch
    %9 = sbr.rel target = $region3
  $region8: #{resnet_forward.21} parent=0 // loop_exit
    _

// kernel: resnet_forward.22
$region0: #{resnet_forward.22}
  #allocation0 [shape = 'u32[]', space=smem, size = 0x4, offset = 0x4, fixed_abs, tag = 'smem constant byte address 0x4 - core index']
  #allocation1 [shape = 'u32[72,128]{1,0:T(1,128)}', space=vmem, size = 0x9000, scoped, tag = 'internal scratch']
  %s0 = inlined_call_operand.vmem [shape: bf16[8,288], index: 0, kind: input, shape index: {}]
  %s1 = inlined_call_operand.vmem [shape: bf16[288,128], index: 1, kind: input, shape index: {}]
  %s2 = inlined_call_operand.vmem [shape: f32[1,128], index: 2, kind: input, shape index: {}]
  %s3 = inlined_call_operand.vmem [shape: bf16[8,128], index: 3, kind: output, shape index: {}]
  %s4 = sld [smem:[#allocation0]]
  $region22: #{resnet_forward.22} parent=0
    _
  %s6 = ssub.s32 1, %s4
  %s7 = scalar_select 0, %s6, %s4
  // Predicated region
  $region2: #{resnet_forward.22} parent=0 // pred_check
    _
  $region3: #{resnet_forward.22} parent=0 // pred_check_branch
    %9 = sbr.rel (0) target = $region5
  $region4: #{resnet_forward.22} parent=0 // pred_region
    _
  $region5: #{resnet_forward.22} parent=0 // pred_fallthru
    _
  // Predicated region
  $region6: #{resnet_forward.22} parent=0 // pred_check
    _
  $region7: #{resnet_forward.22} parent=0 // pred_check_branch
    %11 = sbr.rel (0) target = $region9
  $region8: #{resnet_forward.22} parent=0 // pred_region
    _
  $region9: #{resnet_forward.22} parent=0 // pred_fallthru
    _
  // Predicated region
  $region10: #{resnet_forward.22} parent=0 // pred_check
    _
  $region11: #{resnet_forward.22} parent=0 // pred_check_branch
    %13 = sbr.rel (0) target = $region13
  $region12: #{resnet_forward.22} parent=0 // pred_region
    _
  $region13: #{resnet_forward.22} parent=0 // pred_fallthru
    _
  %v15 = vld [vmem:[%s0] sm:$0xff]
  %v16 = vld [vmem:[%s0 + $0x8] sm:$0xf]
  %v17 = vld [vmem:[%s1] sm:$0xf]
  %v18 = vld [vmem:[%s1 + $0x4] sm:$0xf]
  %v19 = vld [vmem:[%s1 + $0x8] sm:$0xf]
  %v20 = vld [vmem:[%s1 + $0xc] sm:$0xf]
  %v21 = vld [vmem:[%s1 + $0x10] sm:$0xf]
  %v22 = vld [vmem:[%s1 + $0x14] sm:$0xf]
  %v23 = vld [vmem:[%s1 + $0x18] sm:$0xf]
  %v24 = vld [vmem:[%s1 + $0x1c] sm:$0xf]
  %v25 = vld [vmem:[%s1 + $0x20] sm:$0xf]
  %v26 = vld [vmem:[%s1 + $0x24] sm:$0xf]
  %v27 = vld [vmem:[%s1 + $0x28] sm:$0xf]
  %v28 = vld [vmem:[%s1 + $0x2c] sm:$0xf]
  %v29 = vld [vmem:[%s1 + $0x30] sm:$0xf]
  %v30 = vld [vmem:[%s1 + $0x34] sm:$0xf]
  %v31 = vld [vmem:[%s1 + $0x38] sm:$0xf]
  %v32 = vld [vmem:[%s1 + $0x3c] sm:$0xf]
  %v33 = vld [vmem:[%s1 + $0x40] sm:$0xf]
  %v34 = vld [vmem:[%s1 + $0x44] sm:$0xf]
  %v35 = vld [vmem:[%s1 + $0x48] sm:$0xf]
  %v36 = vld [vmem:[%s1 + $0x4c] sm:$0xf]
  %v37 = vld [vmem:[%s1 + $0x50] sm:$0xf]
  %v38 = vld [vmem:[%s1 + $0x54] sm:$0xf]
  %v39 = vld [vmem:[%s1 + $0x58] sm:$0xf]
  %v40 = vld [vmem:[%s1 + $0x5c] sm:$0xf]
  %v41 = vld [vmem:[%s1 + $0x60] sm:$0xf]
  %v42 = vld [vmem:[%s1 + $0x64] sm:$0xf]
  %v43 = vld [vmem:[%s1 + $0x68] sm:$0xf]
  %v44 = vld [vmem:[%s1 + $0x6c] sm:$0xf]
  %v45 = vld [vmem:[%s1 + $0x70] sm:$0xf]
  %v46 = vld [vmem:[%s1 + $0x74] sm:$0xf]
  %v47 = vld [vmem:[%s1 + $0x78] sm:$0xf]
  %v48 = vld [vmem:[%s1 + $0x7c] sm:$0xf]
  %v49 = vld [vmem:[%s1 + $0x80] sm:$0xf]
  %v50 = vld [vmem:[%s1 + $0x84] sm:$0xf]
  %v51 = vld [vmem:[%s1 + $0x88] sm:$0xf]
  %v52 = vld [vmem:[%s1 + $0x8c] sm:$0xf]
  %v53 = vld [vmem:[%s2] sm:$0x1]
  %v55 = vperm.slane %v53, 0
  %v59 = vunpack.c.l.b16 %v15
  %v60 = vunpack.c.h.b16 %v15
  %v61 = vunpack.c.l.b16 %v16
  %v62 = vpack.c.b16 %v59, %v59
  %v63 = vpack.c.b16 %v60, %v60
  %v64 = vpack.c.b16 %v61, %v61
  %v103 = vunpack.c.l.b16 %v17
  %v104 = vunpack.c.l.b16 %v18
  %v105 = vunpack.c.l.b16 %v19
  %v106 = vunpack.c.l.b16 %v20
  %v107 = vunpack.c.l.b16 %v21
  %v108 = vunpack.c.l.b16 %v22
  %v109 = vunpack.c.l.b16 %v23
  %v110 = vunpack.c.l.b16 %v24
  %v111 = vunpack.c.l.b16 %v25
  %v112 = vunpack.c.l.b16 %v26
  %v113 = vunpack.c.l.b16 %v27
  %v114 = vunpack.c.l.b16 %v28
  %v115 = vunpack.c.l.b16 %v29
  %v116 = vunpack.c.l.b16 %v30
  %v117 = vunpack.c.l.b16 %v31
  %v118 = vunpack.c.l.b16 %v32
  %v119 = vunpack.c.l.b16 %v33
  %v120 = vunpack.c.l.b16 %v34
  %v121 = vunpack.c.l.b16 %v35
  %v122 = vunpack.c.l.b16 %v36
  %v123 = vunpack.c.l.b16 %v37
  %v124 = vunpack.c.l.b16 %v38
  %v125 = vunpack.c.l.b16 %v39
  %v126 = vunpack.c.l.b16 %v40
  %v127 = vunpack.c.l.b16 %v41
  %v128 = vunpack.c.l.b16 %v42
  %v129 = vunpack.c.l.b16 %v43
  %v130 = vunpack.c.l.b16 %v44
  %v131 = vunpack.c.l.b16 %v45
  %v132 = vunpack.c.l.b16 %v46
  %v133 = vunpack.c.l.b16 %v47
  %v134 = vunpack.c.l.b16 %v48
  %v135 = vunpack.c.l.b16 %v49
  %v136 = vunpack.c.l.b16 %v50
  %v137 = vunpack.c.l.b16 %v51
  %v138 = vunpack.c.l.b16 %v52
  %v139 = vpack.c.b16 %v104, %v103
  %v140 = vpack.c.b16 %v106, %v105
  %v141 = vpack.c.b16 %v108, %v107
  %v142 = vpack.c.b16 %v110, %v109
  %v143 = vpack.c.b16 %v112, %v111
  %v144 = vpack.c.b16 %v114, %v113
  %v145 = vpack.c.b16 %v116, %v115
  %v146 = vpack.c.b16 %v118, %v117
  %v147 = vpack.c.b16 %v120, %v119
  %v148 = vpack.c.b16 %v122, %v121
  %v149 = vpack.c.b16 %v124, %v123
  %v150 = vpack.c.b16 %v126, %v125
  %v151 = vpack.c.b16 %v128, %v127
  %v152 = vpack.c.b16 %v130, %v129
  %v153 = vpack.c.b16 %v132, %v131
  %v154 = vpack.c.b16 %v134, %v133
  %v155 = vpack.c.b16 %v136, %v135
  %v156 = vpack.c.b16 %v138, %v137
  %vm175 = vcmask 261120
  %v177 = vsel %vm175, %v64, 0
  %179 = vmatpush.bf16.msra.mxu0 %v146
  %180 = vmatpush.bf16.msra.mxu0 %v145
  %181 = vmatpush.bf16.msra.mxu0 %v144
  %182 = vmatpush.bf16.msra.mxu0 %v143
  %183 = vmatpush.bf16.msra.mxu0 %v142
  %184 = vmatpush.bf16.msra.mxu0 %v141
  %185 = vmatpush.bf16.msra.mxu0 %v140
  %186 = vmatpush.bf16.msra.mxu0 %v139
  %187 = vmatmul.bf16.gmra.mxu0 %v62
  %v188 = vpop.f32.mrf.mxu0
  %v189 = vadd.f32 %v55, %v188
  %v190 = vpop.f32.mrf.mxu0
  %191 = vdwg.mxu0
  %192 = vmatpush.bf16.msra.mxu0 %v154
  %193 = vmatpush.bf16.msra.mxu0 %v153
  %194 = vmatpush.bf16.msra.mxu0 %v152
  %195 = vmatpush.bf16.msra.mxu0 %v151
  %196 = vmatpush.bf16.msra.mxu0 %v150
  %197 = vmatpush.bf16.msra.mxu0 %v149
  %198 = vmatpush.bf16.msra.mxu0 %v148
  %199 = vmatpush.bf16.msra.mxu0 %v147
  %200 = vmatmul.bf16.gmra.mxu0 %v63
  %v201 = vpop.f32.mrf.mxu0
  %v202 = vadd.f32 %v189, %v201
  %v203 = vpop.f32.mrf.mxu0
  %204 = vdwg.mxu0
  %205 = vmatpush.bf16.msra.mxu0 0
  %206 = vmatpush.bf16.msra.mxu0 0
  %207 = vmatpush.bf16.msra.mxu0 0
  %208 = vmatpush.bf16.msra.mxu0 0
  %209 = vmatpush.bf16.msra.mxu0 0
  %210 = vmatpush.bf16.msra.mxu0 0
  %211 = vmatpush.bf16.msra.mxu0 %v156
  %212 = vmatpush.bf16.msra.mxu0 %v155
  %213 = vmatmul.bf16.gmra.mxu0 %v177
  %v214 = vpop.f32.mrf.mxu0
  %v215 = vadd.f32 %v202, %v214
  %v216 = vpop.f32.mrf.mxu0
  %217 = vdwg.mxu0
  %v218 = vmax.f32 %v215, 0.0
  %v219 = vpack.c.bf16 %v218, %v218
  %220 = vst [vmem:[%s3] sm:$0xf] %v219
  // Predicated region
  $region14: #{resnet_forward.22} parent=0 // pred_check
    _
  $region15: #{resnet_forward.22} parent=0 // pred_check_branch
    %222 = sbr.rel (0) target = $region17
  $region16: #{resnet_forward.22} parent=0 // pred_region
    _
  $region17: #{resnet_forward.22} parent=0 // pred_fallthru
    _
  // Predicated region
  $region18: #{resnet_forward.22} parent=0 // pred_check
    _
  $region19: #{resnet_forward.22} parent=0 // pred_check_branch
    %224 = sbr.rel (0) target = $region21
  $region20: #{resnet_forward.22} parent=0 // pred_region
    _
  $region21: #{resnet_forward.22} parent=0 // pred_fallthru
    _

// kernel: resnet_forward.25
$region0: #{resnet_forward.25}
  #allocation0 [shape = 'u32[]', space=smem, size = 0x4, offset = 0x4, fixed_abs, tag = 'smem constant byte address 0x4 - core index']
  #allocation1 [shape = 'u32[72,128]{1,0:T(1,128)}', space=vmem, size = 0x9000, scoped, tag = 'internal scratch']
  %s0 = inlined_call_operand.vmem [shape: bf16[2,4,128], index: 0, kind: input, shape index: {}]
  %s1 = inlined_call_operand.vmem [shape: f32[128,128], index: 1, kind: input, shape index: {}]
  %s2 = inlined_call_operand.vmem [shape: f32[1,128], index: 2, kind: input, shape index: {}]
  %s3 = inlined_call_operand.hbm [shape: f32[2,128], index: 3, kind: output, shape index: {}]
  %s4 = sld [smem:[#allocation0]]
  $region22: #{resnet_forward.25} parent=0
    _
  %s6 = ssub.s32 1, %s4
  %s7 = scalar_select 0, %s6, %s4
  $region1: #{resnet_forward.25} parent=0
    #allocation2 [shape = 'u8[1024]{0}', space=vmem, size = 0x400, scoped, tag = 'output window, operand 0, single buffered']
    #allocation3 [shape = 's32[1]{0}', space=sflag, size = 0x4, scoped, tag = 'scoped memory for resnet_forward.25']
    %8 = vsyncpa [#allocation3], 0
    // Predicated region
    $region2: #{resnet_forward.25} parent=1 // pred_check
      _
    $region3: #{resnet_forward.25} parent=1 // pred_check_branch
      %10 = sbr.rel (0) target = $region5
    $region4: #{resnet_forward.25} parent=1 // pred_region
      _
    $region5: #{resnet_forward.25} parent=1 // pred_fallthru
      _
    // Predicated region
    $region6: #{resnet_forward.25} parent=1 // pred_check
      _
    $region7: #{resnet_forward.25} parent=1 // pred_check_branch
      %12 = sbr.rel (0) target = $region9
    $region8: #{resnet_forward.25} parent=1 // pred_region
      _
    $region9: #{resnet_forward.25} parent=1 // pred_fallthru
      _
    // Predicated region
    $region10: #{resnet_forward.25} parent=1 // pred_check
      _
    $region11: #{resnet_forward.25} parent=1 // pred_check_branch
      %14 = sbr.rel (0) target = $region13
    $region12: #{resnet_forward.25} parent=1 // pred_region
      _
    $region13: #{resnet_forward.25} parent=1 // pred_fallthru
      _
    %v15 = vld [vmem:[%s0] sm:$0x3]
    %v16 = vld [vmem:[%s0 + $0x2] sm:$0x3]
    %v17 = vunpack.c.l.bf16 %v15
    %v18 = vunpack.c.l.bf16 %v16
    %vm19 = vcmask 1043456
    %v20 = vsel %vm19, %v17, 0.0
    %v21 = vrot.slane %v20, 4
    %v22 = vadd.f32 %v20, %v21
    %v23 = vrot.slane %v22, 2
    %v24 = vadd.f32 %v22, %v23
    %v25 = vrot.slane %v24, 1
    %v26 = vadd.f32 %v24, %v25
    %v27 = vsel %vm19, %v18, 0.0
    %v28 = vrot.slane %v27, 4
    %v29 = vadd.f32 %v27, %v28
    %v30 = vrot.slane %v29, 2
    %v31 = vadd.f32 %v29, %v30
    %v32 = vrot.slane %v31, 1
    %v33 = vadd.f32 %v31, %v32
    %v34 = vrcp.pop 4.0
    %v35 = vmul.f32 4.0, %v34
    %v36 = vsub.f32 1.0, %v35
    %v37 = vmul.f32 %v34, %v36
    %v38 = vadd.f32 %v34, %v37
    %vm39 = vweird.f32 %v34
    %v40 = vsel %vm39, %v34, %v38
    %v41 = vmul.f32 %v26, %v40
    %v42 = vmul.f32 %v33, %v40
    %v43 = vld [vmem:[%s1] sm:$0xff]
    %v44 = vld [vmem:[%s1 + $0x8] sm:$0xff]
    %v45 = vld [vmem:[%s1 + $0x10] sm:$0xff]
    %v46 = vld [vmem:[%s1 + $0x18] sm:$0xff]
    %v47 = vld [vmem:[%s1 + $0x20] sm:$0xff]
    %v48 = vld [vmem:[%s1 + $0x28] sm:$0xff]
    %v49 = vld [vmem:[%s1 + $0x30] sm:$0xff]
    %v50 = vld [vmem:[%s1 + $0x38] sm:$0xff]
    %v51 = vld [vmem:[%s1 + $0x40] sm:$0xff]
    %v52 = vld [vmem:[%s1 + $0x48] sm:$0xff]
    %v53 = vld [vmem:[%s1 + $0x50] sm:$0xff]
    %v54 = vld [vmem:[%s1 + $0x58] sm:$0xff]
    %v55 = vld [vmem:[%s1 + $0x60] sm:$0xff]
    %v56 = vld [vmem:[%s1 + $0x68] sm:$0xff]
    %v57 = vld [vmem:[%s1 + $0x70] sm:$0xff]
    %v58 = vld [vmem:[%s1 + $0x78] sm:$0xff]
    %v59 = vld [vmem:[%s2] sm:$0x1]
    %v61 = vperm.slane %v59, 0
    %vm65 = vcmask 1041409
    %v66 = vsel %vm65, %v42, %v41
    %68 = vmatpush.msra.mxu0 %v58
    %69 = vmatpush.msra.mxu0 %v57
    %70 = vmatpush.msra.mxu0 %v56
    %71 = vmatpush.msra.mxu0 %v55
    %72 = vmatpush.msra.mxu0 %v54
    %73 = vmatpush.msra.mxu0 %v53
    %74 = vmatpush.msra.mxu0 %v52
    %75 = vmatpush.msra.mxu0 %v51
    %76 = vmatpush.msra.mxu0 %v50
    %77 = vmatpush.msra.mxu0 %v49
    %78 = vmatpush.msra.mxu0 %v48
    %79 = vmatpush.msra.mxu0 %v47
    %80 = vmatpush.msra.mxu0 %v46
    %81 = vmatpush.msra.mxu0 %v45
    %82 = vmatpush.msra.mxu0 %v44
    %83 = vmatpush.msra.mxu0 %v43
    %84 = vmatmul.f32.gmra.mxu0 %v66
    %v85 = vpop.f32.mrf.mxu0
    %v86 = vadd.f32 %v61, %v85
    %87 = vdwg.mxu0
    %88 = vst [vmem:[#allocation2] sm:$0x3] %v86
    // Predicated region
    $region14: #{resnet_forward.25} parent=1 // pred_check
      _
    $region15: #{resnet_forward.25} parent=1 // pred_check_branch
      %90 = sbr.rel (0) target = $region17
    $region16: #{resnet_forward.25} parent=1 // pred_region
      %92 = vsyncadd [#allocation3], 0
      %s94 = sshll.u32 [#allocation2], 4
      %s95 = int_to_ptr.vmem [resolvable:$true] %s94
      %s96 = sshll.u32 %s3, 4
      %s97 = int_to_ptr.hbm [resolvable:$true] %s96
      %99 = dma.vmem_to_hbm [thread:$0]  %s95, 32, %s97, [#allocation3]
    $region17: #{resnet_forward.25} parent=1 // pred_fallthru
      _
    // Predicated region
    $region18: #{resnet_forward.25} parent=1 // pred_check
      _
    $region19: #{resnet_forward.25} parent=1 // pred_check_branch
      %101 = sbr.rel (0) target = $region21
    $region20: #{resnet_forward.25} parent=1 // pred_region
      %103 = dma.done [#allocation3], 32
    $region21: #{resnet_forward.25} parent=1 // pred_fallthru
      _
    %104 = vsyncpa [#allocation3], 1

// kernel: resnet_forward.24
$region0: #{resnet_forward.24}
  #allocation0 [shape = 'u32[]', space=smem, size = 0x4, offset = 0x4, fixed_abs, tag = 'smem constant byte address 0x4 - core index']
  #allocation1 [shape = 'u32[72,128]{1,0:T(1,128)}', space=vmem, size = 0x9000, scoped, tag = 'internal scratch']
  %s0 = inlined_call_operand.vmem [shape: bf16[8,576], index: 0, kind: input, shape index: {}]
  %s1 = inlined_call_operand.vmem [shape: bf16[576,128], index: 1, kind: input, shape index: {}]
  %s2 = inlined_call_operand.vmem [shape: f32[1,128], index: 2, kind: input, shape index: {}]
  %s3 = inlined_call_operand.vmem [shape: bf16[8,128], index: 3, kind: input, shape index: {}]
  %s4 = inlined_call_operand.vmem [shape: bf16[8,128], index: 4, kind: output, shape index: {}]
  %s5 = sld [smem:[#allocation0]]
  $region26: #{resnet_forward.24} parent=0
    _
  %s7 = ssub.s32 1, %s5
  %s8 = scalar_select 0, %s7, %s5
  // Predicated region
  $region2: #{resnet_forward.24} parent=0 // pred_check
    _
  $region3: #{resnet_forward.24} parent=0 // pred_check_branch
    %10 = sbr.rel (0) target = $region5
  $region4: #{resnet_forward.24} parent=0 // pred_region
    _
  $region5: #{resnet_forward.24} parent=0 // pred_fallthru
    _
  // Predicated region
  $region6: #{resnet_forward.24} parent=0 // pred_check
    _
  $region7: #{resnet_forward.24} parent=0 // pred_check_branch
    %12 = sbr.rel (0) target = $region9
  $region8: #{resnet_forward.24} parent=0 // pred_region
    _
  $region9: #{resnet_forward.24} parent=0 // pred_fallthru
    _
  // Predicated region
  $region10: #{resnet_forward.24} parent=0 // pred_check
    _
  $region11: #{resnet_forward.24} parent=0 // pred_check_branch
    %14 = sbr.rel (0) target = $region13
  $region12: #{resnet_forward.24} parent=0 // pred_region
    _
  $region13: #{resnet_forward.24} parent=0 // pred_fallthru
    _
  // Predicated region
  $region14: #{resnet_forward.24} parent=0 // pred_check
    _
  $region15: #{resnet_forward.24} parent=0 // pred_check_branch
    %16 = sbr.rel (0) target = $region17
  $region16: #{resnet_forward.24} parent=0 // pred_region
    _
  $region17: #{resnet_forward.24} parent=0 // pred_fallthru
    _
  %v18 = vld [vmem:[%s0] sm:$0xff]
  %v19 = vld [vmem:[%s0 + $0x8] sm:$0xff]
  %v20 = vld [vmem:[%s0 + $0x10] sm:$0xf]
  %v21 = vld [vmem:[%s1] sm:$0xf]
  %v22 = vld [vmem:[%s1 + $0x4] sm:$0xf]
  %v23 = vld [vmem:[%s1 + $0x8] sm:$0xf]
  %v24 = vld [vmem:[%s1 + $0xc] sm:$0xf]
  %v25 = vld [vmem:[%s1 + $0x10] sm:$0xf]
  %v26 = vld [vmem:[%s1 + $0x14] sm:$0xf]
  %v27 = vld [vmem:[%s1 + $0x18] sm:$0xf]
  %v28 = vld [vmem:[%s1 + $0x1c] sm:$0xf]
  %v29 = vld [vmem:[%s1 + $0x20] sm:$0xf]
  %v30 = vld [vmem:[%s1 + $0x24] sm:$0xf]
  %v31 = vld [vmem:[%s1 + $0x28] sm:$0xf]
  %v32 = vld [vmem:[%s1 + $0x2c] sm:$0xf]
  %v33 = vld [vmem:[%s1 + $0x30] sm:$0xf]
  %v34 = vld [vmem:[%s1 + $0x34] sm:$0xf]
  %v35 = vld [vmem:[%s1 + $0x38] sm:$0xf]
  %v36 = vld [vmem:[%s1 + $0x3c] sm:$0xf]
  %v37 = vld [vmem:[%s1 + $0x40] sm:$0xf]
  %v38 = vld [vmem:[%s1 + $0x44] sm:$0xf]
  %v39 = vld [vmem:[%s1 + $0x48] sm:$0xf]
  %v40 = vld [vmem:[%s1 + $0x4c] sm:$0xf]
  %v41 = vld [vmem:[%s1 + $0x50] sm:$0xf]
  %v42 = vld [vmem:[%s1 + $0x54] sm:$0xf]
  %v43 = vld [vmem:[%s1 + $0x58] sm:$0xf]
  %v44 = vld [vmem:[%s1 + $0x5c] sm:$0xf]
  %v45 = vld [vmem:[%s1 + $0x60] sm:$0xf]
  %v46 = vld [vmem:[%s1 + $0x64] sm:$0xf]
  %v47 = vld [vmem:[%s1 + $0x68] sm:$0xf]
  %v48 = vld [vmem:[%s1 + $0x6c] sm:$0xf]
  %v49 = vld [vmem:[%s1 + $0x70] sm:$0xf]
  %v50 = vld [vmem:[%s1 + $0x74] sm:$0xf]
  %v51 = vld [vmem:[%s1 + $0x78] sm:$0xf]
  %v52 = vld [vmem:[%s1 + $0x7c] sm:$0xf]
  %v53 = vld [vmem:[%s1 + $0x80] sm:$0xf]
  %v54 = vld [vmem:[%s1 + $0x84] sm:$0xf]
  %v55 = vld [vmem:[%s1 + $0x88] sm:$0xf]
  %v56 = vld [vmem:[%s1 + $0x8c] sm:$0xf]
  %v57 = vld [vmem:[%s1 + $0x90] sm:$0xf]
  %v58 = vld [vmem:[%s1 + $0x94] sm:$0xf]
  %v59 = vld [vmem:[%s1 + $0x98] sm:$0xf]
  %v60 = vld [vmem:[%s1 + $0x9c] sm:$0xf]
  %v61 = vld [vmem:[%s1 + $0xa0] sm:$0xf]
  %v62 = vld [vmem:[%s1 + $0xa4] sm:$0xf]
  %v63 = vld [vmem:[%s1 + $0xa8] sm:$0xf]
  %v64 = vld [vmem:[%s1 + $0xac] sm:$0xf]
  %v65 = vld [vmem:[%s1 + $0xb0] sm:$0xf]
  %v66 = vld [vmem:[%s1 + $0xb4] sm:$0xf]
  %v67 = vld [vmem:[%s1 + $0xb8] sm:$0xf]
  %v68 = vld [vmem:[%s1 + $0xbc] sm:$0xf]
  %v69 = vld [vmem:[%s1 + $0xc0] sm:$0xf]
  %v70 = vld [vmem:[%s1 + $0xc4] sm:$0xf]
  %v71 = vld [vmem:[%s1 + $0xc8] sm:$0xf]
  %v72 = vld [vmem:[%s1 + $0xcc] sm:$0xf]
  %v73 = vld [vmem:[%s1 + $0xd0] sm:$0xf]
  %v74 = vld [vmem:[%s1 + $0xd4] sm:$0xf]
  %v75 = vld [vmem:[%s1 + $0xd8] sm:$0xf]
  %v76 = vld [vmem:[%s1 + $0xdc] sm:$0xf]
  %v77 = vld [vmem:[%s1 + $0xe0] sm:$0xf]
  %v78 = vld [vmem:[%s1 + $0xe4] sm:$0xf]
  %v79 = vld [vmem:[%s1 + $0xe8] sm:$0xf]
  %v80 = vld [vmem:[%s1 + $0xec] sm:$0xf]
  %v81 = vld [vmem:[%s1 + $0xf0] sm:$0xf]
  %v82 = vld [vmem:[%s1 + $0xf4] sm:$0xf]
  %v83 = vld [vmem:[%s1 + $0xf8] sm:$0xf]
  %v84 = vld [vmem:[%s1 + $0xfc] sm:$0xf]
  %v85 = vld [vmem:[%s1 + $0x100] sm:$0xf]
  %v86 = vld [vmem:[%s1 + $0x104] sm:$0xf]
  %v87 = vld [vmem:[%s1 + $0x108] sm:$0xf]
  %v88 = vld [vmem:[%s1 + $0x10c] sm:$0xf]
  %v89 = vld [vmem:[%s1 + $0x110] sm:$0xf]
  %v90 = vld [vmem:[%s1 + $0x114] sm:$0xf]
  %v91 = vld [vmem:[%s1 + $0x118] sm:$0xf]
  %v92 = vld [vmem:[%s1 + $0x11c] sm:$0xf]
  %v93 = vld [vmem:[%s2] sm:$0x1]
  %v95 = vperm.slane %v93, 0
  %v100 = vunpack.c.l.b16 %v18
  %v101 = vunpack.c.h.b16 %v18
  %v102 = vunpack.c.l.b16 %v19
  %v103 = vunpack.c.h.b16 %v19
  %v104 = vunpack.c.l.b16 %v20
  %v105 = vpack.c.b16 %v100, %v100
  %v106 = vpack.c.b16 %v101, %v101
  %v107 = vpack.c.b16 %v102, %v102
  %v108 = vpack.c.b16 %v103, %v103
  %v109 = vpack.c.b16 %v104, %v104
  %v186 = vunpack.c.l.b16 %v21
  %v187 = vunpack.c.l.b16 %v22
  %v188 = vunpack.c.l.b16 %v23
  %v189 = vunpack.c.l.b16 %v24
  %v190 = vunpack.c.l.b16 %v25
  %v191 = vunpack.c.l.b16 %v26
  %v192 = vunpack.c.l.b16 %v27
  %v193 = vunpack.c.l.b16 %v28
  %v194 = vunpack.c.l.b16 %v29
  %v195 = vunpack.c.l.b16 %v30
  %v196 = vunpack.c.l.b16 %v31
  %v197 = vunpack.c.l.b16 %v32
  %v198 = vunpack.c.l.b16 %v33
  %v199 = vunpack.c.l.b16 %v34
  %v200 = vunpack.c.l.b16 %v35
  %v201 = vunpack.c.l.b16 %v36
  %v202 = vunpack.c.l.b16 %v37
  %v203 = vunpack.c.l.b16 %v38
  %v204 = vunpack.c.l.b16 %v39
  %v205 = vunpack.c.l.b16 %v40
  %v206 = vunpack.c.l.b16 %v41
  %v207 = vunpack.c.l.b16 %v42
  %v208 = vunpack.c.l.b16 %v43
  %v209 = vunpack.c.l.b16 %v44
  %v210 = vunpack.c.l.b16 %v45
  %v211 = vunpack.c.l.b16 %v46
  %v212 = vunpack.c.l.b16 %v47
  %v213 = vunpack.c.l.b16 %v48
  %v214 = vunpack.c.l.b16 %v49
  %v215 = vunpack.c.l.b16 %v50
  %v216 = vunpack.c.l.b16 %v51
  %v217 = vunpack.c.l.b16 %v52
  %v218 = vunpack.c.l.b16 %v53
  %v219 = vunpack.c.l.b16 %v54
  %v220 = vunpack.c.l.b16 %v55
  %v221 = vunpack.c.l.b16 %v56
  %v222 = vunpack.c.l.b16 %v57
  %v223 = vunpack.c.l.b16 %v58
  %v224 = vunpack.c.l.b16 %v59
  %v225 = vunpack.c.l.b16 %v60
  %v226 = vunpack.c.l.b16 %v61
  %v227 = vunpack.c.l.b16 %v62
  %v228 = vunpack.c.l.b16 %v63
  %v229 = vunpack.c.l.b16 %v64
  %v230 = vunpack.c.l.b16 %v65
  %v231 = vunpack.c.l.b16 %v66
  %v232 = vunpack.c.l.b16 %v67
  %v233 = vunpack.c.l.b16 %v68
  %v234 = vunpack.c.l.b16 %v69
  %v235 = vunpack.c.l.b16 %v70
  %v236 = vunpack.c.l.b16 %v71
  %v237 = vunpack.c.l.b16 %v72
  %v238 = vunpack.c.l.b16 %v73
  %v239 = vunpack.c.l.b16 %v74
  %v240 = vunpack.c.l.b16 %v75
  %v241 = vunpack.c.l.b16 %v76
  %v242 = vunpack.c.l.b16 %v77
  %v243 = vunpack.c.l.b16 %v78
  %v244 = vunpack.c.l.b16 %v79
  %v245 = vunpack.c.l.b16 %v80
  %v246 = vunpack.c.l.b16 %v81
  %v247 = vunpack.c.l.b16 %v82
  %v248 = vunpack.c.l.b16 %v83
  %v249 = vunpack.c.l.b16 %v84
  %v250 = vunpack.c.l.b16 %v85
  %v251 = vunpack.c.l.b16 %v86
  %v252 = vunpack.c.l.b16 %v87
  %v253 = vunpack.c.l.b16 %v88
  %v254 = vunpack.c.l.b16 %v89
  %v255 = vunpack.c.l.b16 %v90
  %v256 = vunpack.c.l.b16 %v91
  %v257 = vunpack.c.l.b16 %v92
  %v258 = vpack.c.b16 %v187, %v186
  %v259 = vpack.c.b16 %v189, %v188
  %v260 = vpack.c.b16 %v191, %v190
  %v261 = vpack.c.b16 %v193, %v192
  %v262 = vpack.c.b16 %v195, %v194
  %v263 = vpack.c.b16 %v197, %v196
  %v264 = vpack.c.b16 %v199, %v198
  %v265 = vpack.c.b16 %v201, %v200
  %v266 = vpack.c.b16 %v203, %v202
  %v267 = vpack.c.b16 %v205, %v204
  %v268 = vpack.c.b16 %v207, %v206
  %v269 = vpack.c.b16 %v209, %v208
  %v270 = vpack.c.b16 %v211, %v210
  %v271 = vpack.c.b16 %v213, %v212
  %v272 = vpack.c.b16 %v215, %v214
  %v273 = vpack.c.b16 %v217, %v216
  %v274 = vpack.c.b16 %v219, %v218
  %v275 = vpack.c.b16 %v221, %v220
  %v276 = vpack.c.b16 %v223, %v222
  %v277 = vpack.c.b16 %v225, %v224
  %v278 = vpack.c.b16 %v227, %v226
  %v279 = vpack.c.b16 %v229, %v228
  %v280 = vpack.c.b16 %v231, %v230
  %v281 = vpack.c.b16 %v233, %v232
  %v282 = vpack.c.b16 %v235, %v234
  %v283 = vpack.c.b16 %v237, %v236
  %v284 = vpack.c.b16 %v239, %v238
  %v285 = vpack.c.b16 %v241, %v240
  %v286 = vpack.c.b16 %v243, %v242
  %v287 = vpack.c.b16 %v245, %v244
  %v288 = vpack.c.b16 %v247, %v246
  %v289 = vpack.c.b16 %v249, %v248
  %v290 = vpack.c.b16 %v251, %v250
  %v291 = vpack.c.b16 %v253, %v252
  %v292 = vpack.c.b16 %v255, %v254
  %v293 = vpack.c.b16 %v257, %v256
  %vm330 = vcmask 523264
  %v332 = vsel %vm330, %v109, 0
  %334 = vmatpush.bf16.msra.mxu0 %v265
  %335 = vmatpush.bf16.msra.mxu0 %v264
  %336 = vmatpush.bf16.msra.mxu0 %v263
  %337 = vmatpush.bf16.msra.mxu0 %v262
  %338 = vmatpush.bf16.msra.mxu0 %v261
  %339 = vmatpush.bf16.msra.mxu0 %v260
  %340 = vmatpush.bf16.msra.mxu0 %v259
  %341 = vmatpush.bf16.msra.mxu0 %v258
  %342 = vmatmul.bf16.gmra.mxu0 %v105
  %v343 = vpop.f32.mrf.mxu0
  %v344 = vadd.f32 %v95, %v343
  %v345 = vpop.f32.mrf.mxu0
  %346 = vdwg.mxu0
  %347 = vmatpush.bf16.msra.mxu0 %v273
  %348 = vmatpush.bf16.msra.mxu0 %v272
  %349 = vmatpush.bf16.msra.mxu0 %v271
  %350 = vmatpush.bf16.msra.mxu0 %v270
  %351 = vmatpush.bf16.msra.mxu0 %v269
  %352 = vmatpush.bf16.msra.mxu0 %v268
  %353 = vmatpush.bf16.msra.mxu0 %v267
  %354 = vmatpush.bf16.msra.mxu0 %v266
  %355 = vmatmul.bf16.gmra.mxu0 %v106
  %v356 = vpop.f32.mrf.mxu0
  %v357 = vadd.f32 %v344, %v356
  %v358 = vpop.f32.mrf.mxu0
  %359 = vdwg.mxu0
  %360 = vmatpush.bf16.msra.mxu0 %v281
  %361 = vmatpush.bf16.msra.mxu0 %v280
  %362 = vmatpush.bf16.msra.mxu0 %v279
  %363 = vmatpush.bf16.msra.mxu0 %v278
  %364 = vmatpush.bf16.msra.mxu0 %v277
  %365 = vmatpush.bf16.msra.mxu0 %v276
  %366 = vmatpush.bf16.msra.mxu0 %v275
  %367 = vmatpush.bf16.msra.mxu0 %v274
  %368 = vmatmul.bf16.gmra.mxu0 %v107
  %v369 = vpop.f32.mrf.mxu0
  %v370 = vadd.f32 %v357, %v369
  %v371 = vpop.f32.mrf.mxu0
  %372 = vdwg.mxu0
  %373 = vmatpush.bf16.msra.mxu0 %v289
  %374 = vmatpush.bf16.msra.mxu0 %v288
  %375 = vmatpush.bf16.msra.mxu0 %v287
  %376 = vmatpush.bf16.msra.mxu0 %v286
  %377 = vmatpush.bf16.msra.mxu0 %v285
  %378 = vmatpush.bf16.msra.mxu0 %v284
  %379 = vmatpush.bf16.msra.mxu0 %v283
  %380 = vmatpush.bf16.msra.mxu0 %v282
  %381 = vmatmul.bf16.gmra.mxu0 %v108
  %v382 = vpop.f32.mrf.mxu0
  %v383 = vadd.f32 %v370, %v382
  %v384 = vpop.f32.mrf.mxu0
  %385 = vdwg.mxu0
  %386 = vmatpush.bf16.msra.mxu0 0
  %387 = vmatpush.bf16.msra.mxu0 0
  %388 = vmatpush.bf16.msra.mxu0 0
  %389 = vmatpush.bf16.msra.mxu0 0
  %390 = vmatpush.bf16.msra.mxu0 %v293
  %391 = vmatpush.bf16.msra.mxu0 %v292
  %392 = vmatpush.bf16.msra.mxu0 %v291
  %393 = vmatpush.bf16.msra.mxu0 %v290
  %394 = vmatmul.bf16.gmra.mxu0 %v332
  %v395 = vpop.f32.mrf.mxu0
  %v396 = vadd.f32 %v383, %v395
  %v397 = vpop.f32.mrf.mxu0
  %398 = vdwg.mxu0
  %v399 = vld [vmem:[%s3] sm:$0xf]
  %v400 = vunpack.c.l.bf16 %v399
  %v401 = vadd.f32 %v396, %v400
  %v402 = vmax.f32 %v401, 0.0
  %v403 = vpack.c.bf16 %v402, %v402
  %404 = vst [vmem:[%s4] sm:$0xf] %v403
  // Predicated region
  $region18: #{resnet_forward.24} parent=0 // pred_check
    _
  $region19: #{resnet_forward.24} parent=0 // pred_check_branch
    %406 = sbr.rel (0) target = $region21
  $region20: #{resnet_forward.24} parent=0 // pred_region
    _
  $region21: #{resnet_forward.24} parent=0 // pred_fallthru
    _
  // Predicated region
  $region22: #{resnet_forward.24} parent=0 // pred_check
    _
  $region23: #{resnet_forward.24} parent=0 // pred_check_branch
    %408 = sbr.rel (0) target = $region25
  $region24: #{resnet_forward.24} parent=0 // pred_region
    _
  $region25: #{resnet_forward.24} parent=0 // pred_fallthru
    _

</llo_original>
